<compile_context>
chip_gen: v5e
topology: v5e:2x2
jax: 0.10.0
libtpu: 0.0.40
codegen_flags: <defaults>
</compile_context>

<pallas_src>
import jax
import jax.numpy as jnp
from jax.experimental import pallas as pl
from jax.experimental.pallas import tpu as pltpu

D_MODEL = 256
EMB_DIM = 50
CLASS_SIZE = 5
WEIGHT_SIZE = 4
N_HIDDEN = 7
RAW_IN = 10 * 10 + 2 * EMB_DIM     # 200 real input features
D_IN_PAD = 256                     # lane-aligned K for the projection matmul
HEAD_ROWS = 8                      # output head padded 1 -> 8 sublanes (row 0 real)
BIAS_COLS = 128                    # lane width of the packed bias table
BO_COL = 1 + N_HIDDEN              # column of the bias table holding bo
TM_MAX = 512                       # max batch tile (lane dimension of activations)


def mlp_bc_kernel(x_ref, wp_ref, w_ref, wo_ref, b_ref, out_ref):
    # x_ref  : (D_IN_PAD, TM)            bf16   input features, batch along lanes
    # wp_ref : (D_MODEL, D_IN_PAD)       bf16   projection weight (transposed, padded)
    # w_ref  : (N_HIDDEN, D_MODEL, D_MODEL) bf16 hidden weights (transposed)
    # wo_ref : (HEAD_ROWS, D_MODEL)      bf16   output head (row 0 real)
    # b_ref  : (D_MODEL, BIAS_COLS)      f32    col0=bp, col 1+l = b_l, [0, BO_COL]=bo
    # out_ref: (HEAD_ROWS, TM)           f32    row 0 = sigmoid output

    # projection + ReLU  (bf16 inputs, f32 accumulation on the MXU)
    h = jnp.dot(wp_ref[...], x_ref[...], preferred_element_type=jnp.float32)
    h = jnp.maximum(h + b_ref[:, 0:1], 0.0)                      # (256, TM) f32

    # 7 residual blocks: h = h + relu(W_l^T @ h + b_l)
    # (Dropout(p=0.05) is identity at inference.)
    for l in range(N_HIDDEN):
        z = jnp.dot(w_ref[l], h.astype(jnp.bfloat16),
                    preferred_element_type=jnp.float32)
        z = jnp.maximum(z + b_ref[:, l + 1:l + 2], 0.0)
        h = h + z

    # output head: (8, 256) @ (256, TM) -> (8, TM); only row 0 is real.
    o = jnp.dot(wo_ref[...], h.astype(jnp.bfloat16),
                preferred_element_type=jnp.float32)
    o = o + b_ref[0:1, BO_COL:BO_COL + 1]
    out_ref[...] = pl.reciprocal(1.0 + jnp.exp(-o), approx=True)


@jax.jit
def mlp_bc_forward(x, label, weight, packed):
    """x: (B,10,10) f32, label/weight: (B,) int32. Returns (B,) f32 in (0,1)."""
    wp_t, w_stack_t, wo8, b_all, emb1, emb2 = packed
    B = x.shape[0]

    # embedding lookups + concat (tiny, done in the XLA wrapper), then transpose so
    # the batch sits on the lane axis of the kernel input.
    e1 = jnp.take(emb1, label, axis=0)                            # (B, 50)
    e2 = jnp.take(emb2, weight, axis=0)                           # (B, 50)
    x_cat = jnp.concatenate([x.reshape(B, -1), e1, e2], axis=1)   # (B, 200)
    x_t = x_cat.astype(jnp.bfloat16).T                            # (200, B)

    # batch tile: as large as 512, multiple of 128, and >= 2 grid steps when possible
    # so v7x's two TensorCores both get work via the "parallel" grid axis.
    b128 = -(-B // 128) * 128
    tm = min(TM_MAX, max(128, (b128 // 2) // 128 * 128))
    b_pad = -(-B // tm) * tm
    x_t = jnp.pad(x_t, ((0, D_IN_PAD - RAW_IN), (0, b_pad - B)))  # (256, b_pad)

    out = pl.pallas_call(
        mlp_bc_kernel,
        out_shape=jax.ShapeDtypeStruct((HEAD_ROWS, b_pad), jnp.float32),
        grid_spec=pltpu.PrefetchScalarGridSpec(
            num_scalar_prefetch=0,
            grid=(b_pad // tm,),
            in_specs=[
                pl.BlockSpec((D_IN_PAD, tm), lambda i: (0, i)),                    # x tile
                pl.BlockSpec((D_MODEL, D_IN_PAD), lambda i: (0, 0)),               # Wp^T (resident)
                pl.BlockSpec((N_HIDDEN, D_MODEL, D_MODEL), lambda i: (0, 0, 0)),   # hidden W^T
                pl.BlockSpec((HEAD_ROWS, D_MODEL), lambda i: (0, 0)),              # Wo^T (padded)
                pl.BlockSpec((D_MODEL, BIAS_COLS), lambda i: (0, 0)),              # bias table
            ],
            out_specs=pl.BlockSpec((HEAD_ROWS, tm), lambda i: (0, i)),
        ),
        compiler_params=pltpu.CompilerParams(
            dimension_semantics=("parallel",)),
    )(x_t, wp_t, w_stack_t, wo8, b_all)

    return out[0, :B]


def init_params(key):
    """PyTorch-default init; linear weights stored (in_features, out_features)."""
    n_linear = 2 + N_HIDDEN
    keys = jax.random.split(key, 2 * n_linear + 2)

    def linear(kw, kb, fan_in, fan_out):
        bound = 1.0 / float(fan_in) ** 0.5
        w = jax.random.uniform(kw, (fan_in, fan_out), jnp.float32, -bound, bound)
        b = jax.random.uniform(kb, (fan_out,), jnp.float32, -bound, bound)
        return w, b

    wp, bp = linear(keys[0], keys[1], RAW_IN, D_MODEL)
    hidden = [linear(keys[2 + 2 * i], keys[3 + 2 * i], D_MODEL, D_MODEL)
              for i in range(N_HIDDEN)]
    hidden_ws = [w for w, _ in hidden]
    hidden_bs = [b for _, b in hidden]
    wo, bo = linear(keys[2 + 2 * N_HIDDEN], keys[3 + 2 * N_HIDDEN], D_MODEL, 1)
    emb1 = jax.random.normal(keys[-2], (CLASS_SIZE, EMB_DIM), jnp.float32)
    emb2 = jax.random.normal(keys[-1], (WEIGHT_SIZE, EMB_DIM), jnp.float32)
    return wp, bp, hidden_ws, hidden_bs, wo, bo, emb1, emb2


def pack_params(params):
    """Transpose/pad/cast params into the kernel-ready layout."""
    wp, bp, hidden_ws, hidden_bs, wo, bo, emb1, emb2 = params

    wp_t = jnp.pad(wp.T, ((0, 0), (0, D_IN_PAD - RAW_IN)))          # (256, 256)
    w_stack_t = jnp.stack([w.T for w in hidden_ws])                  # (7, 256, 256)
    wo8 = jnp.zeros((HEAD_ROWS, D_MODEL), jnp.float32).at[0].set(wo[:, 0])

    b_all = jnp.zeros((D_MODEL, BIAS_COLS), jnp.float32)
    b_all = b_all.at[:, 0].set(bp)
    for l, b in enumerate(hidden_bs):
        b_all = b_all.at[:, 1 + l].set(b)
    b_all = b_all.at[0, BO_COL].set(bo[0])

    return (
        wp_t.astype(jnp.bfloat16),
        w_stack_t.astype(jnp.bfloat16),
        wo8.astype(jnp.bfloat16),
        b_all,                                                        # f32
        emb1,
        emb2,
    )


def mlp_bc_reference(x, label, weight, params):
    """Pure-JAX f32 reference matching the PyTorch forward (eval mode)."""
    wp, bp, hidden_ws, hidden_bs, wo, bo, emb1, emb2 = params
    B = x.shape[0]
    h = jnp.concatenate([x.reshape(B, -1), emb1[label], emb2[weight]], axis=1)
    h = jnp.maximum(h @ wp + bp, 0.0)
    for w, b in zip(hidden_ws, hidden_bs):
        h = h + jnp.maximum(h @ w + b, 0.0)
    return jax.nn.sigmoid(h @ wo + bo)[:, 0]


if __name__ == "__main__":
    key = jax.random.PRNGKey(0)
    kp, kx, kl, kw = jax.random.split(key, 4)

    params = init_params(kp)
    packed = pack_params(params)

    B = 2
    x = jax.random.normal(kx, (B, 10, 10), jnp.float32)
    label = jax.random.randint(kl, (B,), 0, CLASS_SIZE, dtype=jnp.int32)
    weight = jax.random.randint(kw, (B,), 0, WEIGHT_SIZE, dtype=jnp.int32)

    out = mlp_bc_forward(x, label, weight, packed)
    jax.block_until_ready(out)
    assert out.shape == (B,)

    ref = mlp_bc_reference(x, label, weight, params)
    max_err = float(jnp.max(jnp.abs(out - ref)))
    assert max_err < 5e-2, f"kernel vs reference max abs err {max_err}"

    print("KERNEL_OK")
</pallas_src>

<mosaic_0001>
module attributes {stable_mosaic.version = 11 : i64} {
  func.func @mlp_bc_kernel(%arg0: i32, %arg1: memref<256x128xbf16, #tpu.memory_space<vmem>>, %arg2: memref<256x256xbf16, #tpu.memory_space<vmem>>, %arg3: memref<7x256x256xbf16, #tpu.memory_space<vmem>>, %arg4: memref<8x256xbf16, #tpu.memory_space<vmem>>, %arg5: memref<256x128xf32, #tpu.memory_space<vmem>>, %arg6: memref<8x128xf32, #tpu.memory_space<vmem>>) attributes {dimension_semantics = [#tpu.dimension_semantics<parallel>], iteration_bounds = array<i64: 1>, scalar_prefetch = 0 : i64, scratch_operands = 0 : i64, tpu.core_type = #tpu.core_type<tc>, window_params = [{transform_indices = @transform_0, window_bounds = array<i64: 256, 128>}, {pipeline_mode = #tpu.pipeline_mode<synchronous>, transform_indices = @transform_1, window_bounds = array<i64: 256, 256>}, {pipeline_mode = #tpu.pipeline_mode<synchronous>, transform_indices = @transform_2, window_bounds = array<i64: 7, 256, 256>}, {pipeline_mode = #tpu.pipeline_mode<synchronous>, transform_indices = @transform_3, window_bounds = array<i64: 8, 256>}, {pipeline_mode = #tpu.pipeline_mode<synchronous>, transform_indices = @transform_4, window_bounds = array<i64: 256, 128>}, {transform_indices = @transform_5, window_bounds = array<i64: 8, 128>}]} {
    %c0 = arith.constant 0 : index
    %c0_0 = arith.constant 0 : index
    %0 = vector.load %arg2[%c0, %c0_0] : memref<256x256xbf16, #tpu.memory_space<vmem>>, vector<256x256xbf16>
    %c0_1 = arith.constant 0 : index
    %c0_2 = arith.constant 0 : index
    %1 = vector.load %arg1[%c0_1, %c0_2] : memref<256x128xbf16, #tpu.memory_space<vmem>>, vector<256x128xbf16>
    %cst = arith.constant dense<0.000000e+00> : vector<256x128xf32>
    %2 = tpu.matmul %0, %1, %cst {dimension_numbers = #tpu.dot_dimension_numbers<[1], [0], [0], [1], [0, 0, 1, 1], [], []>} : vector<256x256xbf16>, vector<256x128xbf16>, vector<256x128xf32> -> vector<256x128xf32>
    %c0_3 = arith.constant 0 : index
    %c0_4 = arith.constant 0 : index
    %3 = vector.load %arg5[%c0_3, %c0_4] : memref<256x128xf32, #tpu.memory_space<vmem>>, vector<256x1xf32>
    %4 = vector.broadcast %3 : vector<256x1xf32> to vector<256x128xf32>
    %5 = arith.addf %2, %4 : vector<256x128xf32>
    %cst_5 = arith.constant 0.000000e+00 : f32
    %6 = vector.broadcast %cst_5 : f32 to vector<256x128xf32>
    %7 = arith.maximumf %5, %6 : vector<256x128xf32>
    %c0_6 = arith.constant 0 : index
    %c0_7 = arith.constant 0 : index
    %c0_8 = arith.constant 0 : index
    %8 = vector.load %arg3[%c0_6, %c0_7, %c0_8] : memref<7x256x256xbf16, #tpu.memory_space<vmem>>, vector<1x256x256xbf16>
    %9 = vector.shape_cast %8 : vector<1x256x256xbf16> to vector<256x256xbf16>
    %10 = arith.truncf %7 : vector<256x128xf32> to vector<256x128xbf16>
    %cst_9 = arith.constant dense<0.000000e+00> : vector<256x128xf32>
    %11 = tpu.matmul %9, %10, %cst_9 {dimension_numbers = #tpu.dot_dimension_numbers<[1], [0], [0], [1], [0, 0, 1, 1], [], []>} : vector<256x256xbf16>, vector<256x128xbf16>, vector<256x128xf32> -> vector<256x128xf32>
    %c0_10 = arith.constant 0 : index
    %c1 = arith.constant 1 : index
    %12 = vector.load %arg5[%c0_10, %c1] : memref<256x128xf32, #tpu.memory_space<vmem>>, vector<256x1xf32>
    %13 = vector.broadcast %12 : vector<256x1xf32> to vector<256x128xf32>
    %14 = arith.addf %11, %13 : vector<256x128xf32>
    %cst_11 = arith.constant 0.000000e+00 : f32
    %15 = vector.broadcast %cst_11 : f32 to vector<256x128xf32>
    %16 = arith.maximumf %14, %15 : vector<256x128xf32>
    %17 = arith.addf %7, %16 : vector<256x128xf32>
    %c1_12 = arith.constant 1 : index
    %c0_13 = arith.constant 0 : index
    %c0_14 = arith.constant 0 : index
    %18 = vector.load %arg3[%c1_12, %c0_13, %c0_14] : memref<7x256x256xbf16, #tpu.memory_space<vmem>>, vector<1x256x256xbf16>
    %19 = vector.shape_cast %18 : vector<1x256x256xbf16> to vector<256x256xbf16>
    %20 = arith.truncf %17 : vector<256x128xf32> to vector<256x128xbf16>
    %cst_15 = arith.constant dense<0.000000e+00> : vector<256x128xf32>
    %21 = tpu.matmul %19, %20, %cst_15 {dimension_numbers = #tpu.dot_dimension_numbers<[1], [0], [0], [1], [0, 0, 1, 1], [], []>} : vector<256x256xbf16>, vector<256x128xbf16>, vector<256x128xf32> -> vector<256x128xf32>
    %c0_16 = arith.constant 0 : index
    %c2 = arith.constant 2 : index
    %22 = vector.load %arg5[%c0_16, %c2] : memref<256x128xf32, #tpu.memory_space<vmem>>, vector<256x1xf32>
    %23 = vector.broadcast %22 : vector<256x1xf32> to vector<256x128xf32>
    %24 = arith.addf %21, %23 : vector<256x128xf32>
    %cst_17 = arith.constant 0.000000e+00 : f32
    %25 = vector.broadcast %cst_17 : f32 to vector<256x128xf32>
    %26 = arith.maximumf %24, %25 : vector<256x128xf32>
    %27 = arith.addf %17, %26 : vector<256x128xf32>
    %c2_18 = arith.constant 2 : index
    %c0_19 = arith.constant 0 : index
    %c0_20 = arith.constant 0 : index
    %28 = vector.load %arg3[%c2_18, %c0_19, %c0_20] : memref<7x256x256xbf16, #tpu.memory_space<vmem>>, vector<1x256x256xbf16>
    %29 = vector.shape_cast %28 : vector<1x256x256xbf16> to vector<256x256xbf16>
    %30 = arith.truncf %27 : vector<256x128xf32> to vector<256x128xbf16>
    %cst_21 = arith.constant dense<0.000000e+00> : vector<256x128xf32>
    %31 = tpu.matmul %29, %30, %cst_21 {dimension_numbers = #tpu.dot_dimension_numbers<[1], [0], [0], [1], [0, 0, 1, 1], [], []>} : vector<256x256xbf16>, vector<256x128xbf16>, vector<256x128xf32> -> vector<256x128xf32>
    %c0_22 = arith.constant 0 : index
    %c3 = arith.constant 3 : index
    %32 = vector.load %arg5[%c0_22, %c3] : memref<256x128xf32, #tpu.memory_space<vmem>>, vector<256x1xf32>
    %33 = vector.broadcast %32 : vector<256x1xf32> to vector<256x128xf32>
    %34 = arith.addf %31, %33 : vector<256x128xf32>
    %cst_23 = arith.constant 0.000000e+00 : f32
    %35 = vector.broadcast %cst_23 : f32 to vector<256x128xf32>
    %36 = arith.maximumf %34, %35 : vector<256x128xf32>
    %37 = arith.addf %27, %36 : vector<256x128xf32>
    %c3_24 = arith.constant 3 : index
    %c0_25 = arith.constant 0 : index
    %c0_26 = arith.constant 0 : index
    %38 = vector.load %arg3[%c3_24, %c0_25, %c0_26] : memref<7x256x256xbf16, #tpu.memory_space<vmem>>, vector<1x256x256xbf16>
    %39 = vector.shape_cast %38 : vector<1x256x256xbf16> to vector<256x256xbf16>
    %40 = arith.truncf %37 : vector<256x128xf32> to vector<256x128xbf16>
    %cst_27 = arith.constant dense<0.000000e+00> : vector<256x128xf32>
    %41 = tpu.matmul %39, %40, %cst_27 {dimension_numbers = #tpu.dot_dimension_numbers<[1], [0], [0], [1], [0, 0, 1, 1], [], []>} : vector<256x256xbf16>, vector<256x128xbf16>, vector<256x128xf32> -> vector<256x128xf32>
    %c0_28 = arith.constant 0 : index
    %c4 = arith.constant 4 : index
    %42 = vector.load %arg5[%c0_28, %c4] : memref<256x128xf32, #tpu.memory_space<vmem>>, vector<256x1xf32>
    %43 = vector.broadcast %42 : vector<256x1xf32> to vector<256x128xf32>
    %44 = arith.addf %41, %43 : vector<256x128xf32>
    %cst_29 = arith.constant 0.000000e+00 : f32
    %45 = vector.broadcast %cst_29 : f32 to vector<256x128xf32>
    %46 = arith.maximumf %44, %45 : vector<256x128xf32>
    %47 = arith.addf %37, %46 : vector<256x128xf32>
    %c4_30 = arith.constant 4 : index
    %c0_31 = arith.constant 0 : index
    %c0_32 = arith.constant 0 : index
    %48 = vector.load %arg3[%c4_30, %c0_31, %c0_32] : memref<7x256x256xbf16, #tpu.memory_space<vmem>>, vector<1x256x256xbf16>
    %49 = vector.shape_cast %48 : vector<1x256x256xbf16> to vector<256x256xbf16>
    %50 = arith.truncf %47 : vector<256x128xf32> to vector<256x128xbf16>
    %cst_33 = arith.constant dense<0.000000e+00> : vector<256x128xf32>
    %51 = tpu.matmul %49, %50, %cst_33 {dimension_numbers = #tpu.dot_dimension_numbers<[1], [0], [0], [1], [0, 0, 1, 1], [], []>} : vector<256x256xbf16>, vector<256x128xbf16>, vector<256x128xf32> -> vector<256x128xf32>
    %c0_34 = arith.constant 0 : index
    %c5 = arith.constant 5 : index
    %52 = vector.load %arg5[%c0_34, %c5] : memref<256x128xf32, #tpu.memory_space<vmem>>, vector<256x1xf32>
    %53 = vector.broadcast %52 : vector<256x1xf32> to vector<256x128xf32>
    %54 = arith.addf %51, %53 : vector<256x128xf32>
    %cst_35 = arith.constant 0.000000e+00 : f32
    %55 = vector.broadcast %cst_35 : f32 to vector<256x128xf32>
    %56 = arith.maximumf %54, %55 : vector<256x128xf32>
    %57 = arith.addf %47, %56 : vector<256x128xf32>
    %c5_36 = arith.constant 5 : index
    %c0_37 = arith.constant 0 : index
    %c0_38 = arith.constant 0 : index
    %58 = vector.load %arg3[%c5_36, %c0_37, %c0_38] : memref<7x256x256xbf16, #tpu.memory_space<vmem>>, vector<1x256x256xbf16>
    %59 = vector.shape_cast %58 : vector<1x256x256xbf16> to vector<256x256xbf16>
    %60 = arith.truncf %57 : vector<256x128xf32> to vector<256x128xbf16>
    %cst_39 = arith.constant dense<0.000000e+00> : vector<256x128xf32>
    %61 = tpu.matmul %59, %60, %cst_39 {dimension_numbers = #tpu.dot_dimension_numbers<[1], [0], [0], [1], [0, 0, 1, 1], [], []>} : vector<256x256xbf16>, vector<256x128xbf16>, vector<256x128xf32> -> vector<256x128xf32>
    %c0_40 = arith.constant 0 : index
    %c6 = arith.constant 6 : index
    %62 = vector.load %arg5[%c0_40, %c6] : memref<256x128xf32, #tpu.memory_space<vmem>>, vector<256x1xf32>
    %63 = vector.broadcast %62 : vector<256x1xf32> to vector<256x128xf32>
    %64 = arith.addf %61, %63 : vector<256x128xf32>
    %cst_41 = arith.constant 0.000000e+00 : f32
    %65 = vector.broadcast %cst_41 : f32 to vector<256x128xf32>
    %66 = arith.maximumf %64, %65 : vector<256x128xf32>
    %67 = arith.addf %57, %66 : vector<256x128xf32>
    %c6_42 = arith.constant 6 : index
    %c0_43 = arith.constant 0 : index
    %c0_44 = arith.constant 0 : index
    %68 = vector.load %arg3[%c6_42, %c0_43, %c0_44] : memref<7x256x256xbf16, #tpu.memory_space<vmem>>, vector<1x256x256xbf16>
    %69 = vector.shape_cast %68 : vector<1x256x256xbf16> to vector<256x256xbf16>
    %70 = arith.truncf %67 : vector<256x128xf32> to vector<256x128xbf16>
    %cst_45 = arith.constant dense<0.000000e+00> : vector<256x128xf32>
    %71 = tpu.matmul %69, %70, %cst_45 {dimension_numbers = #tpu.dot_dimension_numbers<[1], [0], [0], [1], [0, 0, 1, 1], [], []>} : vector<256x256xbf16>, vector<256x128xbf16>, vector<256x128xf32> -> vector<256x128xf32>
    %c0_46 = arith.constant 0 : index
    %c7 = arith.constant 7 : index
    %72 = vector.load %arg5[%c0_46, %c7] : memref<256x128xf32, #tpu.memory_space<vmem>>, vector<256x1xf32>
    %73 = vector.broadcast %72 : vector<256x1xf32> to vector<256x128xf32>
    %74 = arith.addf %71, %73 : vector<256x128xf32>
    %cst_47 = arith.constant 0.000000e+00 : f32
    %75 = vector.broadcast %cst_47 : f32 to vector<256x128xf32>
    %76 = arith.maximumf %74, %75 : vector<256x128xf32>
    %77 = arith.addf %67, %76 : vector<256x128xf32>
    %c0_48 = arith.constant 0 : index
    %c0_49 = arith.constant 0 : index
    %78 = vector.load %arg4[%c0_48, %c0_49] : memref<8x256xbf16, #tpu.memory_space<vmem>>, vector<8x256xbf16>
    %79 = arith.truncf %77 : vector<256x128xf32> to vector<256x128xbf16>
    %cst_50 = arith.constant dense<0.000000e+00> : vector<8x128xf32>
    %80 = tpu.matmul %78, %79, %cst_50 {dimension_numbers = #tpu.dot_dimension_numbers<[1], [0], [0], [1], [0, 0, 1, 1], [], []>} : vector<8x256xbf16>, vector<256x128xbf16>, vector<8x128xf32> -> vector<8x128xf32>
    %c0_51 = arith.constant 0 : index
    %c8 = arith.constant 8 : index
    %81 = vector.load %arg5[%c0_51, %c8] : memref<256x128xf32, #tpu.memory_space<vmem>>, vector<1x1xf32>
    %82 = vector.broadcast %81 : vector<1x1xf32> to vector<8x128xf32>
    %83 = arith.addf %80, %82 : vector<8x128xf32>
    %cst_52 = arith.constant 0.000000e+00 : f32
    %84 = vector.broadcast %cst_52 : f32 to vector<8x128xf32>
    %85 = arith.subf %84, %83 : vector<8x128xf32>
    %86 = math.exp %85 : vector<8x128xf32>
    %cst_53 = arith.constant 1.000000e+00 : f32
    %87 = vector.broadcast %cst_53 : f32 to vector<8x128xf32>
    %88 = arith.addf %87, %86 : vector<8x128xf32>
    %89 = tpu.reciprocal %88 {approx = true} : vector<8x128xf32> -> vector<8x128xf32>
    %c0_54 = arith.constant 0 : index
    %c0_55 = arith.constant 0 : index
    %90 = vector.load %arg6[%c0_54, %c0_55] : memref<8x128xf32, #tpu.memory_space<vmem>>, vector<8x128xf32>
    tpu.vector_store %arg6[%c0_54, %c0_55], %89 {strides = array<i32>} : memref<8x128xf32, #tpu.memory_space<vmem>>, vector<8x128xf32>,
    return
  }
  func.func @transform_0(%arg0: i32) -> (i32, i32) {
    %c0_i32 = arith.constant 0 : i32
    %c0_i32_0 = arith.constant 0 : i32
    return %c0_i32, %arg0 : i32, i32
  }
  func.func @transform_1(%arg0: i32) -> (i32, i32) {
    %c0_i32 = arith.constant 0 : i32
    %c0_i32_0 = arith.constant 0 : i32
    %c0_i32_1 = arith.constant 0 : i32
    return %c0_i32, %c0_i32_0 : i32, i32
  }
  func.func @transform_2(%arg0: i32) -> (i32, i32, i32) {
    %c0_i32 = arith.constant 0 : i32
    %c0_i32_0 = arith.constant 0 : i32
    %c0_i32_1 = arith.constant 0 : i32
    %c0_i32_2 = arith.constant 0 : i32
    return %c0_i32, %c0_i32_0, %c0_i32_1 : i32, i32, i32
  }
  func.func @transform_3(%arg0: i32) -> (i32, i32) {
    %c0_i32 = arith.constant 0 : i32
    %c0_i32_0 = arith.constant 0 : i32
    %c0_i32_1 = arith.constant 0 : i32
    return %c0_i32, %c0_i32_0 : i32, i32
  }
  func.func @transform_4(%arg0: i32) -> (i32, i32) {
    %c0_i32 = arith.constant 0 : i32
    %c0_i32_0 = arith.constant 0 : i32
    %c0_i32_1 = arith.constant 0 : i32
    return %c0_i32, %c0_i32_0 : i32, i32
  }
  func.func @transform_5(%arg0: i32) -> (i32, i32) {
    %c0_i32 = arith.constant 0 : i32
    %c0_i32_0 = arith.constant 0 : i32
    return %c0_i32, %arg0 : i32, i32
  }
}

</mosaic_0001>

<llo_original>
// kernel: mlp_bc_forward.1
$region0: #{mlp_bc_forward.1}
  #allocation0 [shape = 'u32[]', space=smem, size = 0x4, offset = 0x4, fixed_abs, tag = 'smem constant byte address 0x4 - core index']
  #allocation1 [shape = 'u32[72,128]{1,0:T(1,128)}', space=vmem, size = 0x9000, scoped, tag = 'internal scratch']
  %s0 = inlined_call_operand.vmem [shape: bf16[256,128], index: 0, kind: input, shape index: {}]
  %s1 = inlined_call_operand.vmem [shape: bf16[256,256], index: 1, kind: input, shape index: {}]
  %s2 = inlined_call_operand.hbm [shape: bf16[7,256,256], index: 2, kind: input, shape index: {}]
  %s3 = inlined_call_operand.vmem [shape: bf16[8,256], index: 3, kind: input, shape index: {}]
  %s4 = inlined_call_operand.hbm [shape: f32[256,128], index: 4, kind: input, shape index: {}]
  %s5 = inlined_call_operand.vmem [shape: f32[8,128], index: 5, kind: output, shape index: {}]
  %s6 = sld [smem:[#allocation0]]
  $region38: #{mlp_bc_forward.1} parent=0
    _
  %s8 = ssub.s32 1, %s6
  %s9 = scalar_select 0, %s8, %s6
  $region1: #{mlp_bc_forward.1} parent=0
    #allocation2 [shape = 'u8[917504]{0}', space=vmem, size = 0xe0000, scoped, tag = 'input window, operand 2, single buffered']
    #allocation3 [shape = 's32[1]{0}', space=sflag, size = 0x4, scoped, tag = 'scoped memory for mlp_bc_forward.1']
    #allocation4 [shape = 'u8[131072]{0}', space=vmem, size = 0x20000, scoped, tag = 'input window, operand 4, single buffered']
    #allocation5 [shape = 's32[1]{0}', space=sflag, size = 0x4, scoped, tag = 'scoped memory for mlp_bc_forward.1']
    %10 = vsyncpa [#allocation3], 0
    %11 = vsyncpa [#allocation5], 0
    // Predicated region
    $region2: #{mlp_bc_forward.1} parent=1 // pred_check
      _
    $region3: #{mlp_bc_forward.1} parent=1 // pred_check_branch
      %13 = sbr.rel (0) target = $region5
    $region4: #{mlp_bc_forward.1} parent=1 // pred_region
      _
    $region5: #{mlp_bc_forward.1} parent=1 // pred_fallthru
      _
    // Predicated region
    $region6: #{mlp_bc_forward.1} parent=1 // pred_check
      _
    $region7: #{mlp_bc_forward.1} parent=1 // pred_check_branch
      %15 = sbr.rel (0) target = $region9
    $region8: #{mlp_bc_forward.1} parent=1 // pred_region
      _
    $region9: #{mlp_bc_forward.1} parent=1 // pred_fallthru
      _
    // Predicated region
    $region10: #{mlp_bc_forward.1} parent=1 // pred_check
      _
    $region11: #{mlp_bc_forward.1} parent=1 // pred_check_branch
      %17 = sbr.rel (0) target = $region13
    $region12: #{mlp_bc_forward.1} parent=1 // pred_region
      %19 = vsyncadd [#allocation3], 0
      %s20 = sshll.u32 %s2, 4
      %s21 = int_to_ptr.hbm [resolvable:$true] %s20
      %s22 = sshll.u32 [#allocation2], 4
      %s23 = int_to_ptr.vmem [resolvable:$true] %s22
      %28 = dma.hbm_to_vmem [thread:$0]  %s21, 28672, %s23, [#allocation3], 128, 128, 8
    $region13: #{mlp_bc_forward.1} parent=1 // pred_fallthru
      _
    // Predicated region
    $region14: #{mlp_bc_forward.1} parent=1 // pred_check
      _
    $region15: #{mlp_bc_forward.1} parent=1 // pred_check_branch
      %30 = sbr.rel (0) target = $region17
    $region16: #{mlp_bc_forward.1} parent=1 // pred_region
      _
    $region17: #{mlp_bc_forward.1} parent=1 // pred_fallthru
      _
    // Predicated region
    $region18: #{mlp_bc_forward.1} parent=1 // pred_check
      _
    $region19: #{mlp_bc_forward.1} parent=1 // pred_check_branch
      %32 = sbr.rel (0) target = $region21
    $region20: #{mlp_bc_forward.1} parent=1 // pred_region
      %34 = vsyncadd [#allocation5], 0
      %s35 = sshll.u32 %s4, 4
      %s36 = int_to_ptr.hbm [resolvable:$true] %s35
      %s37 = sshll.u32 [#allocation4], 4
      %s38 = int_to_ptr.vmem [resolvable:$true] %s37
      %43 = dma.hbm_to_vmem [thread:$0]  %s36, 4096, %s38, [#allocation5], 128, 128, 8
    $region21: #{mlp_bc_forward.1} parent=1 // pred_fallthru
      _
    // Predicated region
    $region22: #{mlp_bc_forward.1} parent=1 // pred_check
      _
    $region23: #{mlp_bc_forward.1} parent=1 // pred_check_branch
      %45 = sbr.rel (0) target = $region25
    $region24: #{mlp_bc_forward.1} parent=1 // pred_region
      %47 = dma.done [#allocation3], 28672
    $region25: #{mlp_bc_forward.1} parent=1 // pred_fallthru
      _
    // Predicated region
    $region26: #{mlp_bc_forward.1} parent=1 // pred_check
      _
    $region27: #{mlp_bc_forward.1} parent=1 // pred_check_branch
      %49 = sbr.rel (0) target = $region29
    $region28: #{mlp_bc_forward.1} parent=1 // pred_region
      %51 = dma.done [#allocation5], 4096
    $region29: #{mlp_bc_forward.1} parent=1 // pred_fallthru
      _
    %v52 = vld [vmem:[%s1] sm:$0xff]
    %v53 = vld [vmem:[%s1 + $0x8] sm:$0xff]
    %v54 = vld [vmem:[%s1 + $0x10] sm:$0xff]
    %v55 = vld [vmem:[%s1 + $0x18] sm:$0xff]
    %v56 = vld [vmem:[%s1 + $0x20] sm:$0xff]
    %v57 = vld [vmem:[%s1 + $0x28] sm:$0xff]
    %v58 = vld [vmem:[%s1 + $0x30] sm:$0xff]
    %v59 = vld [vmem:[%s1 + $0x38] sm:$0xff]
    %v60 = vld [vmem:[%s1 + $0x40] sm:$0xff]
    %v61 = vld [vmem:[%s1 + $0x48] sm:$0xff]
    %v62 = vld [vmem:[%s1 + $0x50] sm:$0xff]
    %v63 = vld [vmem:[%s1 + $0x58] sm:$0xff]
    %v64 = vld [vmem:[%s1 + $0x60] sm:$0xff]
    %v65 = vld [vmem:[%s1 + $0x68] sm:$0xff]
    %v66 = vld [vmem:[%s1 + $0x70] sm:$0xff]
    %v67 = vld [vmem:[%s1 + $0x78] sm:$0xff]
    %v68 = vld [vmem:[%s1 + $0x80] sm:$0xff]
    %v69 = vld [vmem:[%s1 + $0x88] sm:$0xff]
    %v70 = vld [vmem:[%s1 + $0x90] sm:$0xff]
    %v71 = vld [vmem:[%s1 + $0x98] sm:$0xff]
    %v72 = vld [vmem:[%s1 + $0xa0] sm:$0xff]
    %v73 = vld [vmem:[%s1 + $0xa8] sm:$0xff]
    %v74 = vld [vmem:[%s1 + $0xb0] sm:$0xff]
    %v75 = vld [vmem:[%s1 + $0xb8] sm:$0xff]
    %v76 = vld [vmem:[%s1 + $0xc0] sm:$0xff]
    %v77 = vld [vmem:[%s1 + $0xc8] sm:$0xff]
    %v78 = vld [vmem:[%s1 + $0xd0] sm:$0xff]
    %v79 = vld [vmem:[%s1 + $0xd8] sm:$0xff]
    %v80 = vld [vmem:[%s1 + $0xe0] sm:$0xff]
    %v81 = vld [vmem:[%s1 + $0xe8] sm:$0xff]
    %v82 = vld [vmem:[%s1 + $0xf0] sm:$0xff]
    %v83 = vld [vmem:[%s1 + $0xf8] sm:$0xff]
    %v84 = vld [vmem:[%s0] sm:$0xf]
    %v85 = vld [vmem:[%s0 + $0x4] sm:$0xf]
    %v86 = vld [vmem:[%s0 + $0x8] sm:$0xf]
    %v87 = vld [vmem:[%s0 + $0xc] sm:$0xf]
    %v88 = vld [vmem:[%s0 + $0x10] sm:$0xf]
    %v89 = vld [vmem:[%s0 + $0x14] sm:$0xf]
    %v90 = vld [vmem:[%s0 + $0x18] sm:$0xf]
    %v91 = vld [vmem:[%s0 + $0x1c] sm:$0xf]
    %v92 = vld [vmem:[%s0 + $0x20] sm:$0xf]
    %v93 = vld [vmem:[%s0 + $0x24] sm:$0xf]
    %v94 = vld [vmem:[%s0 + $0x28] sm:$0xf]
    %v95 = vld [vmem:[%s0 + $0x2c] sm:$0xf]
    %v96 = vld [vmem:[%s0 + $0x30] sm:$0xf]
    %v97 = vld [vmem:[%s0 + $0x34] sm:$0xf]
    %v98 = vld [vmem:[%s0 + $0x38] sm:$0xf]
    %v99 = vld [vmem:[%s0 + $0x3c] sm:$0xf]
    %v100 = vld [vmem:[%s0 + $0x40] sm:$0xf]
    %v101 = vld [vmem:[%s0 + $0x44] sm:$0xf]
    %v102 = vld [vmem:[%s0 + $0x48] sm:$0xf]
    %v103 = vld [vmem:[%s0 + $0x4c] sm:$0xf]
    %v104 = vld [vmem:[%s0 + $0x50] sm:$0xf]
    %v105 = vld [vmem:[%s0 + $0x54] sm:$0xf]
    %v106 = vld [vmem:[%s0 + $0x58] sm:$0xf]
    %v107 = vld [vmem:[%s0 + $0x5c] sm:$0xf]
    %v108 = vld [vmem:[%s0 + $0x60] sm:$0xf]
    %v109 = vld [vmem:[%s0 + $0x64] sm:$0xf]
    %v110 = vld [vmem:[%s0 + $0x68] sm:$0xf]
    %v111 = vld [vmem:[%s0 + $0x6c] sm:$0xf]
    %v112 = vld [vmem:[%s0 + $0x70] sm:$0xf]
    %v113 = vld [vmem:[%s0 + $0x74] sm:$0xf]
    %v114 = vld [vmem:[%s0 + $0x78] sm:$0xf]
    %v115 = vld [vmem:[%s0 + $0x7c] sm:$0xf]
    %v116 = vld [vmem:[#allocation4] sm:$0xff]
    %v117 = vld [vmem:[#allocation4 + $0x8] sm:$0xff]
    %v118 = vld [vmem:[#allocation4 + $0x10] sm:$0xff]
    %v119 = vld [vmem:[#allocation4 + $0x18] sm:$0xff]
    %v120 = vld [vmem:[#allocation4 + $0x20] sm:$0xff]
    %v121 = vld [vmem:[#allocation4 + $0x28] sm:$0xff]
    %v122 = vld [vmem:[#allocation4 + $0x30] sm:$0xff]
    %v123 = vld [vmem:[#allocation4 + $0x38] sm:$0xff]
    %v124 = vld [vmem:[#allocation4 + $0x40] sm:$0xff]
    %v125 = vld [vmem:[#allocation4 + $0x48] sm:$0xff]
    %v126 = vld [vmem:[#allocation4 + $0x50] sm:$0xff]
    %v127 = vld [vmem:[#allocation4 + $0x58] sm:$0xff]
    %v128 = vld [vmem:[#allocation4 + $0x60] sm:$0xff]
    %v129 = vld [vmem:[#allocation4 + $0x68] sm:$0xff]
    %v130 = vld [vmem:[#allocation4 + $0x70] sm:$0xff]
    %v131 = vld [vmem:[#allocation4 + $0x78] sm:$0xff]
    %v132 = vld [vmem:[#allocation4 + $0x80] sm:$0xff]
    %v133 = vld [vmem:[#allocation4 + $0x88] sm:$0xff]
    %v134 = vld [vmem:[#allocation4 + $0x90] sm:$0xff]
    %v135 = vld [vmem:[#allocation4 + $0x98] sm:$0xff]
    %v136 = vld [vmem:[#allocation4 + $0xa0] sm:$0xff]
    %v137 = vld [vmem:[#allocation4 + $0xa8] sm:$0xff]
    %v138 = vld [vmem:[#allocation4 + $0xb0] sm:$0xff]
    %v139 = vld [vmem:[#allocation4 + $0xb8] sm:$0xff]
    %v140 = vld [vmem:[#allocation4 + $0xc0] sm:$0xff]
    %v141 = vld [vmem:[#allocation4 + $0xc8] sm:$0xff]
    %v142 = vld [vmem:[#allocation4 + $0xd0] sm:$0xff]
    %v143 = vld [vmem:[#allocation4 + $0xd8] sm:$0xff]
    %v144 = vld [vmem:[#allocation4 + $0xe0] sm:$0xff]
    %v145 = vld [vmem:[#allocation4 + $0xe8] sm:$0xff]
    %v146 = vld [vmem:[#allocation4 + $0xf0] sm:$0xff]
    %v147 = vld [vmem:[#allocation4 + $0xf8] sm:$0xff]
    %149 = vset.pattern.permute.xlu0 0
    %150 = vperm.xlu0 %149, %v116
    %v151 = vpop.permute.xlu0 %150
    %154 = vset.pattern.permute.xlu0 0
    %155 = vperm.xlu0 %154, %v117
    %v156 = vpop.permute.xlu0 %155
    %159 = vset.pattern.permute.xlu0 0
    %160 = vperm.xlu0 %159, %v118
    %v161 = vpop.permute.xlu0 %160
    %164 = vset.pattern.permute.xlu0 0
    %165 = vperm.xlu0 %164, %v119
    %v166 = vpop.permute.xlu0 %165
    %169 = vset.pattern.permute.xlu0 0
    %170 = vperm.xlu0 %169, %v120
    %v171 = vpop.permute.xlu0 %170
    %174 = vset.pattern.permute.xlu0 0
    %175 = vperm.xlu0 %174, %v121
    %v176 = vpop.permute.xlu0 %175
    %179 = vset.pattern.permute.xlu0 0
    %180 = vperm.xlu0 %179, %v122
    %v181 = vpop.permute.xlu0 %180
    %184 = vset.pattern.permute.xlu0 0
    %185 = vperm.xlu0 %184, %v123
    %v186 = vpop.permute.xlu0 %185
    %189 = vset.pattern.permute.xlu0 0
    %190 = vperm.xlu0 %189, %v124
    %v191 = vpop.permute.xlu0 %190
    %194 = vset.pattern.permute.xlu0 0
    %195 = vperm.xlu0 %194, %v125
    %v196 = vpop.permute.xlu0 %195
    %199 = vset.pattern.permute.xlu0 0
    %200 = vperm.xlu0 %199, %v126
    %v201 = vpop.permute.xlu0 %200
    %204 = vset.pattern.permute.xlu0 0
    %205 = vperm.xlu0 %204, %v127
    %v206 = vpop.permute.xlu0 %205
    %209 = vset.pattern.permute.xlu0 0
    %210 = vperm.xlu0 %209, %v128
    %v211 = vpop.permute.xlu0 %210
    %214 = vset.pattern.permute.xlu0 0
    %215 = vperm.xlu0 %214, %v129
    %v216 = vpop.permute.xlu0 %215
    %219 = vset.pattern.permute.xlu0 0
    %220 = vperm.xlu0 %219, %v130
    %v221 = vpop.permute.xlu0 %220
    %224 = vset.pattern.permute.xlu0 0
    %225 = vperm.xlu0 %224, %v131
    %v226 = vpop.permute.xlu0 %225
    %229 = vset.pattern.permute.xlu0 0
    %230 = vperm.xlu0 %229, %v132
    %v231 = vpop.permute.xlu0 %230
    %234 = vset.pattern.permute.xlu0 0
    %235 = vperm.xlu0 %234, %v133
    %v236 = vpop.permute.xlu0 %235
    %239 = vset.pattern.permute.xlu0 0
    %240 = vperm.xlu0 %239, %v134
    %v241 = vpop.permute.xlu0 %240
    %244 = vset.pattern.permute.xlu0 0
    %245 = vperm.xlu0 %244, %v135
    %v246 = vpop.permute.xlu0 %245
    %249 = vset.pattern.permute.xlu0 0
    %250 = vperm.xlu0 %249, %v136
    %v251 = vpop.permute.xlu0 %250
    %254 = vset.pattern.permute.xlu0 0
    %255 = vperm.xlu0 %254, %v137
    %v256 = vpop.permute.xlu0 %255
    %259 = vset.pattern.permute.xlu0 0
    %260 = vperm.xlu0 %259, %v138
    %v261 = vpop.permute.xlu0 %260
    %264 = vset.pattern.permute.xlu0 0
    %265 = vperm.xlu0 %264, %v139
    %v266 = vpop.permute.xlu0 %265
    %269 = vset.pattern.permute.xlu0 0
    %270 = vperm.xlu0 %269, %v140
    %v271 = vpop.permute.xlu0 %270
    %274 = vset.pattern.permute.xlu0 0
    %275 = vperm.xlu0 %274, %v141
    %v276 = vpop.permute.xlu0 %275
    %279 = vset.pattern.permute.xlu0 0
    %280 = vperm.xlu0 %279, %v142
    %v281 = vpop.permute.xlu0 %280
    %284 = vset.pattern.permute.xlu0 0
    %285 = vperm.xlu0 %284, %v143
    %v286 = vpop.permute.xlu0 %285
    %289 = vset.pattern.permute.xlu0 0
    %290 = vperm.xlu0 %289, %v144
    %v291 = vpop.permute.xlu0 %290
    %294 = vset.pattern.permute.xlu0 0
    %295 = vperm.xlu0 %294, %v145
    %v296 = vpop.permute.xlu0 %295
    %299 = vset.pattern.permute.xlu0 0
    %300 = vperm.xlu0 %299, %v146
    %v301 = vpop.permute.xlu0 %300
    %304 = vset.pattern.permute.xlu0 0
    %305 = vperm.xlu0 %304, %v147
    %v306 = vpop.permute.xlu0 %305
    %v340 = vunpack.c.l.b16 %v52
    %v341 = vunpack.c.h.b16 %v52
    %v342 = vunpack.c.l.b16 %v53
    %v343 = vunpack.c.h.b16 %v53
    %v344 = vunpack.c.l.b16 %v54
    %v345 = vunpack.c.h.b16 %v54
    %v346 = vunpack.c.l.b16 %v55
    %v347 = vunpack.c.h.b16 %v55
    %v348 = vunpack.c.l.b16 %v56
    %v349 = vunpack.c.h.b16 %v56
    %v350 = vunpack.c.l.b16 %v57
    %v351 = vunpack.c.h.b16 %v57
    %v352 = vunpack.c.l.b16 %v58
    %v353 = vunpack.c.h.b16 %v58
    %v354 = vunpack.c.l.b16 %v59
    %v355 = vunpack.c.h.b16 %v59
    %v356 = vunpack.c.l.b16 %v60
    %v357 = vunpack.c.h.b16 %v60
    %v358 = vunpack.c.l.b16 %v61
    %v359 = vunpack.c.h.b16 %v61
    %v360 = vunpack.c.l.b16 %v62
    %v361 = vunpack.c.h.b16 %v62
    %v362 = vunpack.c.l.b16 %v63
    %v363 = vunpack.c.h.b16 %v63
    %v364 = vunpack.c.l.b16 %v64
    %v365 = vunpack.c.h.b16 %v64
    %v366 = vunpack.c.l.b16 %v65
    %v367 = vunpack.c.h.b16 %v65
    %v368 = vunpack.c.l.b16 %v66
    %v369 = vunpack.c.h.b16 %v66
    %v370 = vunpack.c.l.b16 %v67
    %v371 = vunpack.c.h.b16 %v67
    %v372 = vunpack.c.l.b16 %v68
    %v373 = vunpack.c.h.b16 %v68
    %v374 = vunpack.c.l.b16 %v69
    %v375 = vunpack.c.h.b16 %v69
    %v376 = vunpack.c.l.b16 %v70
    %v377 = vunpack.c.h.b16 %v70
    %v378 = vunpack.c.l.b16 %v71
    %v379 = vunpack.c.h.b16 %v71
    %v380 = vunpack.c.l.b16 %v72
    %v381 = vunpack.c.h.b16 %v72
    %v382 = vunpack.c.l.b16 %v73
    %v383 = vunpack.c.h.b16 %v73
    %v384 = vunpack.c.l.b16 %v74
    %v385 = vunpack.c.h.b16 %v74
    %v386 = vunpack.c.l.b16 %v75
    %v387 = vunpack.c.h.b16 %v75
    %v388 = vunpack.c.l.b16 %v76
    %v389 = vunpack.c.h.b16 %v76
    %v390 = vunpack.c.l.b16 %v77
    %v391 = vunpack.c.h.b16 %v77
    %v392 = vunpack.c.l.b16 %v78
    %v393 = vunpack.c.h.b16 %v78
    %v394 = vunpack.c.l.b16 %v79
    %v395 = vunpack.c.h.b16 %v79
    %v396 = vunpack.c.l.b16 %v80
    %v397 = vunpack.c.h.b16 %v80
    %v398 = vunpack.c.l.b16 %v81
    %v399 = vunpack.c.h.b16 %v81
    %v400 = vunpack.c.l.b16 %v82
    %v401 = vunpack.c.h.b16 %v82
    %v402 = vunpack.c.l.b16 %v83
    %v403 = vunpack.c.h.b16 %v83
    %v404 = vpack.c.b16 %v342, %v340
    %v405 = vpack.c.b16 %v343, %v341
    %v406 = vpack.c.b16 %v346, %v344
    %v407 = vpack.c.b16 %v347, %v345
    %v408 = vpack.c.b16 %v350, %v348
    %v409 = vpack.c.b16 %v351, %v349
    %v410 = vpack.c.b16 %v354, %v352
    %v411 = vpack.c.b16 %v355, %v353
    %v412 = vpack.c.b16 %v358, %v356
    %v413 = vpack.c.b16 %v359, %v357
    %v414 = vpack.c.b16 %v362, %v360
    %v415 = vpack.c.b16 %v363, %v361
    %v416 = vpack.c.b16 %v366, %v364
    %v417 = vpack.c.b16 %v367, %v365
    %v418 = vpack.c.b16 %v370, %v368
    %v419 = vpack.c.b16 %v371, %v369
    %v420 = vpack.c.b16 %v374, %v372
    %v421 = vpack.c.b16 %v375, %v373
    %v422 = vpack.c.b16 %v378, %v376
    %v423 = vpack.c.b16 %v379, %v377
    %v424 = vpack.c.b16 %v382, %v380
    %v425 = vpack.c.b16 %v383, %v381
    %v426 = vpack.c.b16 %v386, %v384
    %v427 = vpack.c.b16 %v387, %v385
    %v428 = vpack.c.b16 %v390, %v388
    %v429 = vpack.c.b16 %v391, %v389
    %v430 = vpack.c.b16 %v394, %v392
    %v431 = vpack.c.b16 %v395, %v393
    %v432 = vpack.c.b16 %v398, %v396
    %v433 = vpack.c.b16 %v399, %v397
    %v434 = vpack.c.b16 %v402, %v400
    %v435 = vpack.c.b16 %v403, %v401
    %v500 = vunpack.c.l.b16 %v84
    %v501 = vunpack.c.l.b16 %v85
    %v502 = vunpack.c.l.b16 %v86
    %v503 = vunpack.c.l.b16 %v87
    %v504 = vunpack.c.l.b16 %v88
    %v505 = vunpack.c.l.b16 %v89
    %v506 = vunpack.c.l.b16 %v90
    %v507 = vunpack.c.l.b16 %v91
    %v508 = vunpack.c.l.b16 %v92
    %v509 = vunpack.c.l.b16 %v93
    %v510 = vunpack.c.l.b16 %v94
    %v511 = vunpack.c.l.b16 %v95
    %v512 = vunpack.c.l.b16 %v96
    %v513 = vunpack.c.l.b16 %v97
    %v514 = vunpack.c.l.b16 %v98
    %v515 = vunpack.c.l.b16 %v99
    %v516 = vunpack.c.l.b16 %v100
    %v517 = vunpack.c.l.b16 %v101
    %v518 = vunpack.c.l.b16 %v102
    %v519 = vunpack.c.l.b16 %v103
    %v520 = vunpack.c.l.b16 %v104
    %v521 = vunpack.c.l.b16 %v105
    %v522 = vunpack.c.l.b16 %v106
    %v523 = vunpack.c.l.b16 %v107
    %v524 = vunpack.c.l.b16 %v108
    %v525 = vunpack.c.l.b16 %v109
    %v526 = vunpack.c.l.b16 %v110
    %v527 = vunpack.c.l.b16 %v111
    %v528 = vunpack.c.l.b16 %v112
    %v529 = vunpack.c.l.b16 %v113
    %v530 = vunpack.c.l.b16 %v114
    %v531 = vunpack.c.l.b16 %v115
    %v532 = vpack.c.b16 %v501, %v500
    %v533 = vpack.c.b16 %v503, %v502
    %v534 = vpack.c.b16 %v505, %v504
    %v535 = vpack.c.b16 %v507, %v506
    %v536 = vpack.c.b16 %v509, %v508
    %v537 = vpack.c.b16 %v511, %v510
    %v538 = vpack.c.b16 %v513, %v512
    %v539 = vpack.c.b16 %v515, %v514
    %v540 = vpack.c.b16 %v517, %v516
    %v541 = vpack.c.b16 %v519, %v518
    %v542 = vpack.c.b16 %v521, %v520
    %v543 = vpack.c.b16 %v523, %v522
    %v544 = vpack.c.b16 %v525, %v524
    %v545 = vpack.c.b16 %v527, %v526
    %v546 = vpack.c.b16 %v529, %v528
    %v547 = vpack.c.b16 %v531, %v530
    %564 = vmatpush.bf16.msra.mxu0 %v539
    %565 = vmatpush.bf16.msra.mxu0 %v538
    %566 = vmatpush.bf16.msra.mxu0 %v537
    %567 = vmatpush.bf16.msra.mxu0 %v536
    %568 = vmatpush.bf16.msra.mxu0 %v535
    %569 = vmatpush.bf16.msra.mxu0 %v534
    %570 = vmatpush.bf16.msra.mxu0 %v533
    %571 = vmatpush.bf16.msra.mxu0 %v532
    %572 = vmatmul.bf16.gmra.mxu0 %v404
    %v573 = vpop.f32.mrf.mxu0
    %v574 = vadd.f32 %v151, %v573
    %v575 = vpop.f32.mrf.mxu0
    %v576 = vadd.f32 %v156, %v575
    %577 = vmatmul.bf16.gmra.mxu0 %v406
    %v578 = vpop.f32.mrf.mxu0
    %v579 = vadd.f32 %v161, %v578
    %v580 = vpop.f32.mrf.mxu0
    %v581 = vadd.f32 %v166, %v580
    %582 = vmatmul.bf16.gmra.mxu0 %v408
    %v583 = vpop.f32.mrf.mxu0
    %v584 = vadd.f32 %v171, %v583
    %v585 = vpop.f32.mrf.mxu0
    %v586 = vadd.f32 %v176, %v585
    %587 = vmatmul.bf16.gmra.mxu0 %v410
    %v588 = vpop.f32.mrf.mxu0
    %v589 = vadd.f32 %v181, %v588
    %v590 = vpop.f32.mrf.mxu0
    %v591 = vadd.f32 %v186, %v590
    %592 = vmatmul.bf16.gmra.mxu0 %v412
    %v593 = vpop.f32.mrf.mxu0
    %v594 = vadd.f32 %v191, %v593
    %v595 = vpop.f32.mrf.mxu0
    %v596 = vadd.f32 %v196, %v595
    %597 = vmatmul.bf16.gmra.mxu0 %v414
    %v598 = vpop.f32.mrf.mxu0
    %v599 = vadd.f32 %v201, %v598
    %v600 = vpop.f32.mrf.mxu0
    %v601 = vadd.f32 %v206, %v600
    %602 = vmatmul.bf16.gmra.mxu0 %v416
    %v603 = vpop.f32.mrf.mxu0
    %v604 = vadd.f32 %v211, %v603
    %v605 = vpop.f32.mrf.mxu0
    %v606 = vadd.f32 %v216, %v605
    %607 = vmatmul.bf16.gmra.mxu0 %v418
    %v608 = vpop.f32.mrf.mxu0
    %v609 = vadd.f32 %v221, %v608
    %v610 = vpop.f32.mrf.mxu0
    %v611 = vadd.f32 %v226, %v610
    %612 = vmatmul.bf16.gmra.mxu0 %v420
    %v613 = vpop.f32.mrf.mxu0
    %v614 = vadd.f32 %v231, %v613
    %v615 = vpop.f32.mrf.mxu0
    %v616 = vadd.f32 %v236, %v615
    %617 = vmatmul.bf16.gmra.mxu0 %v422
    %v618 = vpop.f32.mrf.mxu0
    %v619 = vadd.f32 %v241, %v618
    %v620 = vpop.f32.mrf.mxu0
    %v621 = vadd.f32 %v246, %v620
    %622 = vmatmul.bf16.gmra.mxu0 %v424
    %v623 = vpop.f32.mrf.mxu0
    %v624 = vadd.f32 %v251, %v623
    %v625 = vpop.f32.mrf.mxu0
    %v626 = vadd.f32 %v256, %v625
    %627 = vmatmul.bf16.gmra.mxu0 %v426
    %v628 = vpop.f32.mrf.mxu0
    %v629 = vadd.f32 %v261, %v628
    %v630 = vpop.f32.mrf.mxu0
    %v631 = vadd.f32 %v266, %v630
    %632 = vmatmul.bf16.gmra.mxu0 %v428
    %v633 = vpop.f32.mrf.mxu0
    %v634 = vadd.f32 %v271, %v633
    %v635 = vpop.f32.mrf.mxu0
    %v636 = vadd.f32 %v276, %v635
    %637 = vmatmul.bf16.gmra.mxu0 %v430
    %v638 = vpop.f32.mrf.mxu0
    %v639 = vadd.f32 %v281, %v638
    %v640 = vpop.f32.mrf.mxu0
    %v641 = vadd.f32 %v286, %v640
    %642 = vmatmul.bf16.gmra.mxu0 %v432
    %v643 = vpop.f32.mrf.mxu0
    %v644 = vadd.f32 %v291, %v643
    %v645 = vpop.f32.mrf.mxu0
    %v646 = vadd.f32 %v296, %v645
    %647 = vmatmul.bf16.gmra.mxu0 %v434
    %v648 = vpop.f32.mrf.mxu0
    %v649 = vadd.f32 %v301, %v648
    %v650 = vpop.f32.mrf.mxu0
    %v651 = vadd.f32 %v306, %v650
    %652 = vdwg.mxu0
    %653 = vmatpush.bf16.msra.mxu0 %v547
    %654 = vmatpush.bf16.msra.mxu0 %v546
    %655 = vmatpush.bf16.msra.mxu0 %v545
    %656 = vmatpush.bf16.msra.mxu0 %v544
    %657 = vmatpush.bf16.msra.mxu0 %v543
    %658 = vmatpush.bf16.msra.mxu0 %v542
    %659 = vmatpush.bf16.msra.mxu0 %v541
    %660 = vmatpush.bf16.msra.mxu0 %v540
    %661 = vmatmul.bf16.gmra.mxu0 %v405
    %v662 = vpop.f32.mrf.mxu0
    %v663 = vadd.f32 %v574, %v662
    %v664 = vpop.f32.mrf.mxu0
    %v665 = vadd.f32 %v576, %v664
    %666 = vmatmul.bf16.gmra.mxu0 %v407
    %v667 = vpop.f32.mrf.mxu0
    %v668 = vadd.f32 %v579, %v667
    %v669 = vpop.f32.mrf.mxu0
    %v670 = vadd.f32 %v581, %v669
    %671 = vmatmul.bf16.gmra.mxu0 %v409
    %v672 = vpop.f32.mrf.mxu0
    %v673 = vadd.f32 %v584, %v672
    %v674 = vpop.f32.mrf.mxu0
    %v675 = vadd.f32 %v586, %v674
    %676 = vmatmul.bf16.gmra.mxu0 %v411
    %v677 = vpop.f32.mrf.mxu0
    %v678 = vadd.f32 %v589, %v677
    %v679 = vpop.f32.mrf.mxu0
    %v680 = vadd.f32 %v591, %v679
    %681 = vmatmul.bf16.gmra.mxu0 %v413
    %v682 = vpop.f32.mrf.mxu0
    %v683 = vadd.f32 %v594, %v682
    %v684 = vpop.f32.mrf.mxu0
    %v685 = vadd.f32 %v596, %v684
    %686 = vmatmul.bf16.gmra.mxu0 %v415
    %v687 = vpop.f32.mrf.mxu0
    %v688 = vadd.f32 %v599, %v687
    %v689 = vpop.f32.mrf.mxu0
    %v690 = vadd.f32 %v601, %v689
    %691 = vmatmul.bf16.gmra.mxu0 %v417
    %v692 = vpop.f32.mrf.mxu0
    %v693 = vadd.f32 %v604, %v692
    %v694 = vpop.f32.mrf.mxu0
    %v695 = vadd.f32 %v606, %v694
    %696 = vmatmul.bf16.gmra.mxu0 %v419
    %v697 = vpop.f32.mrf.mxu0
    %v698 = vadd.f32 %v609, %v697
    %v699 = vpop.f32.mrf.mxu0
    %v700 = vadd.f32 %v611, %v699
    %701 = vmatmul.bf16.gmra.mxu0 %v421
    %v702 = vpop.f32.mrf.mxu0
    %v703 = vadd.f32 %v614, %v702
    %v704 = vpop.f32.mrf.mxu0
    %v705 = vadd.f32 %v616, %v704
    %706 = vmatmul.bf16.gmra.mxu0 %v423
    %v707 = vpop.f32.mrf.mxu0
    %v708 = vadd.f32 %v619, %v707
    %v709 = vpop.f32.mrf.mxu0
    %v710 = vadd.f32 %v621, %v709
    %711 = vmatmul.bf16.gmra.mxu0 %v425
    %v712 = vpop.f32.mrf.mxu0
    %v713 = vadd.f32 %v624, %v712
    %v714 = vpop.f32.mrf.mxu0
    %v715 = vadd.f32 %v626, %v714
    %716 = vmatmul.bf16.gmra.mxu0 %v427
    %v717 = vpop.f32.mrf.mxu0
    %v718 = vadd.f32 %v629, %v717
    %v719 = vpop.f32.mrf.mxu0
    %v720 = vadd.f32 %v631, %v719
    %721 = vmatmul.bf16.gmra.mxu0 %v429
    %v722 = vpop.f32.mrf.mxu0
    %v723 = vadd.f32 %v634, %v722
    %v724 = vpop.f32.mrf.mxu0
    %v725 = vadd.f32 %v636, %v724
    %726 = vmatmul.bf16.gmra.mxu0 %v431
    %v727 = vpop.f32.mrf.mxu0
    %v728 = vadd.f32 %v639, %v727
    %v729 = vpop.f32.mrf.mxu0
    %v730 = vadd.f32 %v641, %v729
    %731 = vmatmul.bf16.gmra.mxu0 %v433
    %v732 = vpop.f32.mrf.mxu0
    %v733 = vadd.f32 %v644, %v732
    %v734 = vpop.f32.mrf.mxu0
    %v735 = vadd.f32 %v646, %v734
    %736 = vmatmul.bf16.gmra.mxu0 %v435
    %v737 = vpop.f32.mrf.mxu0
    %v738 = vadd.f32 %v649, %v737
    %v739 = vpop.f32.mrf.mxu0
    %v740 = vadd.f32 %v651, %v739
    %741 = vdwg.mxu0
    %v742 = vmax.f32 %v663, 0.0
    %v743 = vmax.f32 %v665, 0.0
    %v744 = vmax.f32 %v668, 0.0
    %v745 = vmax.f32 %v670, 0.0
    %v746 = vmax.f32 %v673, 0.0
    %v747 = vmax.f32 %v675, 0.0
    %v748 = vmax.f32 %v678, 0.0
    %v749 = vmax.f32 %v680, 0.0
    %v750 = vmax.f32 %v683, 0.0
    %v751 = vmax.f32 %v685, 0.0
    %v752 = vmax.f32 %v688, 0.0
    %v753 = vmax.f32 %v690, 0.0
    %v754 = vmax.f32 %v693, 0.0
    %v755 = vmax.f32 %v695, 0.0
    %v756 = vmax.f32 %v698, 0.0
    %v757 = vmax.f32 %v700, 0.0
    %v758 = vmax.f32 %v703, 0.0
    %v759 = vmax.f32 %v705, 0.0
    %v760 = vmax.f32 %v708, 0.0
    %v761 = vmax.f32 %v710, 0.0
    %v762 = vmax.f32 %v713, 0.0
    %v763 = vmax.f32 %v715, 0.0
    %v764 = vmax.f32 %v718, 0.0
    %v765 = vmax.f32 %v720, 0.0
    %v766 = vmax.f32 %v723, 0.0
    %v767 = vmax.f32 %v725, 0.0
    %v768 = vmax.f32 %v728, 0.0
    %v769 = vmax.f32 %v730, 0.0
    %v770 = vmax.f32 %v733, 0.0
    %v771 = vmax.f32 %v735, 0.0
    %v772 = vmax.f32 %v738, 0.0
    %v773 = vmax.f32 %v740, 0.0
    %v774 = vld [vmem:[#allocation2] sm:$0xff]
    %v775 = vld [vmem:[#allocation2 + $0x8] sm:$0xff]
    %v776 = vld [vmem:[#allocation2 + $0x10] sm:$0xff]
    %v777 = vld [vmem:[#allocation2 + $0x18] sm:$0xff]
    %v778 = vld [vmem:[#allocation2 + $0x20] sm:$0xff]
    %v779 = vld [vmem:[#allocation2 + $0x28] sm:$0xff]
    %v780 = vld [vmem:[#allocation2 + $0x30] sm:$0xff]
    %v781 = vld [vmem:[#allocation2 + $0x38] sm:$0xff]
    %v782 = vld [vmem:[#allocation2 + $0x40] sm:$0xff]
    %v783 = vld [vmem:[#allocation2 + $0x48] sm:$0xff]
    %v784 = vld [vmem:[#allocation2 + $0x50] sm:$0xff]
    %v785 = vld [vmem:[#allocation2 + $0x58] sm:$0xff]
    %v786 = vld [vmem:[#allocation2 + $0x60] sm:$0xff]
    %v787 = vld [vmem:[#allocation2 + $0x68] sm:$0xff]
    %v788 = vld [vmem:[#allocation2 + $0x70] sm:$0xff]
    %v789 = vld [vmem:[#allocation2 + $0x78] sm:$0xff]
    %v790 = vld [vmem:[#allocation2 + $0x80] sm:$0xff]
    %v791 = vld [vmem:[#allocation2 + $0x88] sm:$0xff]
    %v792 = vld [vmem:[#allocation2 + $0x90] sm:$0xff]
    %v793 = vld [vmem:[#allocation2 + $0x98] sm:$0xff]
    %v794 = vld [vmem:[#allocation2 + $0xa0] sm:$0xff]
    %v795 = vld [vmem:[#allocation2 + $0xa8] sm:$0xff]
    %v796 = vld [vmem:[#allocation2 + $0xb0] sm:$0xff]
    %v797 = vld [vmem:[#allocation2 + $0xb8] sm:$0xff]
    %v798 = vld [vmem:[#allocation2 + $0xc0] sm:$0xff]
    %v799 = vld [vmem:[#allocation2 + $0xc8] sm:$0xff]
    %v800 = vld [vmem:[#allocation2 + $0xd0] sm:$0xff]
    %v801 = vld [vmem:[#allocation2 + $0xd8] sm:$0xff]
    %v802 = vld [vmem:[#allocation2 + $0xe0] sm:$0xff]
    %v803 = vld [vmem:[#allocation2 + $0xe8] sm:$0xff]
    %v804 = vld [vmem:[#allocation2 + $0xf0] sm:$0xff]
    %v805 = vld [vmem:[#allocation2 + $0xf8] sm:$0xff]
    %v806 = vpack.c.bf16 %v743, %v742
    %v807 = vpack.c.bf16 %v745, %v744
    %v808 = vpack.c.bf16 %v747, %v746
    %v809 = vpack.c.bf16 %v749, %v748
    %v810 = vpack.c.bf16 %v751, %v750
    %v811 = vpack.c.bf16 %v753, %v752
    %v812 = vpack.c.bf16 %v755, %v754
    %v813 = vpack.c.bf16 %v757, %v756
    %v814 = vpack.c.bf16 %v759, %v758
    %v815 = vpack.c.bf16 %v761, %v760
    %v816 = vpack.c.bf16 %v763, %v762
    %v817 = vpack.c.bf16 %v765, %v764
    %v818 = vpack.c.bf16 %v767, %v766
    %v819 = vpack.c.bf16 %v769, %v768
    %v820 = vpack.c.bf16 %v771, %v770
    %v821 = vpack.c.bf16 %v773, %v772
    %822 = vset.pattern.permute.xlu0 1
    %823 = vperm.xlu0 %822, %v116
    %v824 = vpop.permute.xlu0 %823
    %826 = vset.pattern.permute.xlu0 1
    %827 = vperm.xlu0 %826, %v117
    %v828 = vpop.permute.xlu0 %827
    %830 = vset.pattern.permute.xlu0 1
    %831 = vperm.xlu0 %830, %v118
    %v832 = vpop.permute.xlu0 %831
    %834 = vset.pattern.permute.xlu0 1
    %835 = vperm.xlu0 %834, %v119
    %v836 = vpop.permute.xlu0 %835
    %838 = vset.pattern.permute.xlu0 1
    %839 = vperm.xlu0 %838, %v120
    %v840 = vpop.permute.xlu0 %839
    %842 = vset.pattern.permute.xlu0 1
    %843 = vperm.xlu0 %842, %v121
    %v844 = vpop.permute.xlu0 %843
    %846 = vset.pattern.permute.xlu0 1
    %847 = vperm.xlu0 %846, %v122
    %v848 = vpop.permute.xlu0 %847
    %850 = vset.pattern.permute.xlu0 1
    %851 = vperm.xlu0 %850, %v123
    %v852 = vpop.permute.xlu0 %851
    %854 = vset.pattern.permute.xlu0 1
    %855 = vperm.xlu0 %854, %v124
    %v856 = vpop.permute.xlu0 %855
    %858 = vset.pattern.permute.xlu0 1
    %859 = vperm.xlu0 %858, %v125
    %v860 = vpop.permute.xlu0 %859
    %862 = vset.pattern.permute.xlu0 1
    %863 = vperm.xlu0 %862, %v126
    %v864 = vpop.permute.xlu0 %863
    %866 = vset.pattern.permute.xlu0 1
    %867 = vperm.xlu0 %866, %v127
    %v868 = vpop.permute.xlu0 %867
    %870 = vset.pattern.permute.xlu0 1
    %871 = vperm.xlu0 %870, %v128
    %v872 = vpop.permute.xlu0 %871
    %874 = vset.pattern.permute.xlu0 1
    %875 = vperm.xlu0 %874, %v129
    %v876 = vpop.permute.xlu0 %875
    %878 = vset.pattern.permute.xlu0 1
    %879 = vperm.xlu0 %878, %v130
    %v880 = vpop.permute.xlu0 %879
    %882 = vset.pattern.permute.xlu0 1
    %883 = vperm.xlu0 %882, %v131
    %v884 = vpop.permute.xlu0 %883
    %886 = vset.pattern.permute.xlu0 1
    %887 = vperm.xlu0 %886, %v132
    %v888 = vpop.permute.xlu0 %887
    %890 = vset.pattern.permute.xlu0 1
    %891 = vperm.xlu0 %890, %v133
    %v892 = vpop.permute.xlu0 %891
    %894 = vset.pattern.permute.xlu0 1
    %895 = vperm.xlu0 %894, %v134
    %v896 = vpop.permute.xlu0 %895
    %898 = vset.pattern.permute.xlu0 1
    %899 = vperm.xlu0 %898, %v135
    %v900 = vpop.permute.xlu0 %899
    %902 = vset.pattern.permute.xlu0 1
    %903 = vperm.xlu0 %902, %v136
    %v904 = vpop.permute.xlu0 %903
    %906 = vset.pattern.permute.xlu0 1
    %907 = vperm.xlu0 %906, %v137
    %v908 = vpop.permute.xlu0 %907
    %910 = vset.pattern.permute.xlu0 1
    %911 = vperm.xlu0 %910, %v138
    %v912 = vpop.permute.xlu0 %911
    %914 = vset.pattern.permute.xlu0 1
    %915 = vperm.xlu0 %914, %v139
    %v916 = vpop.permute.xlu0 %915
    %918 = vset.pattern.permute.xlu0 1
    %919 = vperm.xlu0 %918, %v140
    %v920 = vpop.permute.xlu0 %919
    %922 = vset.pattern.permute.xlu0 1
    %923 = vperm.xlu0 %922, %v141
    %v924 = vpop.permute.xlu0 %923
    %926 = vset.pattern.permute.xlu0 1
    %927 = vperm.xlu0 %926, %v142
    %v928 = vpop.permute.xlu0 %927
    %930 = vset.pattern.permute.xlu0 1
    %931 = vperm.xlu0 %930, %v143
    %v932 = vpop.permute.xlu0 %931
    %934 = vset.pattern.permute.xlu0 1
    %935 = vperm.xlu0 %934, %v144
    %v936 = vpop.permute.xlu0 %935
    %938 = vset.pattern.permute.xlu0 1
    %939 = vperm.xlu0 %938, %v145
    %v940 = vpop.permute.xlu0 %939
    %942 = vset.pattern.permute.xlu0 1
    %943 = vperm.xlu0 %942, %v146
    %v944 = vpop.permute.xlu0 %943
    %946 = vset.pattern.permute.xlu0 1
    %947 = vperm.xlu0 %946, %v147
    %v948 = vpop.permute.xlu0 %947
    %v982 = vunpack.c.l.b16 %v774
    %v983 = vunpack.c.h.b16 %v774
    %v984 = vunpack.c.l.b16 %v775
    %v985 = vunpack.c.h.b16 %v775
    %v986 = vunpack.c.l.b16 %v776
    %v987 = vunpack.c.h.b16 %v776
    %v988 = vunpack.c.l.b16 %v777
    %v989 = vunpack.c.h.b16 %v777
    %v990 = vunpack.c.l.b16 %v778
    %v991 = vunpack.c.h.b16 %v778
    %v992 = vunpack.c.l.b16 %v779
    %v993 = vunpack.c.h.b16 %v779
    %v994 = vunpack.c.l.b16 %v780
    %v995 = vunpack.c.h.b16 %v780
    %v996 = vunpack.c.l.b16 %v781
    %v997 = vunpack.c.h.b16 %v781
    %v998 = vunpack.c.l.b16 %v782
    %v999 = vunpack.c.h.b16 %v782
    %v1000 = vunpack.c.l.b16 %v783
    %v1001 = vunpack.c.h.b16 %v783
    %v1002 = vunpack.c.l.b16 %v784
    %v1003 = vunpack.c.h.b16 %v784
    %v1004 = vunpack.c.l.b16 %v785
    %v1005 = vunpack.c.h.b16 %v785
    %v1006 = vunpack.c.l.b16 %v786
    %v1007 = vunpack.c.h.b16 %v786
    %v1008 = vunpack.c.l.b16 %v787
    %v1009 = vunpack.c.h.b16 %v787
    %v1010 = vunpack.c.l.b16 %v788
    %v1011 = vunpack.c.h.b16 %v788
    %v1012 = vunpack.c.l.b16 %v789
    %v1013 = vunpack.c.h.b16 %v789
    %v1014 = vunpack.c.l.b16 %v790
    %v1015 = vunpack.c.h.b16 %v790
    %v1016 = vunpack.c.l.b16 %v791
    %v1017 = vunpack.c.h.b16 %v791
    %v1018 = vunpack.c.l.b16 %v792
    %v1019 = vunpack.c.h.b16 %v792
    %v1020 = vunpack.c.l.b16 %v793
    %v1021 = vunpack.c.h.b16 %v793
    %v1022 = vunpack.c.l.b16 %v794
    %v1023 = vunpack.c.h.b16 %v794
    %v1024 = vunpack.c.l.b16 %v795
    %v1025 = vunpack.c.h.b16 %v795
    %v1026 = vunpack.c.l.b16 %v796
    %v1027 = vunpack.c.h.b16 %v796
    %v1028 = vunpack.c.l.b16 %v797
    %v1029 = vunpack.c.h.b16 %v797
    %v1030 = vunpack.c.l.b16 %v798
    %v1031 = vunpack.c.h.b16 %v798
    %v1032 = vunpack.c.l.b16 %v799
    %v1033 = vunpack.c.h.b16 %v799
    %v1034 = vunpack.c.l.b16 %v800
    %v1035 = vunpack.c.h.b16 %v800
    %v1036 = vunpack.c.l.b16 %v801
    %v1037 = vunpack.c.h.b16 %v801
    %v1038 = vunpack.c.l.b16 %v802
    %v1039 = vunpack.c.h.b16 %v802
    %v1040 = vunpack.c.l.b16 %v803
    %v1041 = vunpack.c.h.b16 %v803
    %v1042 = vunpack.c.l.b16 %v804
    %v1043 = vunpack.c.h.b16 %v804
    %v1044 = vunpack.c.l.b16 %v805
    %v1045 = vunpack.c.h.b16 %v805
    %v1046 = vpack.c.b16 %v984, %v982
    %v1047 = vpack.c.b16 %v985, %v983
    %v1048 = vpack.c.b16 %v988, %v986
    %v1049 = vpack.c.b16 %v989, %v987
    %v1050 = vpack.c.b16 %v992, %v990
    %v1051 = vpack.c.b16 %v993, %v991
    %v1052 = vpack.c.b16 %v996, %v994
    %v1053 = vpack.c.b16 %v997, %v995
    %v1054 = vpack.c.b16 %v1000, %v998
    %v1055 = vpack.c.b16 %v1001, %v999
    %v1056 = vpack.c.b16 %v1004, %v1002
    %v1057 = vpack.c.b16 %v1005, %v1003
    %v1058 = vpack.c.b16 %v1008, %v1006
    %v1059 = vpack.c.b16 %v1009, %v1007
    %v1060 = vpack.c.b16 %v1012, %v1010
    %v1061 = vpack.c.b16 %v1013, %v1011
    %v1062 = vpack.c.b16 %v1016, %v1014
    %v1063 = vpack.c.b16 %v1017, %v1015
    %v1064 = vpack.c.b16 %v1020, %v1018
    %v1065 = vpack.c.b16 %v1021, %v1019
    %v1066 = vpack.c.b16 %v1024, %v1022
    %v1067 = vpack.c.b16 %v1025, %v1023
    %v1068 = vpack.c.b16 %v1028, %v1026
    %v1069 = vpack.c.b16 %v1029, %v1027
    %v1070 = vpack.c.b16 %v1032, %v1030
    %v1071 = vpack.c.b16 %v1033, %v1031
    %v1072 = vpack.c.b16 %v1036, %v1034
    %v1073 = vpack.c.b16 %v1037, %v1035
    %v1074 = vpack.c.b16 %v1040, %v1038
    %v1075 = vpack.c.b16 %v1041, %v1039
    %v1076 = vpack.c.b16 %v1044, %v1042
    %v1077 = vpack.c.b16 %v1045, %v1043
    %1110 = vmatpush.bf16.msra.mxu0 %v813
    %1111 = vmatpush.bf16.msra.mxu0 %v812
    %1112 = vmatpush.bf16.msra.mxu0 %v811
    %1113 = vmatpush.bf16.msra.mxu0 %v810
    %1114 = vmatpush.bf16.msra.mxu0 %v809
    %1115 = vmatpush.bf16.msra.mxu0 %v808
    %1116 = vmatpush.bf16.msra.mxu0 %v807
    %1117 = vmatpush.bf16.msra.mxu0 %v806
    %1118 = vmatmul.bf16.gmra.mxu0 %v1046
    %v1119 = vpop.f32.mrf.mxu0
    %v1120 = vadd.f32 %v824, %v1119
    %v1121 = vpop.f32.mrf.mxu0
    %v1122 = vadd.f32 %v828, %v1121
    %1123 = vmatmul.bf16.gmra.mxu0 %v1048
    %v1124 = vpop.f32.mrf.mxu0
    %v1125 = vadd.f32 %v832, %v1124
    %v1126 = vpop.f32.mrf.mxu0
    %v1127 = vadd.f32 %v836, %v1126
    %1128 = vmatmul.bf16.gmra.mxu0 %v1050
    %v1129 = vpop.f32.mrf.mxu0
    %v1130 = vadd.f32 %v840, %v1129
    %v1131 = vpop.f32.mrf.mxu0
    %v1132 = vadd.f32 %v844, %v1131
    %1133 = vmatmul.bf16.gmra.mxu0 %v1052
    %v1134 = vpop.f32.mrf.mxu0
    %v1135 = vadd.f32 %v848, %v1134
    %v1136 = vpop.f32.mrf.mxu0
    %v1137 = vadd.f32 %v852, %v1136
    %1138 = vmatmul.bf16.gmra.mxu0 %v1054
    %v1139 = vpop.f32.mrf.mxu0
    %v1140 = vadd.f32 %v856, %v1139
    %v1141 = vpop.f32.mrf.mxu0
    %v1142 = vadd.f32 %v860, %v1141
    %1143 = vmatmul.bf16.gmra.mxu0 %v1056
    %v1144 = vpop.f32.mrf.mxu0
    %v1145 = vadd.f32 %v864, %v1144
    %v1146 = vpop.f32.mrf.mxu0
    %v1147 = vadd.f32 %v868, %v1146
    %1148 = vmatmul.bf16.gmra.mxu0 %v1058
    %v1149 = vpop.f32.mrf.mxu0
    %v1150 = vadd.f32 %v872, %v1149
    %v1151 = vpop.f32.mrf.mxu0
    %v1152 = vadd.f32 %v876, %v1151
    %1153 = vmatmul.bf16.gmra.mxu0 %v1060
    %v1154 = vpop.f32.mrf.mxu0
    %v1155 = vadd.f32 %v880, %v1154
    %v1156 = vpop.f32.mrf.mxu0
    %v1157 = vadd.f32 %v884, %v1156
    %1158 = vmatmul.bf16.gmra.mxu0 %v1062
    %v1159 = vpop.f32.mrf.mxu0
    %v1160 = vadd.f32 %v888, %v1159
    %v1161 = vpop.f32.mrf.mxu0
    %v1162 = vadd.f32 %v892, %v1161
    %1163 = vmatmul.bf16.gmra.mxu0 %v1064
    %v1164 = vpop.f32.mrf.mxu0
    %v1165 = vadd.f32 %v896, %v1164
    %v1166 = vpop.f32.mrf.mxu0
    %v1167 = vadd.f32 %v900, %v1166
    %1168 = vmatmul.bf16.gmra.mxu0 %v1066
    %v1169 = vpop.f32.mrf.mxu0
    %v1170 = vadd.f32 %v904, %v1169
    %v1171 = vpop.f32.mrf.mxu0
    %v1172 = vadd.f32 %v908, %v1171
    %1173 = vmatmul.bf16.gmra.mxu0 %v1068
    %v1174 = vpop.f32.mrf.mxu0
    %v1175 = vadd.f32 %v912, %v1174
    %v1176 = vpop.f32.mrf.mxu0
    %v1177 = vadd.f32 %v916, %v1176
    %1178 = vmatmul.bf16.gmra.mxu0 %v1070
    %v1179 = vpop.f32.mrf.mxu0
    %v1180 = vadd.f32 %v920, %v1179
    %v1181 = vpop.f32.mrf.mxu0
    %v1182 = vadd.f32 %v924, %v1181
    %1183 = vmatmul.bf16.gmra.mxu0 %v1072
    %v1184 = vpop.f32.mrf.mxu0
    %v1185 = vadd.f32 %v928, %v1184
    %v1186 = vpop.f32.mrf.mxu0
    %v1187 = vadd.f32 %v932, %v1186
    %1188 = vmatmul.bf16.gmra.mxu0 %v1074
    %v1189 = vpop.f32.mrf.mxu0
    %v1190 = vadd.f32 %v936, %v1189
    %v1191 = vpop.f32.mrf.mxu0
    %v1192 = vadd.f32 %v940, %v1191
    %1193 = vmatmul.bf16.gmra.mxu0 %v1076
    %v1194 = vpop.f32.mrf.mxu0
    %v1195 = vadd.f32 %v944, %v1194
    %v1196 = vpop.f32.mrf.mxu0
    %v1197 = vadd.f32 %v948, %v1196
    %1198 = vdwg.mxu0
    %1199 = vmatpush.bf16.msra.mxu0 %v821
    %1200 = vmatpush.bf16.msra.mxu0 %v820
    %1201 = vmatpush.bf16.msra.mxu0 %v819
    %1202 = vmatpush.bf16.msra.mxu0 %v818
    %1203 = vmatpush.bf16.msra.mxu0 %v817
    %1204 = vmatpush.bf16.msra.mxu0 %v816
    %1205 = vmatpush.bf16.msra.mxu0 %v815
    %1206 = vmatpush.bf16.msra.mxu0 %v814
    %1207 = vmatmul.bf16.gmra.mxu0 %v1047
    %v1208 = vpop.f32.mrf.mxu0
    %v1209 = vadd.f32 %v1120, %v1208
    %v1210 = vpop.f32.mrf.mxu0
    %v1211 = vadd.f32 %v1122, %v1210
    %1212 = vmatmul.bf16.gmra.mxu0 %v1049
    %v1213 = vpop.f32.mrf.mxu0
    %v1214 = vadd.f32 %v1125, %v1213
    %v1215 = vpop.f32.mrf.mxu0
    %v1216 = vadd.f32 %v1127, %v1215
    %1217 = vmatmul.bf16.gmra.mxu0 %v1051
    %v1218 = vpop.f32.mrf.mxu0
    %v1219 = vadd.f32 %v1130, %v1218
    %v1220 = vpop.f32.mrf.mxu0
    %v1221 = vadd.f32 %v1132, %v1220
    %1222 = vmatmul.bf16.gmra.mxu0 %v1053
    %v1223 = vpop.f32.mrf.mxu0
    %v1224 = vadd.f32 %v1135, %v1223
    %v1225 = vpop.f32.mrf.mxu0
    %v1226 = vadd.f32 %v1137, %v1225
    %1227 = vmatmul.bf16.gmra.mxu0 %v1055
    %v1228 = vpop.f32.mrf.mxu0
    %v1229 = vadd.f32 %v1140, %v1228
    %v1230 = vpop.f32.mrf.mxu0
    %v1231 = vadd.f32 %v1142, %v1230
    %1232 = vmatmul.bf16.gmra.mxu0 %v1057
    %v1233 = vpop.f32.mrf.mxu0
    %v1234 = vadd.f32 %v1145, %v1233
    %v1235 = vpop.f32.mrf.mxu0
    %v1236 = vadd.f32 %v1147, %v1235
    %1237 = vmatmul.bf16.gmra.mxu0 %v1059
    %v1238 = vpop.f32.mrf.mxu0
    %v1239 = vadd.f32 %v1150, %v1238
    %v1240 = vpop.f32.mrf.mxu0
    %v1241 = vadd.f32 %v1152, %v1240
    %1242 = vmatmul.bf16.gmra.mxu0 %v1061
    %v1243 = vpop.f32.mrf.mxu0
    %v1244 = vadd.f32 %v1155, %v1243
    %v1245 = vpop.f32.mrf.mxu0
    %v1246 = vadd.f32 %v1157, %v1245
    %1247 = vmatmul.bf16.gmra.mxu0 %v1063
    %v1248 = vpop.f32.mrf.mxu0
    %v1249 = vadd.f32 %v1160, %v1248
    %v1250 = vpop.f32.mrf.mxu0
    %v1251 = vadd.f32 %v1162, %v1250
    %1252 = vmatmul.bf16.gmra.mxu0 %v1065
    %v1253 = vpop.f32.mrf.mxu0
    %v1254 = vadd.f32 %v1165, %v1253
    %v1255 = vpop.f32.mrf.mxu0
    %v1256 = vadd.f32 %v1167, %v1255
    %1257 = vmatmul.bf16.gmra.mxu0 %v1067
    %v1258 = vpop.f32.mrf.mxu0
    %v1259 = vadd.f32 %v1170, %v1258
    %v1260 = vpop.f32.mrf.mxu0
    %v1261 = vadd.f32 %v1172, %v1260
    %1262 = vmatmul.bf16.gmra.mxu0 %v1069
    %v1263 = vpop.f32.mrf.mxu0
    %v1264 = vadd.f32 %v1175, %v1263
    %v1265 = vpop.f32.mrf.mxu0
    %v1266 = vadd.f32 %v1177, %v1265
    %1267 = vmatmul.bf16.gmra.mxu0 %v1071
    %v1268 = vpop.f32.mrf.mxu0
    %v1269 = vadd.f32 %v1180, %v1268
    %v1270 = vpop.f32.mrf.mxu0
    %v1271 = vadd.f32 %v1182, %v1270
    %1272 = vmatmul.bf16.gmra.mxu0 %v1073
    %v1273 = vpop.f32.mrf.mxu0
    %v1274 = vadd.f32 %v1185, %v1273
    %v1275 = vpop.f32.mrf.mxu0
    %v1276 = vadd.f32 %v1187, %v1275
    %1277 = vmatmul.bf16.gmra.mxu0 %v1075
    %v1278 = vpop.f32.mrf.mxu0
    %v1279 = vadd.f32 %v1190, %v1278
    %v1280 = vpop.f32.mrf.mxu0
    %v1281 = vadd.f32 %v1192, %v1280
    %1282 = vmatmul.bf16.gmra.mxu0 %v1077
    %v1283 = vpop.f32.mrf.mxu0
    %v1284 = vadd.f32 %v1195, %v1283
    %v1285 = vpop.f32.mrf.mxu0
    %v1286 = vadd.f32 %v1197, %v1285
    %1287 = vdwg.mxu0
    %v1288 = vmax.f32 %v1209, 0.0
    %v1289 = vmax.f32 %v1211, 0.0
    %v1290 = vmax.f32 %v1214, 0.0
    %v1291 = vmax.f32 %v1216, 0.0
    %v1292 = vmax.f32 %v1219, 0.0
    %v1293 = vmax.f32 %v1221, 0.0
    %v1294 = vmax.f32 %v1224, 0.0
    %v1295 = vmax.f32 %v1226, 0.0
    %v1296 = vmax.f32 %v1229, 0.0
    %v1297 = vmax.f32 %v1231, 0.0
    %v1298 = vmax.f32 %v1234, 0.0
    %v1299 = vmax.f32 %v1236, 0.0
    %v1300 = vmax.f32 %v1239, 0.0
    %v1301 = vmax.f32 %v1241, 0.0
    %v1302 = vmax.f32 %v1244, 0.0
    %v1303 = vmax.f32 %v1246, 0.0
    %v1304 = vmax.f32 %v1249, 0.0
    %v1305 = vmax.f32 %v1251, 0.0
    %v1306 = vmax.f32 %v1254, 0.0
    %v1307 = vmax.f32 %v1256, 0.0
    %v1308 = vmax.f32 %v1259, 0.0
    %v1309 = vmax.f32 %v1261, 0.0
    %v1310 = vmax.f32 %v1264, 0.0
    %v1311 = vmax.f32 %v1266, 0.0
    %v1312 = vmax.f32 %v1269, 0.0
    %v1313 = vmax.f32 %v1271, 0.0
    %v1314 = vmax.f32 %v1274, 0.0
    %v1315 = vmax.f32 %v1276, 0.0
    %v1316 = vmax.f32 %v1279, 0.0
    %v1317 = vmax.f32 %v1281, 0.0
    %v1318 = vmax.f32 %v1284, 0.0
    %v1319 = vmax.f32 %v1286, 0.0
    %v1320 = vadd.f32 %v742, %v1288
    %v1321 = vadd.f32 %v743, %v1289
    %v1322 = vadd.f32 %v744, %v1290
    %v1323 = vadd.f32 %v745, %v1291
    %v1324 = vadd.f32 %v746, %v1292
    %v1325 = vadd.f32 %v747, %v1293
    %v1326 = vadd.f32 %v748, %v1294
    %v1327 = vadd.f32 %v749, %v1295
    %v1328 = vadd.f32 %v750, %v1296
    %v1329 = vadd.f32 %v751, %v1297
    %v1330 = vadd.f32 %v752, %v1298
    %v1331 = vadd.f32 %v753, %v1299
    %v1332 = vadd.f32 %v754, %v1300
    %v1333 = vadd.f32 %v755, %v1301
    %v1334 = vadd.f32 %v756, %v1302
    %v1335 = vadd.f32 %v757, %v1303
    %v1336 = vadd.f32 %v758, %v1304
    %v1337 = vadd.f32 %v759, %v1305
    %v1338 = vadd.f32 %v760, %v1306
    %v1339 = vadd.f32 %v761, %v1307
    %v1340 = vadd.f32 %v762, %v1308
    %v1341 = vadd.f32 %v763, %v1309
    %v1342 = vadd.f32 %v764, %v1310
    %v1343 = vadd.f32 %v765, %v1311
    %v1344 = vadd.f32 %v766, %v1312
    %v1345 = vadd.f32 %v767, %v1313
    %v1346 = vadd.f32 %v768, %v1314
    %v1347 = vadd.f32 %v769, %v1315
    %v1348 = vadd.f32 %v770, %v1316
    %v1349 = vadd.f32 %v771, %v1317
    %v1350 = vadd.f32 %v772, %v1318
    %v1351 = vadd.f32 %v773, %v1319
    %s1352 = scalar_lea.vmem [#allocation2], 256
    %v1353 = vld [vmem:[%s1352] sm:$0xff]
    %v1354 = vld [vmem:[%s1352 + $0x8] sm:$0xff]
    %v1355 = vld [vmem:[%s1352 + $0x10] sm:$0xff]
    %v1356 = vld [vmem:[%s1352 + $0x18] sm:$0xff]
    %v1357 = vld [vmem:[%s1352 + $0x20] sm:$0xff]
    %v1358 = vld [vmem:[%s1352 + $0x28] sm:$0xff]
    %v1359 = vld [vmem:[%s1352 + $0x30] sm:$0xff]
    %v1360 = vld [vmem:[%s1352 + $0x38] sm:$0xff]
    %v1361 = vld [vmem:[%s1352 + $0x40] sm:$0xff]
    %v1362 = vld [vmem:[%s1352 + $0x48] sm:$0xff]
    %v1363 = vld [vmem:[%s1352 + $0x50] sm:$0xff]
    %v1364 = vld [vmem:[%s1352 + $0x58] sm:$0xff]
    %v1365 = vld [vmem:[%s1352 + $0x60] sm:$0xff]
    %v1366 = vld [vmem:[%s1352 + $0x68] sm:$0xff]
    %v1367 = vld [vmem:[%s1352 + $0x70] sm:$0xff]
    %v1368 = vld [vmem:[%s1352 + $0x78] sm:$0xff]
    %v1369 = vld [vmem:[%s1352 + $0x80] sm:$0xff]
    %v1370 = vld [vmem:[%s1352 + $0x88] sm:$0xff]
    %v1371 = vld [vmem:[%s1352 + $0x90] sm:$0xff]
    %v1372 = vld [vmem:[%s1352 + $0x98] sm:$0xff]
    %v1373 = vld [vmem:[%s1352 + $0xa0] sm:$0xff]
    %v1374 = vld [vmem:[%s1352 + $0xa8] sm:$0xff]
    %v1375 = vld [vmem:[%s1352 + $0xb0] sm:$0xff]
    %v1376 = vld [vmem:[%s1352 + $0xb8] sm:$0xff]
    %v1377 = vld [vmem:[%s1352 + $0xc0] sm:$0xff]
    %v1378 = vld [vmem:[%s1352 + $0xc8] sm:$0xff]
    %v1379 = vld [vmem:[%s1352 + $0xd0] sm:$0xff]
    %v1380 = vld [vmem:[%s1352 + $0xd8] sm:$0xff]
    %v1381 = vld [vmem:[%s1352 + $0xe0] sm:$0xff]
    %v1382 = vld [vmem:[%s1352 + $0xe8] sm:$0xff]
    %v1383 = vld [vmem:[%s1352 + $0xf0] sm:$0xff]
    %v1384 = vld [vmem:[%s1352 + $0xf8] sm:$0xff]
    %v1385 = vpack.c.bf16 %v1321, %v1320
    %v1386 = vpack.c.bf16 %v1323, %v1322
    %v1387 = vpack.c.bf16 %v1325, %v1324
    %v1388 = vpack.c.bf16 %v1327, %v1326
    %v1389 = vpack.c.bf16 %v1329, %v1328
    %v1390 = vpack.c.bf16 %v1331, %v1330
    %v1391 = vpack.c.bf16 %v1333, %v1332
    %v1392 = vpack.c.bf16 %v1335, %v1334
    %v1393 = vpack.c.bf16 %v1337, %v1336
    %v1394 = vpack.c.bf16 %v1339, %v1338
    %v1395 = vpack.c.bf16 %v1341, %v1340
    %v1396 = vpack.c.bf16 %v1343, %v1342
    %v1397 = vpack.c.bf16 %v1345, %v1344
    %v1398 = vpack.c.bf16 %v1347, %v1346
    %v1399 = vpack.c.bf16 %v1349, %v1348
    %v1400 = vpack.c.bf16 %v1351, %v1350
    %1401 = vset.pattern.permute.xlu0 2
    %1402 = vperm.xlu0 %1401, %v116
    %v1403 = vpop.permute.xlu0 %1402
    %1405 = vset.pattern.permute.xlu0 2
    %1406 = vperm.xlu0 %1405, %v117
    %v1407 = vpop.permute.xlu0 %1406
    %1409 = vset.pattern.permute.xlu0 2
    %1410 = vperm.xlu0 %1409, %v118
    %v1411 = vpop.permute.xlu0 %1410
    %1413 = vset.pattern.permute.xlu0 2
    %1414 = vperm.xlu0 %1413, %v119
    %v1415 = vpop.permute.xlu0 %1414
    %1417 = vset.pattern.permute.xlu0 2
    %1418 = vperm.xlu0 %1417, %v120
    %v1419 = vpop.permute.xlu0 %1418
    %1421 = vset.pattern.permute.xlu0 2
    %1422 = vperm.xlu0 %1421, %v121
    %v1423 = vpop.permute.xlu0 %1422
    %1425 = vset.pattern.permute.xlu0 2
    %1426 = vperm.xlu0 %1425, %v122
    %v1427 = vpop.permute.xlu0 %1426
    %1429 = vset.pattern.permute.xlu0 2
    %1430 = vperm.xlu0 %1429, %v123
    %v1431 = vpop.permute.xlu0 %1430
    %1433 = vset.pattern.permute.xlu0 2
    %1434 = vperm.xlu0 %1433, %v124
    %v1435 = vpop.permute.xlu0 %1434
    %1437 = vset.pattern.permute.xlu0 2
    %1438 = vperm.xlu0 %1437, %v125
    %v1439 = vpop.permute.xlu0 %1438
    %1441 = vset.pattern.permute.xlu0 2
    %1442 = vperm.xlu0 %1441, %v126
    %v1443 = vpop.permute.xlu0 %1442
    %1445 = vset.pattern.permute.xlu0 2
    %1446 = vperm.xlu0 %1445, %v127
    %v1447 = vpop.permute.xlu0 %1446
    %1449 = vset.pattern.permute.xlu0 2
    %1450 = vperm.xlu0 %1449, %v128
    %v1451 = vpop.permute.xlu0 %1450
    %1453 = vset.pattern.permute.xlu0 2
    %1454 = vperm.xlu0 %1453, %v129
    %v1455 = vpop.permute.xlu0 %1454
    %1457 = vset.pattern.permute.xlu0 2
    %1458 = vperm.xlu0 %1457, %v130
    %v1459 = vpop.permute.xlu0 %1458
    %1461 = vset.pattern.permute.xlu0 2
    %1462 = vperm.xlu0 %1461, %v131
    %v1463 = vpop.permute.xlu0 %1462
    %1465 = vset.pattern.permute.xlu0 2
    %1466 = vperm.xlu0 %1465, %v132
    %v1467 = vpop.permute.xlu0 %1466
    %1469 = vset.pattern.permute.xlu0 2
    %1470 = vperm.xlu0 %1469, %v133
    %v1471 = vpop.permute.xlu0 %1470
    %1473 = vset.pattern.permute.xlu0 2
    %1474 = vperm.xlu0 %1473, %v134
    %v1475 = vpop.permute.xlu0 %1474
    %1477 = vset.pattern.permute.xlu0 2
    %1478 = vperm.xlu0 %1477, %v135
    %v1479 = vpop.permute.xlu0 %1478
    %1481 = vset.pattern.permute.xlu0 2
    %1482 = vperm.xlu0 %1481, %v136
    %v1483 = vpop.permute.xlu0 %1482
    %1485 = vset.pattern.permute.xlu0 2
    %1486 = vperm.xlu0 %1485, %v137
    %v1487 = vpop.permute.xlu0 %1486
    %1489 = vset.pattern.permute.xlu0 2
    %1490 = vperm.xlu0 %1489, %v138
    %v1491 = vpop.permute.xlu0 %1490
    %1493 = vset.pattern.permute.xlu0 2
    %1494 = vperm.xlu0 %1493, %v139
    %v1495 = vpop.permute.xlu0 %1494
    %1497 = vset.pattern.permute.xlu0 2
    %1498 = vperm.xlu0 %1497, %v140
    %v1499 = vpop.permute.xlu0 %1498
    %1501 = vset.pattern.permute.xlu0 2
    %1502 = vperm.xlu0 %1501, %v141
    %v1503 = vpop.permute.xlu0 %1502
    %1505 = vset.pattern.permute.xlu0 2
    %1506 = vperm.xlu0 %1505, %v142
    %v1507 = vpop.permute.xlu0 %1506
    %1509 = vset.pattern.permute.xlu0 2
    %1510 = vperm.xlu0 %1509, %v143
    %v1511 = vpop.permute.xlu0 %1510
    %1513 = vset.pattern.permute.xlu0 2
    %1514 = vperm.xlu0 %1513, %v144
    %v1515 = vpop.permute.xlu0 %1514
    %1517 = vset.pattern.permute.xlu0 2
    %1518 = vperm.xlu0 %1517, %v145
    %v1519 = vpop.permute.xlu0 %1518
    %1521 = vset.pattern.permute.xlu0 2
    %1522 = vperm.xlu0 %1521, %v146
    %v1523 = vpop.permute.xlu0 %1522
    %1525 = vset.pattern.permute.xlu0 2
    %1526 = vperm.xlu0 %1525, %v147
    %v1527 = vpop.permute.xlu0 %1526
    %v1561 = vunpack.c.l.b16 %v1353
    %v1562 = vunpack.c.h.b16 %v1353
    %v1563 = vunpack.c.l.b16 %v1354
    %v1564 = vunpack.c.h.b16 %v1354
    %v1565 = vunpack.c.l.b16 %v1355
    %v1566 = vunpack.c.h.b16 %v1355
    %v1567 = vunpack.c.l.b16 %v1356
    %v1568 = vunpack.c.h.b16 %v1356
    %v1569 = vunpack.c.l.b16 %v1357
    %v1570 = vunpack.c.h.b16 %v1357
    %v1571 = vunpack.c.l.b16 %v1358
    %v1572 = vunpack.c.h.b16 %v1358
    %v1573 = vunpack.c.l.b16 %v1359
    %v1574 = vunpack.c.h.b16 %v1359
    %v1575 = vunpack.c.l.b16 %v1360
    %v1576 = vunpack.c.h.b16 %v1360
    %v1577 = vunpack.c.l.b16 %v1361
    %v1578 = vunpack.c.h.b16 %v1361
    %v1579 = vunpack.c.l.b16 %v1362
    %v1580 = vunpack.c.h.b16 %v1362
    %v1581 = vunpack.c.l.b16 %v1363
    %v1582 = vunpack.c.h.b16 %v1363
    %v1583 = vunpack.c.l.b16 %v1364
    %v1584 = vunpack.c.h.b16 %v1364
    %v1585 = vunpack.c.l.b16 %v1365
    %v1586 = vunpack.c.h.b16 %v1365
    %v1587 = vunpack.c.l.b16 %v1366
    %v1588 = vunpack.c.h.b16 %v1366
    %v1589 = vunpack.c.l.b16 %v1367
    %v1590 = vunpack.c.h.b16 %v1367
    %v1591 = vunpack.c.l.b16 %v1368
    %v1592 = vunpack.c.h.b16 %v1368
    %v1593 = vunpack.c.l.b16 %v1369
    %v1594 = vunpack.c.h.b16 %v1369
    %v1595 = vunpack.c.l.b16 %v1370
    %v1596 = vunpack.c.h.b16 %v1370
    %v1597 = vunpack.c.l.b16 %v1371
    %v1598 = vunpack.c.h.b16 %v1371
    %v1599 = vunpack.c.l.b16 %v1372
    %v1600 = vunpack.c.h.b16 %v1372
    %v1601 = vunpack.c.l.b16 %v1373
    %v1602 = vunpack.c.h.b16 %v1373
    %v1603 = vunpack.c.l.b16 %v1374
    %v1604 = vunpack.c.h.b16 %v1374
    %v1605 = vunpack.c.l.b16 %v1375
    %v1606 = vunpack.c.h.b16 %v1375
    %v1607 = vunpack.c.l.b16 %v1376
    %v1608 = vunpack.c.h.b16 %v1376
    %v1609 = vunpack.c.l.b16 %v1377
    %v1610 = vunpack.c.h.b16 %v1377
    %v1611 = vunpack.c.l.b16 %v1378
    %v1612 = vunpack.c.h.b16 %v1378
    %v1613 = vunpack.c.l.b16 %v1379
    %v1614 = vunpack.c.h.b16 %v1379
    %v1615 = vunpack.c.l.b16 %v1380
    %v1616 = vunpack.c.h.b16 %v1380
    %v1617 = vunpack.c.l.b16 %v1381
    %v1618 = vunpack.c.h.b16 %v1381
    %v1619 = vunpack.c.l.b16 %v1382
    %v1620 = vunpack.c.h.b16 %v1382
    %v1621 = vunpack.c.l.b16 %v1383
    %v1622 = vunpack.c.h.b16 %v1383
    %v1623 = vunpack.c.l.b16 %v1384
    %v1624 = vunpack.c.h.b16 %v1384
    %v1625 = vpack.c.b16 %v1563, %v1561
    %v1626 = vpack.c.b16 %v1564, %v1562
    %v1627 = vpack.c.b16 %v1567, %v1565
    %v1628 = vpack.c.b16 %v1568, %v1566
    %v1629 = vpack.c.b16 %v1571, %v1569
    %v1630 = vpack.c.b16 %v1572, %v1570
    %v1631 = vpack.c.b16 %v1575, %v1573
    %v1632 = vpack.c.b16 %v1576, %v1574
    %v1633 = vpack.c.b16 %v1579, %v1577
    %v1634 = vpack.c.b16 %v1580, %v1578
    %v1635 = vpack.c.b16 %v1583, %v1581
    %v1636 = vpack.c.b16 %v1584, %v1582
    %v1637 = vpack.c.b16 %v1587, %v1585
    %v1638 = vpack.c.b16 %v1588, %v1586
    %v1639 = vpack.c.b16 %v1591, %v1589
    %v1640 = vpack.c.b16 %v1592, %v1590
    %v1641 = vpack.c.b16 %v1595, %v1593
    %v1642 = vpack.c.b16 %v1596, %v1594
    %v1643 = vpack.c.b16 %v1599, %v1597
    %v1644 = vpack.c.b16 %v1600, %v1598
    %v1645 = vpack.c.b16 %v1603, %v1601
    %v1646 = vpack.c.b16 %v1604, %v1602
    %v1647 = vpack.c.b16 %v1607, %v1605
    %v1648 = vpack.c.b16 %v1608, %v1606
    %v1649 = vpack.c.b16 %v1611, %v1609
    %v1650 = vpack.c.b16 %v1612, %v1610
    %v1651 = vpack.c.b16 %v1615, %v1613
    %v1652 = vpack.c.b16 %v1616, %v1614
    %v1653 = vpack.c.b16 %v1619, %v1617
    %v1654 = vpack.c.b16 %v1620, %v1618
    %v1655 = vpack.c.b16 %v1623, %v1621
    %v1656 = vpack.c.b16 %v1624, %v1622
    %1689 = vmatpush.bf16.msra.mxu0 %v1392
    %1690 = vmatpush.bf16.msra.mxu0 %v1391
    %1691 = vmatpush.bf16.msra.mxu0 %v1390
    %1692 = vmatpush.bf16.msra.mxu0 %v1389
    %1693 = vmatpush.bf16.msra.mxu0 %v1388
    %1694 = vmatpush.bf16.msra.mxu0 %v1387
    %1695 = vmatpush.bf16.msra.mxu0 %v1386
    %1696 = vmatpush.bf16.msra.mxu0 %v1385
    %1697 = vmatmul.bf16.gmra.mxu0 %v1625
    %v1698 = vpop.f32.mrf.mxu0
    %v1699 = vadd.f32 %v1403, %v1698
    %v1700 = vpop.f32.mrf.mxu0
    %v1701 = vadd.f32 %v1407, %v1700
    %1702 = vmatmul.bf16.gmra.mxu0 %v1627
    %v1703 = vpop.f32.mrf.mxu0
    %v1704 = vadd.f32 %v1411, %v1703
    %v1705 = vpop.f32.mrf.mxu0
    %v1706 = vadd.f32 %v1415, %v1705
    %1707 = vmatmul.bf16.gmra.mxu0 %v1629
    %v1708 = vpop.f32.mrf.mxu0
    %v1709 = vadd.f32 %v1419, %v1708
    %v1710 = vpop.f32.mrf.mxu0
    %v1711 = vadd.f32 %v1423, %v1710
    %1712 = vmatmul.bf16.gmra.mxu0 %v1631
    %v1713 = vpop.f32.mrf.mxu0
    %v1714 = vadd.f32 %v1427, %v1713
    %v1715 = vpop.f32.mrf.mxu0
    %v1716 = vadd.f32 %v1431, %v1715
    %1717 = vmatmul.bf16.gmra.mxu0 %v1633
    %v1718 = vpop.f32.mrf.mxu0
    %v1719 = vadd.f32 %v1435, %v1718
    %v1720 = vpop.f32.mrf.mxu0
    %v1721 = vadd.f32 %v1439, %v1720
    %1722 = vmatmul.bf16.gmra.mxu0 %v1635
    %v1723 = vpop.f32.mrf.mxu0
    %v1724 = vadd.f32 %v1443, %v1723
    %v1725 = vpop.f32.mrf.mxu0
    %v1726 = vadd.f32 %v1447, %v1725
    %1727 = vmatmul.bf16.gmra.mxu0 %v1637
    %v1728 = vpop.f32.mrf.mxu0
    %v1729 = vadd.f32 %v1451, %v1728
    %v1730 = vpop.f32.mrf.mxu0
    %v1731 = vadd.f32 %v1455, %v1730
    %1732 = vmatmul.bf16.gmra.mxu0 %v1639
    %v1733 = vpop.f32.mrf.mxu0
    %v1734 = vadd.f32 %v1459, %v1733
    %v1735 = vpop.f32.mrf.mxu0
    %v1736 = vadd.f32 %v1463, %v1735
    %1737 = vmatmul.bf16.gmra.mxu0 %v1641
    %v1738 = vpop.f32.mrf.mxu0
    %v1739 = vadd.f32 %v1467, %v1738
    %v1740 = vpop.f32.mrf.mxu0
    %v1741 = vadd.f32 %v1471, %v1740
    %1742 = vmatmul.bf16.gmra.mxu0 %v1643
    %v1743 = vpop.f32.mrf.mxu0
    %v1744 = vadd.f32 %v1475, %v1743
    %v1745 = vpop.f32.mrf.mxu0
    %v1746 = vadd.f32 %v1479, %v1745
    %1747 = vmatmul.bf16.gmra.mxu0 %v1645
    %v1748 = vpop.f32.mrf.mxu0
    %v1749 = vadd.f32 %v1483, %v1748
    %v1750 = vpop.f32.mrf.mxu0
    %v1751 = vadd.f32 %v1487, %v1750
    %1752 = vmatmul.bf16.gmra.mxu0 %v1647
    %v1753 = vpop.f32.mrf.mxu0
    %v1754 = vadd.f32 %v1491, %v1753
    %v1755 = vpop.f32.mrf.mxu0
    %v1756 = vadd.f32 %v1495, %v1755
    %1757 = vmatmul.bf16.gmra.mxu0 %v1649
    %v1758 = vpop.f32.mrf.mxu0
    %v1759 = vadd.f32 %v1499, %v1758
    %v1760 = vpop.f32.mrf.mxu0
    %v1761 = vadd.f32 %v1503, %v1760
    %1762 = vmatmul.bf16.gmra.mxu0 %v1651
    %v1763 = vpop.f32.mrf.mxu0
    %v1764 = vadd.f32 %v1507, %v1763
    %v1765 = vpop.f32.mrf.mxu0
    %v1766 = vadd.f32 %v1511, %v1765
    %1767 = vmatmul.bf16.gmra.mxu0 %v1653
    %v1768 = vpop.f32.mrf.mxu0
    %v1769 = vadd.f32 %v1515, %v1768
    %v1770 = vpop.f32.mrf.mxu0
    %v1771 = vadd.f32 %v1519, %v1770
    %1772 = vmatmul.bf16.gmra.mxu0 %v1655
    %v1773 = vpop.f32.mrf.mxu0
    %v1774 = vadd.f32 %v1523, %v1773
    %v1775 = vpop.f32.mrf.mxu0
    %v1776 = vadd.f32 %v1527, %v1775
    %1777 = vdwg.mxu0
    %1778 = vmatpush.bf16.msra.mxu0 %v1400
    %1779 = vmatpush.bf16.msra.mxu0 %v1399
    %1780 = vmatpush.bf16.msra.mxu0 %v1398
    %1781 = vmatpush.bf16.msra.mxu0 %v1397
    %1782 = vmatpush.bf16.msra.mxu0 %v1396
    %1783 = vmatpush.bf16.msra.mxu0 %v1395
    %1784 = vmatpush.bf16.msra.mxu0 %v1394
    %1785 = vmatpush.bf16.msra.mxu0 %v1393
    %1786 = vmatmul.bf16.gmra.mxu0 %v1626
    %v1787 = vpop.f32.mrf.mxu0
    %v1788 = vadd.f32 %v1699, %v1787
    %v1789 = vpop.f32.mrf.mxu0
    %v1790 = vadd.f32 %v1701, %v1789
    %1791 = vmatmul.bf16.gmra.mxu0 %v1628
    %v1792 = vpop.f32.mrf.mxu0
    %v1793 = vadd.f32 %v1704, %v1792
    %v1794 = vpop.f32.mrf.mxu0
    %v1795 = vadd.f32 %v1706, %v1794
    %1796 = vmatmul.bf16.gmra.mxu0 %v1630
    %v1797 = vpop.f32.mrf.mxu0
    %v1798 = vadd.f32 %v1709, %v1797
    %v1799 = vpop.f32.mrf.mxu0
    %v1800 = vadd.f32 %v1711, %v1799
    %1801 = vmatmul.bf16.gmra.mxu0 %v1632
    %v1802 = vpop.f32.mrf.mxu0
    %v1803 = vadd.f32 %v1714, %v1802
    %v1804 = vpop.f32.mrf.mxu0
    %v1805 = vadd.f32 %v1716, %v1804
    %1806 = vmatmul.bf16.gmra.mxu0 %v1634
    %v1807 = vpop.f32.mrf.mxu0
    %v1808 = vadd.f32 %v1719, %v1807
    %v1809 = vpop.f32.mrf.mxu0
    %v1810 = vadd.f32 %v1721, %v1809
    %1811 = vmatmul.bf16.gmra.mxu0 %v1636
    %v1812 = vpop.f32.mrf.mxu0
    %v1813 = vadd.f32 %v1724, %v1812
    %v1814 = vpop.f32.mrf.mxu0
    %v1815 = vadd.f32 %v1726, %v1814
    %1816 = vmatmul.bf16.gmra.mxu0 %v1638
    %v1817 = vpop.f32.mrf.mxu0
    %v1818 = vadd.f32 %v1729, %v1817
    %v1819 = vpop.f32.mrf.mxu0
    %v1820 = vadd.f32 %v1731, %v1819
    %1821 = vmatmul.bf16.gmra.mxu0 %v1640
    %v1822 = vpop.f32.mrf.mxu0
    %v1823 = vadd.f32 %v1734, %v1822
    %v1824 = vpop.f32.mrf.mxu0
    %v1825 = vadd.f32 %v1736, %v1824
    %1826 = vmatmul.bf16.gmra.mxu0 %v1642
    %v1827 = vpop.f32.mrf.mxu0
    %v1828 = vadd.f32 %v1739, %v1827
    %v1829 = vpop.f32.mrf.mxu0
    %v1830 = vadd.f32 %v1741, %v1829
    %1831 = vmatmul.bf16.gmra.mxu0 %v1644
    %v1832 = vpop.f32.mrf.mxu0
    %v1833 = vadd.f32 %v1744, %v1832
    %v1834 = vpop.f32.mrf.mxu0
    %v1835 = vadd.f32 %v1746, %v1834
    %1836 = vmatmul.bf16.gmra.mxu0 %v1646
    %v1837 = vpop.f32.mrf.mxu0
    %v1838 = vadd.f32 %v1749, %v1837
    %v1839 = vpop.f32.mrf.mxu0
    %v1840 = vadd.f32 %v1751, %v1839
    %1841 = vmatmul.bf16.gmra.mxu0 %v1648
    %v1842 = vpop.f32.mrf.mxu0
    %v1843 = vadd.f32 %v1754, %v1842
    %v1844 = vpop.f32.mrf.mxu0
    %v1845 = vadd.f32 %v1756, %v1844
    %1846 = vmatmul.bf16.gmra.mxu0 %v1650
    %v1847 = vpop.f32.mrf.mxu0
    %v1848 = vadd.f32 %v1759, %v1847
    %v1849 = vpop.f32.mrf.mxu0
    %v1850 = vadd.f32 %v1761, %v1849
    %1851 = vmatmul.bf16.gmra.mxu0 %v1652
    %v1852 = vpop.f32.mrf.mxu0
    %v1853 = vadd.f32 %v1764, %v1852
    %v1854 = vpop.f32.mrf.mxu0
    %v1855 = vadd.f32 %v1766, %v1854
    %1856 = vmatmul.bf16.gmra.mxu0 %v1654
    %v1857 = vpop.f32.mrf.mxu0
    %v1858 = vadd.f32 %v1769, %v1857
    %v1859 = vpop.f32.mrf.mxu0
    %v1860 = vadd.f32 %v1771, %v1859
    %1861 = vmatmul.bf16.gmra.mxu0 %v1656
    %v1862 = vpop.f32.mrf.mxu0
    %v1863 = vadd.f32 %v1774, %v1862
    %v1864 = vpop.f32.mrf.mxu0
    %v1865 = vadd.f32 %v1776, %v1864
    %1866 = vdwg.mxu0
    %v1867 = vmax.f32 %v1788, 0.0
    %v1868 = vmax.f32 %v1790, 0.0
    %v1869 = vmax.f32 %v1793, 0.0
    %v1870 = vmax.f32 %v1795, 0.0
    %v1871 = vmax.f32 %v1798, 0.0
    %v1872 = vmax.f32 %v1800, 0.0
    %v1873 = vmax.f32 %v1803, 0.0
    %v1874 = vmax.f32 %v1805, 0.0
    %v1875 = vmax.f32 %v1808, 0.0
    %v1876 = vmax.f32 %v1810, 0.0
    %v1877 = vmax.f32 %v1813, 0.0
    %v1878 = vmax.f32 %v1815, 0.0
    %v1879 = vmax.f32 %v1818, 0.0
    %v1880 = vmax.f32 %v1820, 0.0
    %v1881 = vmax.f32 %v1823, 0.0
    %v1882 = vmax.f32 %v1825, 0.0
    %v1883 = vmax.f32 %v1828, 0.0
    %v1884 = vmax.f32 %v1830, 0.0
    %v1885 = vmax.f32 %v1833, 0.0
    %v1886 = vmax.f32 %v1835, 0.0
    %v1887 = vmax.f32 %v1838, 0.0
    %v1888 = vmax.f32 %v1840, 0.0
    %v1889 = vmax.f32 %v1843, 0.0
    %v1890 = vmax.f32 %v1845, 0.0
    %v1891 = vmax.f32 %v1848, 0.0
    %v1892 = vmax.f32 %v1850, 0.0
    %v1893 = vmax.f32 %v1853, 0.0
    %v1894 = vmax.f32 %v1855, 0.0
    %v1895 = vmax.f32 %v1858, 0.0
    %v1896 = vmax.f32 %v1860, 0.0
    %v1897 = vmax.f32 %v1863, 0.0
    %v1898 = vmax.f32 %v1865, 0.0
    %v1899 = vadd.f32 %v1320, %v1867
    %v1900 = vadd.f32 %v1321, %v1868
    %v1901 = vadd.f32 %v1322, %v1869
    %v1902 = vadd.f32 %v1323, %v1870
    %v1903 = vadd.f32 %v1324, %v1871
    %v1904 = vadd.f32 %v1325, %v1872
    %v1905 = vadd.f32 %v1326, %v1873
    %v1906 = vadd.f32 %v1327, %v1874
    %v1907 = vadd.f32 %v1328, %v1875
    %v1908 = vadd.f32 %v1329, %v1876
    %v1909 = vadd.f32 %v1330, %v1877
    %v1910 = vadd.f32 %v1331, %v1878
    %v1911 = vadd.f32 %v1332, %v1879
    %v1912 = vadd.f32 %v1333, %v1880
    %v1913 = vadd.f32 %v1334, %v1881
    %v1914 = vadd.f32 %v1335, %v1882
    %v1915 = vadd.f32 %v1336, %v1883
    %v1916 = vadd.f32 %v1337, %v1884
    %v1917 = vadd.f32 %v1338, %v1885
    %v1918 = vadd.f32 %v1339, %v1886
    %v1919 = vadd.f32 %v1340, %v1887
    %v1920 = vadd.f32 %v1341, %v1888
    %v1921 = vadd.f32 %v1342, %v1889
    %v1922 = vadd.f32 %v1343, %v1890
    %v1923 = vadd.f32 %v1344, %v1891
    %v1924 = vadd.f32 %v1345, %v1892
    %v1925 = vadd.f32 %v1346, %v1893
    %v1926 = vadd.f32 %v1347, %v1894
    %v1927 = vadd.f32 %v1348, %v1895
    %v1928 = vadd.f32 %v1349, %v1896
    %v1929 = vadd.f32 %v1350, %v1897
    %v1930 = vadd.f32 %v1351, %v1898
    %s1931 = scalar_lea.vmem [#allocation2], 512
    %v1932 = vld [vmem:[%s1931] sm:$0xff]
    %v1933 = vld [vmem:[%s1931 + $0x8] sm:$0xff]
    %v1934 = vld [vmem:[%s1931 + $0x10] sm:$0xff]
    %v1935 = vld [vmem:[%s1931 + $0x18] sm:$0xff]
    %v1936 = vld [vmem:[%s1931 + $0x20] sm:$0xff]
    %v1937 = vld [vmem:[%s1931 + $0x28] sm:$0xff]
    %v1938 = vld [vmem:[%s1931 + $0x30] sm:$0xff]
    %v1939 = vld [vmem:[%s1931 + $0x38] sm:$0xff]
    %v1940 = vld [vmem:[%s1931 + $0x40] sm:$0xff]
    %v1941 = vld [vmem:[%s1931 + $0x48] sm:$0xff]
    %v1942 = vld [vmem:[%s1931 + $0x50] sm:$0xff]
    %v1943 = vld [vmem:[%s1931 + $0x58] sm:$0xff]
    %v1944 = vld [vmem:[%s1931 + $0x60] sm:$0xff]
    %v1945 = vld [vmem:[%s1931 + $0x68] sm:$0xff]
    %v1946 = vld [vmem:[%s1931 + $0x70] sm:$0xff]
    %v1947 = vld [vmem:[%s1931 + $0x78] sm:$0xff]
    %v1948 = vld [vmem:[%s1931 + $0x80] sm:$0xff]
    %v1949 = vld [vmem:[%s1931 + $0x88] sm:$0xff]
    %v1950 = vld [vmem:[%s1931 + $0x90] sm:$0xff]
    %v1951 = vld [vmem:[%s1931 + $0x98] sm:$0xff]
    %v1952 = vld [vmem:[%s1931 + $0xa0] sm:$0xff]
    %v1953 = vld [vmem:[%s1931 + $0xa8] sm:$0xff]
    %v1954 = vld [vmem:[%s1931 + $0xb0] sm:$0xff]
    %v1955 = vld [vmem:[%s1931 + $0xb8] sm:$0xff]
    %v1956 = vld [vmem:[%s1931 + $0xc0] sm:$0xff]
    %v1957 = vld [vmem:[%s1931 + $0xc8] sm:$0xff]
    %v1958 = vld [vmem:[%s1931 + $0xd0] sm:$0xff]
    %v1959 = vld [vmem:[%s1931 + $0xd8] sm:$0xff]
    %v1960 = vld [vmem:[%s1931 + $0xe0] sm:$0xff]
    %v1961 = vld [vmem:[%s1931 + $0xe8] sm:$0xff]
    %v1962 = vld [vmem:[%s1931 + $0xf0] sm:$0xff]
    %v1963 = vld [vmem:[%s1931 + $0xf8] sm:$0xff]
    %v1964 = vpack.c.bf16 %v1900, %v1899
    %v1965 = vpack.c.bf16 %v1902, %v1901
    %v1966 = vpack.c.bf16 %v1904, %v1903
    %v1967 = vpack.c.bf16 %v1906, %v1905
    %v1968 = vpack.c.bf16 %v1908, %v1907
    %v1969 = vpack.c.bf16 %v1910, %v1909
    %v1970 = vpack.c.bf16 %v1912, %v1911
    %v1971 = vpack.c.bf16 %v1914, %v1913
    %v1972 = vpack.c.bf16 %v1916, %v1915
    %v1973 = vpack.c.bf16 %v1918, %v1917
    %v1974 = vpack.c.bf16 %v1920, %v1919
    %v1975 = vpack.c.bf16 %v1922, %v1921
    %v1976 = vpack.c.bf16 %v1924, %v1923
    %v1977 = vpack.c.bf16 %v1926, %v1925
    %v1978 = vpack.c.bf16 %v1928, %v1927
    %v1979 = vpack.c.bf16 %v1930, %v1929
    %1980 = vset.pattern.permute.xlu0 3
    %1981 = vperm.xlu0 %1980, %v116
    %v1982 = vpop.permute.xlu0 %1981
    %1984 = vset.pattern.permute.xlu0 3
    %1985 = vperm.xlu0 %1984, %v117
    %v1986 = vpop.permute.xlu0 %1985
    %1988 = vset.pattern.permute.xlu0 3
    %1989 = vperm.xlu0 %1988, %v118
    %v1990 = vpop.permute.xlu0 %1989
    %1992 = vset.pattern.permute.xlu0 3
    %1993 = vperm.xlu0 %1992, %v119
    %v1994 = vpop.permute.xlu0 %1993
    %1996 = vset.pattern.permute.xlu0 3
    %1997 = vperm.xlu0 %1996, %v120
    %v1998 = vpop.permute.xlu0 %1997
    %2000 = vset.pattern.permute.xlu0 3
    %2001 = vperm.xlu0 %2000, %v121
    %v2002 = vpop.permute.xlu0 %2001
    %2004 = vset.pattern.permute.xlu0 3
    %2005 = vperm.xlu0 %2004, %v122
    %v2006 = vpop.permute.xlu0 %2005
    %2008 = vset.pattern.permute.xlu0 3
    %2009 = vperm.xlu0 %2008, %v123
    %v2010 = vpop.permute.xlu0 %2009
    %2012 = vset.pattern.permute.xlu0 3
    %2013 = vperm.xlu0 %2012, %v124
    %v2014 = vpop.permute.xlu0 %2013
    %2016 = vset.pattern.permute.xlu0 3
    %2017 = vperm.xlu0 %2016, %v125
    %v2018 = vpop.permute.xlu0 %2017
    %2020 = vset.pattern.permute.xlu0 3
    %2021 = vperm.xlu0 %2020, %v126
    %v2022 = vpop.permute.xlu0 %2021
    %2024 = vset.pattern.permute.xlu0 3
    %2025 = vperm.xlu0 %2024, %v127
    %v2026 = vpop.permute.xlu0 %2025
    %2028 = vset.pattern.permute.xlu0 3
    %2029 = vperm.xlu0 %2028, %v128
    %v2030 = vpop.permute.xlu0 %2029
    %2032 = vset.pattern.permute.xlu0 3
    %2033 = vperm.xlu0 %2032, %v129
    %v2034 = vpop.permute.xlu0 %2033
    %2036 = vset.pattern.permute.xlu0 3
    %2037 = vperm.xlu0 %2036, %v130
    %v2038 = vpop.permute.xlu0 %2037
    %2040 = vset.pattern.permute.xlu0 3
    %2041 = vperm.xlu0 %2040, %v131
    %v2042 = vpop.permute.xlu0 %2041
    %2044 = vset.pattern.permute.xlu0 3
    %2045 = vperm.xlu0 %2044, %v132
    %v2046 = vpop.permute.xlu0 %2045
    %2048 = vset.pattern.permute.xlu0 3
    %2049 = vperm.xlu0 %2048, %v133
    %v2050 = vpop.permute.xlu0 %2049
    %2052 = vset.pattern.permute.xlu0 3
    %2053 = vperm.xlu0 %2052, %v134
    %v2054 = vpop.permute.xlu0 %2053
    %2056 = vset.pattern.permute.xlu0 3
    %2057 = vperm.xlu0 %2056, %v135
    %v2058 = vpop.permute.xlu0 %2057
    %2060 = vset.pattern.permute.xlu0 3
    %2061 = vperm.xlu0 %2060, %v136
    %v2062 = vpop.permute.xlu0 %2061
    %2064 = vset.pattern.permute.xlu0 3
    %2065 = vperm.xlu0 %2064, %v137
    %v2066 = vpop.permute.xlu0 %2065
    %2068 = vset.pattern.permute.xlu0 3
    %2069 = vperm.xlu0 %2068, %v138
    %v2070 = vpop.permute.xlu0 %2069
    %2072 = vset.pattern.permute.xlu0 3
    %2073 = vperm.xlu0 %2072, %v139
    %v2074 = vpop.permute.xlu0 %2073
    %2076 = vset.pattern.permute.xlu0 3
    %2077 = vperm.xlu0 %2076, %v140
    %v2078 = vpop.permute.xlu0 %2077
    %2080 = vset.pattern.permute.xlu0 3
    %2081 = vperm.xlu0 %2080, %v141
    %v2082 = vpop.permute.xlu0 %2081
    %2084 = vset.pattern.permute.xlu0 3
    %2085 = vperm.xlu0 %2084, %v142
    %v2086 = vpop.permute.xlu0 %2085
    %2088 = vset.pattern.permute.xlu0 3
    %2089 = vperm.xlu0 %2088, %v143
    %v2090 = vpop.permute.xlu0 %2089
    %2092 = vset.pattern.permute.xlu0 3
    %2093 = vperm.xlu0 %2092, %v144
    %v2094 = vpop.permute.xlu0 %2093
    %2096 = vset.pattern.permute.xlu0 3
    %2097 = vperm.xlu0 %2096, %v145
    %v2098 = vpop.permute.xlu0 %2097
    %2100 = vset.pattern.permute.xlu0 3
    %2101 = vperm.xlu0 %2100, %v146
    %v2102 = vpop.permute.xlu0 %2101
    %2104 = vset.pattern.permute.xlu0 3
    %2105 = vperm.xlu0 %2104, %v147
    %v2106 = vpop.permute.xlu0 %2105
    %v2140 = vunpack.c.l.b16 %v1932
    %v2141 = vunpack.c.h.b16 %v1932
    %v2142 = vunpack.c.l.b16 %v1933
    %v2143 = vunpack.c.h.b16 %v1933
    %v2144 = vunpack.c.l.b16 %v1934
    %v2145 = vunpack.c.h.b16 %v1934
    %v2146 = vunpack.c.l.b16 %v1935
    %v2147 = vunpack.c.h.b16 %v1935
    %v2148 = vunpack.c.l.b16 %v1936
    %v2149 = vunpack.c.h.b16 %v1936
    %v2150 = vunpack.c.l.b16 %v1937
    %v2151 = vunpack.c.h.b16 %v1937
    %v2152 = vunpack.c.l.b16 %v1938
    %v2153 = vunpack.c.h.b16 %v1938
    %v2154 = vunpack.c.l.b16 %v1939
    %v2155 = vunpack.c.h.b16 %v1939
    %v2156 = vunpack.c.l.b16 %v1940
    %v2157 = vunpack.c.h.b16 %v1940
    %v2158 = vunpack.c.l.b16 %v1941
    %v2159 = vunpack.c.h.b16 %v1941
    %v2160 = vunpack.c.l.b16 %v1942
    %v2161 = vunpack.c.h.b16 %v1942
    %v2162 = vunpack.c.l.b16 %v1943
    %v2163 = vunpack.c.h.b16 %v1943
    %v2164 = vunpack.c.l.b16 %v1944
    %v2165 = vunpack.c.h.b16 %v1944
    %v2166 = vunpack.c.l.b16 %v1945
    %v2167 = vunpack.c.h.b16 %v1945
    %v2168 = vunpack.c.l.b16 %v1946
    %v2169 = vunpack.c.h.b16 %v1946
    %v2170 = vunpack.c.l.b16 %v1947
    %v2171 = vunpack.c.h.b16 %v1947
    %v2172 = vunpack.c.l.b16 %v1948
    %v2173 = vunpack.c.h.b16 %v1948
    %v2174 = vunpack.c.l.b16 %v1949
    %v2175 = vunpack.c.h.b16 %v1949
    %v2176 = vunpack.c.l.b16 %v1950
    %v2177 = vunpack.c.h.b16 %v1950
    %v2178 = vunpack.c.l.b16 %v1951
    %v2179 = vunpack.c.h.b16 %v1951
    %v2180 = vunpack.c.l.b16 %v1952
    %v2181 = vunpack.c.h.b16 %v1952
    %v2182 = vunpack.c.l.b16 %v1953
    %v2183 = vunpack.c.h.b16 %v1953
    %v2184 = vunpack.c.l.b16 %v1954
    %v2185 = vunpack.c.h.b16 %v1954
    %v2186 = vunpack.c.l.b16 %v1955
    %v2187 = vunpack.c.h.b16 %v1955
    %v2188 = vunpack.c.l.b16 %v1956
    %v2189 = vunpack.c.h.b16 %v1956
    %v2190 = vunpack.c.l.b16 %v1957
    %v2191 = vunpack.c.h.b16 %v1957
    %v2192 = vunpack.c.l.b16 %v1958
    %v2193 = vunpack.c.h.b16 %v1958
    %v2194 = vunpack.c.l.b16 %v1959
    %v2195 = vunpack.c.h.b16 %v1959
    %v2196 = vunpack.c.l.b16 %v1960
    %v2197 = vunpack.c.h.b16 %v1960
    %v2198 = vunpack.c.l.b16 %v1961
    %v2199 = vunpack.c.h.b16 %v1961
    %v2200 = vunpack.c.l.b16 %v1962
    %v2201 = vunpack.c.h.b16 %v1962
    %v2202 = vunpack.c.l.b16 %v1963
    %v2203 = vunpack.c.h.b16 %v1963
    %v2204 = vpack.c.b16 %v2142, %v2140
    %v2205 = vpack.c.b16 %v2143, %v2141
    %v2206 = vpack.c.b16 %v2146, %v2144
    %v2207 = vpack.c.b16 %v2147, %v2145
    %v2208 = vpack.c.b16 %v2150, %v2148
    %v2209 = vpack.c.b16 %v2151, %v2149
    %v2210 = vpack.c.b16 %v2154, %v2152
    %v2211 = vpack.c.b16 %v2155, %v2153
    %v2212 = vpack.c.b16 %v2158, %v2156
    %v2213 = vpack.c.b16 %v2159, %v2157
    %v2214 = vpack.c.b16 %v2162, %v2160
    %v2215 = vpack.c.b16 %v2163, %v2161
    %v2216 = vpack.c.b16 %v2166, %v2164
    %v2217 = vpack.c.b16 %v2167, %v2165
    %v2218 = vpack.c.b16 %v2170, %v2168
    %v2219 = vpack.c.b16 %v2171, %v2169
    %v2220 = vpack.c.b16 %v2174, %v2172
    %v2221 = vpack.c.b16 %v2175, %v2173
    %v2222 = vpack.c.b16 %v2178, %v2176
    %v2223 = vpack.c.b16 %v2179, %v2177
    %v2224 = vpack.c.b16 %v2182, %v2180
    %v2225 = vpack.c.b16 %v2183, %v2181
    %v2226 = vpack.c.b16 %v2186, %v2184
    %v2227 = vpack.c.b16 %v2187, %v2185
    %v2228 = vpack.c.b16 %v2190, %v2188
    %v2229 = vpack.c.b16 %v2191, %v2189
    %v2230 = vpack.c.b16 %v2194, %v2192
    %v2231 = vpack.c.b16 %v2195, %v2193
    %v2232 = vpack.c.b16 %v2198, %v2196
    %v2233 = vpack.c.b16 %v2199, %v2197
    %v2234 = vpack.c.b16 %v2202, %v2200
    %v2235 = vpack.c.b16 %v2203, %v2201
    %2268 = vmatpush.bf16.msra.mxu0 %v1971
    %2269 = vmatpush.bf16.msra.mxu0 %v1970
    %2270 = vmatpush.bf16.msra.mxu0 %v1969
    %2271 = vmatpush.bf16.msra.mxu0 %v1968
    %2272 = vmatpush.bf16.msra.mxu0 %v1967
    %2273 = vmatpush.bf16.msra.mxu0 %v1966
    %2274 = vmatpush.bf16.msra.mxu0 %v1965
    %2275 = vmatpush.bf16.msra.mxu0 %v1964
    %2276 = vmatmul.bf16.gmra.mxu0 %v2204
    %v2277 = vpop.f32.mrf.mxu0
    %v2278 = vadd.f32 %v1982, %v2277
    %v2279 = vpop.f32.mrf.mxu0
    %v2280 = vadd.f32 %v1986, %v2279
    %2281 = vmatmul.bf16.gmra.mxu0 %v2206
    %v2282 = vpop.f32.mrf.mxu0
    %v2283 = vadd.f32 %v1990, %v2282
    %v2284 = vpop.f32.mrf.mxu0
    %v2285 = vadd.f32 %v1994, %v2284
    %2286 = vmatmul.bf16.gmra.mxu0 %v2208
    %v2287 = vpop.f32.mrf.mxu0
    %v2288 = vadd.f32 %v1998, %v2287
    %v2289 = vpop.f32.mrf.mxu0
    %v2290 = vadd.f32 %v2002, %v2289
    %2291 = vmatmul.bf16.gmra.mxu0 %v2210
    %v2292 = vpop.f32.mrf.mxu0
    %v2293 = vadd.f32 %v2006, %v2292
    %v2294 = vpop.f32.mrf.mxu0
    %v2295 = vadd.f32 %v2010, %v2294
    %2296 = vmatmul.bf16.gmra.mxu0 %v2212
    %v2297 = vpop.f32.mrf.mxu0
    %v2298 = vadd.f32 %v2014, %v2297
    %v2299 = vpop.f32.mrf.mxu0
    %v2300 = vadd.f32 %v2018, %v2299
    %2301 = vmatmul.bf16.gmra.mxu0 %v2214
    %v2302 = vpop.f32.mrf.mxu0
    %v2303 = vadd.f32 %v2022, %v2302
    %v2304 = vpop.f32.mrf.mxu0
    %v2305 = vadd.f32 %v2026, %v2304
    %2306 = vmatmul.bf16.gmra.mxu0 %v2216
    %v2307 = vpop.f32.mrf.mxu0
    %v2308 = vadd.f32 %v2030, %v2307
    %v2309 = vpop.f32.mrf.mxu0
    %v2310 = vadd.f32 %v2034, %v2309
    %2311 = vmatmul.bf16.gmra.mxu0 %v2218
    %v2312 = vpop.f32.mrf.mxu0
    %v2313 = vadd.f32 %v2038, %v2312
    %v2314 = vpop.f32.mrf.mxu0
    %v2315 = vadd.f32 %v2042, %v2314
    %2316 = vmatmul.bf16.gmra.mxu0 %v2220
    %v2317 = vpop.f32.mrf.mxu0
    %v2318 = vadd.f32 %v2046, %v2317
    %v2319 = vpop.f32.mrf.mxu0
    %v2320 = vadd.f32 %v2050, %v2319
    %2321 = vmatmul.bf16.gmra.mxu0 %v2222
    %v2322 = vpop.f32.mrf.mxu0
    %v2323 = vadd.f32 %v2054, %v2322
    %v2324 = vpop.f32.mrf.mxu0
    %v2325 = vadd.f32 %v2058, %v2324
    %2326 = vmatmul.bf16.gmra.mxu0 %v2224
    %v2327 = vpop.f32.mrf.mxu0
    %v2328 = vadd.f32 %v2062, %v2327
    %v2329 = vpop.f32.mrf.mxu0
    %v2330 = vadd.f32 %v2066, %v2329
    %2331 = vmatmul.bf16.gmra.mxu0 %v2226
    %v2332 = vpop.f32.mrf.mxu0
    %v2333 = vadd.f32 %v2070, %v2332
    %v2334 = vpop.f32.mrf.mxu0
    %v2335 = vadd.f32 %v2074, %v2334
    %2336 = vmatmul.bf16.gmra.mxu0 %v2228
    %v2337 = vpop.f32.mrf.mxu0
    %v2338 = vadd.f32 %v2078, %v2337
    %v2339 = vpop.f32.mrf.mxu0
    %v2340 = vadd.f32 %v2082, %v2339
    %2341 = vmatmul.bf16.gmra.mxu0 %v2230
    %v2342 = vpop.f32.mrf.mxu0
    %v2343 = vadd.f32 %v2086, %v2342
    %v2344 = vpop.f32.mrf.mxu0
    %v2345 = vadd.f32 %v2090, %v2344
    %2346 = vmatmul.bf16.gmra.mxu0 %v2232
    %v2347 = vpop.f32.mrf.mxu0
    %v2348 = vadd.f32 %v2094, %v2347
    %v2349 = vpop.f32.mrf.mxu0
    %v2350 = vadd.f32 %v2098, %v2349
    %2351 = vmatmul.bf16.gmra.mxu0 %v2234
    %v2352 = vpop.f32.mrf.mxu0
    %v2353 = vadd.f32 %v2102, %v2352
    %v2354 = vpop.f32.mrf.mxu0
    %v2355 = vadd.f32 %v2106, %v2354
    %2356 = vdwg.mxu0
    %2357 = vmatpush.bf16.msra.mxu0 %v1979
    %2358 = vmatpush.bf16.msra.mxu0 %v1978
    %2359 = vmatpush.bf16.msra.mxu0 %v1977
    %2360 = vmatpush.bf16.msra.mxu0 %v1976
    %2361 = vmatpush.bf16.msra.mxu0 %v1975
    %2362 = vmatpush.bf16.msra.mxu0 %v1974
    %2363 = vmatpush.bf16.msra.mxu0 %v1973
    %2364 = vmatpush.bf16.msra.mxu0 %v1972
    %2365 = vmatmul.bf16.gmra.mxu0 %v2205
    %v2366 = vpop.f32.mrf.mxu0
    %v2367 = vadd.f32 %v2278, %v2366
    %v2368 = vpop.f32.mrf.mxu0
    %v2369 = vadd.f32 %v2280, %v2368
    %2370 = vmatmul.bf16.gmra.mxu0 %v2207
    %v2371 = vpop.f32.mrf.mxu0
    %v2372 = vadd.f32 %v2283, %v2371
    %v2373 = vpop.f32.mrf.mxu0
    %v2374 = vadd.f32 %v2285, %v2373
    %2375 = vmatmul.bf16.gmra.mxu0 %v2209
    %v2376 = vpop.f32.mrf.mxu0
    %v2377 = vadd.f32 %v2288, %v2376
    %v2378 = vpop.f32.mrf.mxu0
    %v2379 = vadd.f32 %v2290, %v2378
    %2380 = vmatmul.bf16.gmra.mxu0 %v2211
    %v2381 = vpop.f32.mrf.mxu0
    %v2382 = vadd.f32 %v2293, %v2381
    %v2383 = vpop.f32.mrf.mxu0
    %v2384 = vadd.f32 %v2295, %v2383
    %2385 = vmatmul.bf16.gmra.mxu0 %v2213
    %v2386 = vpop.f32.mrf.mxu0
    %v2387 = vadd.f32 %v2298, %v2386
    %v2388 = vpop.f32.mrf.mxu0
    %v2389 = vadd.f32 %v2300, %v2388
    %2390 = vmatmul.bf16.gmra.mxu0 %v2215
    %v2391 = vpop.f32.mrf.mxu0
    %v2392 = vadd.f32 %v2303, %v2391
    %v2393 = vpop.f32.mrf.mxu0
    %v2394 = vadd.f32 %v2305, %v2393
    %2395 = vmatmul.bf16.gmra.mxu0 %v2217
    %v2396 = vpop.f32.mrf.mxu0
    %v2397 = vadd.f32 %v2308, %v2396
    %v2398 = vpop.f32.mrf.mxu0
    %v2399 = vadd.f32 %v2310, %v2398
    %2400 = vmatmul.bf16.gmra.mxu0 %v2219
    %v2401 = vpop.f32.mrf.mxu0
    %v2402 = vadd.f32 %v2313, %v2401
    %v2403 = vpop.f32.mrf.mxu0
    %v2404 = vadd.f32 %v2315, %v2403
    %2405 = vmatmul.bf16.gmra.mxu0 %v2221
    %v2406 = vpop.f32.mrf.mxu0
    %v2407 = vadd.f32 %v2318, %v2406
    %v2408 = vpop.f32.mrf.mxu0
    %v2409 = vadd.f32 %v2320, %v2408
    %2410 = vmatmul.bf16.gmra.mxu0 %v2223
    %v2411 = vpop.f32.mrf.mxu0
    %v2412 = vadd.f32 %v2323, %v2411
    %v2413 = vpop.f32.mrf.mxu0
    %v2414 = vadd.f32 %v2325, %v2413
    %2415 = vmatmul.bf16.gmra.mxu0 %v2225
    %v2416 = vpop.f32.mrf.mxu0
    %v2417 = vadd.f32 %v2328, %v2416
    %v2418 = vpop.f32.mrf.mxu0
    %v2419 = vadd.f32 %v2330, %v2418
    %2420 = vmatmul.bf16.gmra.mxu0 %v2227
    %v2421 = vpop.f32.mrf.mxu0
    %v2422 = vadd.f32 %v2333, %v2421
    %v2423 = vpop.f32.mrf.mxu0
    %v2424 = vadd.f32 %v2335, %v2423
    %2425 = vmatmul.bf16.gmra.mxu0 %v2229
    %v2426 = vpop.f32.mrf.mxu0
    %v2427 = vadd.f32 %v2338, %v2426
    %v2428 = vpop.f32.mrf.mxu0
    %v2429 = vadd.f32 %v2340, %v2428
    %2430 = vmatmul.bf16.gmra.mxu0 %v2231
    %v2431 = vpop.f32.mrf.mxu0
    %v2432 = vadd.f32 %v2343, %v2431
    %v2433 = vpop.f32.mrf.mxu0
    %v2434 = vadd.f32 %v2345, %v2433
    %2435 = vmatmul.bf16.gmra.mxu0 %v2233
    %v2436 = vpop.f32.mrf.mxu0
    %v2437 = vadd.f32 %v2348, %v2436
    %v2438 = vpop.f32.mrf.mxu0
    %v2439 = vadd.f32 %v2350, %v2438
    %2440 = vmatmul.bf16.gmra.mxu0 %v2235
    %v2441 = vpop.f32.mrf.mxu0
    %v2442 = vadd.f32 %v2353, %v2441
    %v2443 = vpop.f32.mrf.mxu0
    %v2444 = vadd.f32 %v2355, %v2443
    %2445 = vdwg.mxu0
    %v2446 = vmax.f32 %v2367, 0.0
    %v2447 = vmax.f32 %v2369, 0.0
    %v2448 = vmax.f32 %v2372, 0.0
    %v2449 = vmax.f32 %v2374, 0.0
    %v2450 = vmax.f32 %v2377, 0.0
    %v2451 = vmax.f32 %v2379, 0.0
    %v2452 = vmax.f32 %v2382, 0.0
    %v2453 = vmax.f32 %v2384, 0.0
    %v2454 = vmax.f32 %v2387, 0.0
    %v2455 = vmax.f32 %v2389, 0.0
    %v2456 = vmax.f32 %v2392, 0.0
    %v2457 = vmax.f32 %v2394, 0.0
    %v2458 = vmax.f32 %v2397, 0.0
    %v2459 = vmax.f32 %v2399, 0.0
    %v2460 = vmax.f32 %v2402, 0.0
    %v2461 = vmax.f32 %v2404, 0.0
    %v2462 = vmax.f32 %v2407, 0.0
    %v2463 = vmax.f32 %v2409, 0.0
    %v2464 = vmax.f32 %v2412, 0.0
    %v2465 = vmax.f32 %v2414, 0.0
    %v2466 = vmax.f32 %v2417, 0.0
    %v2467 = vmax.f32 %v2419, 0.0
    %v2468 = vmax.f32 %v2422, 0.0
    %v2469 = vmax.f32 %v2424, 0.0
    %v2470 = vmax.f32 %v2427, 0.0
    %v2471 = vmax.f32 %v2429, 0.0
    %v2472 = vmax.f32 %v2432, 0.0
    %v2473 = vmax.f32 %v2434, 0.0
    %v2474 = vmax.f32 %v2437, 0.0
    %v2475 = vmax.f32 %v2439, 0.0
    %v2476 = vmax.f32 %v2442, 0.0
    %v2477 = vmax.f32 %v2444, 0.0
    %v2478 = vadd.f32 %v1899, %v2446
    %v2479 = vadd.f32 %v1900, %v2447
    %v2480 = vadd.f32 %v1901, %v2448
    %v2481 = vadd.f32 %v1902, %v2449
    %v2482 = vadd.f32 %v1903, %v2450
    %v2483 = vadd.f32 %v1904, %v2451
    %v2484 = vadd.f32 %v1905, %v2452
    %v2485 = vadd.f32 %v1906, %v2453
    %v2486 = vadd.f32 %v1907, %v2454
    %v2487 = vadd.f32 %v1908, %v2455
    %v2488 = vadd.f32 %v1909, %v2456
    %v2489 = vadd.f32 %v1910, %v2457
    %v2490 = vadd.f32 %v1911, %v2458
    %v2491 = vadd.f32 %v1912, %v2459
    %v2492 = vadd.f32 %v1913, %v2460
    %v2493 = vadd.f32 %v1914, %v2461
    %v2494 = vadd.f32 %v1915, %v2462
    %v2495 = vadd.f32 %v1916, %v2463
    %v2496 = vadd.f32 %v1917, %v2464
    %v2497 = vadd.f32 %v1918, %v2465
    %v2498 = vadd.f32 %v1919, %v2466
    %v2499 = vadd.f32 %v1920, %v2467
    %v2500 = vadd.f32 %v1921, %v2468
    %v2501 = vadd.f32 %v1922, %v2469
    %v2502 = vadd.f32 %v1923, %v2470
    %v2503 = vadd.f32 %v1924, %v2471
    %v2504 = vadd.f32 %v1925, %v2472
    %v2505 = vadd.f32 %v1926, %v2473
    %v2506 = vadd.f32 %v1927, %v2474
    %v2507 = vadd.f32 %v1928, %v2475
    %v2508 = vadd.f32 %v1929, %v2476
    %v2509 = vadd.f32 %v1930, %v2477
    %s2510 = scalar_lea.vmem [#allocation2], 768
    %v2511 = vld [vmem:[%s2510] sm:$0xff]
    %v2512 = vld [vmem:[%s2510 + $0x8] sm:$0xff]
    %v2513 = vld [vmem:[%s2510 + $0x10] sm:$0xff]
    %v2514 = vld [vmem:[%s2510 + $0x18] sm:$0xff]
    %v2515 = vld [vmem:[%s2510 + $0x20] sm:$0xff]
    %v2516 = vld [vmem:[%s2510 + $0x28] sm:$0xff]
    %v2517 = vld [vmem:[%s2510 + $0x30] sm:$0xff]
    %v2518 = vld [vmem:[%s2510 + $0x38] sm:$0xff]
    %v2519 = vld [vmem:[%s2510 + $0x40] sm:$0xff]
    %v2520 = vld [vmem:[%s2510 + $0x48] sm:$0xff]
    %v2521 = vld [vmem:[%s2510 + $0x50] sm:$0xff]
    %v2522 = vld [vmem:[%s2510 + $0x58] sm:$0xff]
    %v2523 = vld [vmem:[%s2510 + $0x60] sm:$0xff]
    %v2524 = vld [vmem:[%s2510 + $0x68] sm:$0xff]
    %v2525 = vld [vmem:[%s2510 + $0x70] sm:$0xff]
    %v2526 = vld [vmem:[%s2510 + $0x78] sm:$0xff]
    %v2527 = vld [vmem:[%s2510 + $0x80] sm:$0xff]
    %v2528 = vld [vmem:[%s2510 + $0x88] sm:$0xff]
    %v2529 = vld [vmem:[%s2510 + $0x90] sm:$0xff]
    %v2530 = vld [vmem:[%s2510 + $0x98] sm:$0xff]
    %v2531 = vld [vmem:[%s2510 + $0xa0] sm:$0xff]
    %v2532 = vld [vmem:[%s2510 + $0xa8] sm:$0xff]
    %v2533 = vld [vmem:[%s2510 + $0xb0] sm:$0xff]
    %v2534 = vld [vmem:[%s2510 + $0xb8] sm:$0xff]
    %v2535 = vld [vmem:[%s2510 + $0xc0] sm:$0xff]
    %v2536 = vld [vmem:[%s2510 + $0xc8] sm:$0xff]
    %v2537 = vld [vmem:[%s2510 + $0xd0] sm:$0xff]
    %v2538 = vld [vmem:[%s2510 + $0xd8] sm:$0xff]
    %v2539 = vld [vmem:[%s2510 + $0xe0] sm:$0xff]
    %v2540 = vld [vmem:[%s2510 + $0xe8] sm:$0xff]
    %v2541 = vld [vmem:[%s2510 + $0xf0] sm:$0xff]
    %v2542 = vld [vmem:[%s2510 + $0xf8] sm:$0xff]
    %v2543 = vpack.c.bf16 %v2479, %v2478
    %v2544 = vpack.c.bf16 %v2481, %v2480
    %v2545 = vpack.c.bf16 %v2483, %v2482
    %v2546 = vpack.c.bf16 %v2485, %v2484
    %v2547 = vpack.c.bf16 %v2487, %v2486
    %v2548 = vpack.c.bf16 %v2489, %v2488
    %v2549 = vpack.c.bf16 %v2491, %v2490
    %v2550 = vpack.c.bf16 %v2493, %v2492
    %v2551 = vpack.c.bf16 %v2495, %v2494
    %v2552 = vpack.c.bf16 %v2497, %v2496
    %v2553 = vpack.c.bf16 %v2499, %v2498
    %v2554 = vpack.c.bf16 %v2501, %v2500
    %v2555 = vpack.c.bf16 %v2503, %v2502
    %v2556 = vpack.c.bf16 %v2505, %v2504
    %v2557 = vpack.c.bf16 %v2507, %v2506
    %v2558 = vpack.c.bf16 %v2509, %v2508
    %2559 = vset.pattern.permute.xlu0 4
    %2560 = vperm.xlu0 %2559, %v116
    %v2561 = vpop.permute.xlu0 %2560
    %2563 = vset.pattern.permute.xlu0 4
    %2564 = vperm.xlu0 %2563, %v117
    %v2565 = vpop.permute.xlu0 %2564
    %2567 = vset.pattern.permute.xlu0 4
    %2568 = vperm.xlu0 %2567, %v118
    %v2569 = vpop.permute.xlu0 %2568
    %2571 = vset.pattern.permute.xlu0 4
    %2572 = vperm.xlu0 %2571, %v119
    %v2573 = vpop.permute.xlu0 %2572
    %2575 = vset.pattern.permute.xlu0 4
    %2576 = vperm.xlu0 %2575, %v120
    %v2577 = vpop.permute.xlu0 %2576
    %2579 = vset.pattern.permute.xlu0 4
    %2580 = vperm.xlu0 %2579, %v121
    %v2581 = vpop.permute.xlu0 %2580
    %2583 = vset.pattern.permute.xlu0 4
    %2584 = vperm.xlu0 %2583, %v122
    %v2585 = vpop.permute.xlu0 %2584
    %2587 = vset.pattern.permute.xlu0 4
    %2588 = vperm.xlu0 %2587, %v123
    %v2589 = vpop.permute.xlu0 %2588
    %2591 = vset.pattern.permute.xlu0 4
    %2592 = vperm.xlu0 %2591, %v124
    %v2593 = vpop.permute.xlu0 %2592
    %2595 = vset.pattern.permute.xlu0 4
    %2596 = vperm.xlu0 %2595, %v125
    %v2597 = vpop.permute.xlu0 %2596
    %2599 = vset.pattern.permute.xlu0 4
    %2600 = vperm.xlu0 %2599, %v126
    %v2601 = vpop.permute.xlu0 %2600
    %2603 = vset.pattern.permute.xlu0 4
    %2604 = vperm.xlu0 %2603, %v127
    %v2605 = vpop.permute.xlu0 %2604
    %2607 = vset.pattern.permute.xlu0 4
    %2608 = vperm.xlu0 %2607, %v128
    %v2609 = vpop.permute.xlu0 %2608
    %2611 = vset.pattern.permute.xlu0 4
    %2612 = vperm.xlu0 %2611, %v129
    %v2613 = vpop.permute.xlu0 %2612
    %2615 = vset.pattern.permute.xlu0 4
    %2616 = vperm.xlu0 %2615, %v130
    %v2617 = vpop.permute.xlu0 %2616
    %2619 = vset.pattern.permute.xlu0 4
    %2620 = vperm.xlu0 %2619, %v131
    %v2621 = vpop.permute.xlu0 %2620
    %2623 = vset.pattern.permute.xlu0 4
    %2624 = vperm.xlu0 %2623, %v132
    %v2625 = vpop.permute.xlu0 %2624
    %2627 = vset.pattern.permute.xlu0 4
    %2628 = vperm.xlu0 %2627, %v133
    %v2629 = vpop.permute.xlu0 %2628
    %2631 = vset.pattern.permute.xlu0 4
    %2632 = vperm.xlu0 %2631, %v134
    %v2633 = vpop.permute.xlu0 %2632
    %2635 = vset.pattern.permute.xlu0 4
    %2636 = vperm.xlu0 %2635, %v135
    %v2637 = vpop.permute.xlu0 %2636
    %2639 = vset.pattern.permute.xlu0 4
    %2640 = vperm.xlu0 %2639, %v136
    %v2641 = vpop.permute.xlu0 %2640
    %2643 = vset.pattern.permute.xlu0 4
    %2644 = vperm.xlu0 %2643, %v137
    %v2645 = vpop.permute.xlu0 %2644
    %2647 = vset.pattern.permute.xlu0 4
    %2648 = vperm.xlu0 %2647, %v138
    %v2649 = vpop.permute.xlu0 %2648
    %2651 = vset.pattern.permute.xlu0 4
    %2652 = vperm.xlu0 %2651, %v139
    %v2653 = vpop.permute.xlu0 %2652
    %2655 = vset.pattern.permute.xlu0 4
    %2656 = vperm.xlu0 %2655, %v140
    %v2657 = vpop.permute.xlu0 %2656
    %2659 = vset.pattern.permute.xlu0 4
    %2660 = vperm.xlu0 %2659, %v141
    %v2661 = vpop.permute.xlu0 %2660
    %2663 = vset.pattern.permute.xlu0 4
    %2664 = vperm.xlu0 %2663, %v142
    %v2665 = vpop.permute.xlu0 %2664
    %2667 = vset.pattern.permute.xlu0 4
    %2668 = vperm.xlu0 %2667, %v143
    %v2669 = vpop.permute.xlu0 %2668
    %2671 = vset.pattern.permute.xlu0 4
    %2672 = vperm.xlu0 %2671, %v144
    %v2673 = vpop.permute.xlu0 %2672
    %2675 = vset.pattern.permute.xlu0 4
    %2676 = vperm.xlu0 %2675, %v145
    %v2677 = vpop.permute.xlu0 %2676
    %2679 = vset.pattern.permute.xlu0 4
    %2680 = vperm.xlu0 %2679, %v146
    %v2681 = vpop.permute.xlu0 %2680
    %2683 = vset.pattern.permute.xlu0 4
    %2684 = vperm.xlu0 %2683, %v147
    %v2685 = vpop.permute.xlu0 %2684
    %v2719 = vunpack.c.l.b16 %v2511
    %v2720 = vunpack.c.h.b16 %v2511
    %v2721 = vunpack.c.l.b16 %v2512
    %v2722 = vunpack.c.h.b16 %v2512
    %v2723 = vunpack.c.l.b16 %v2513
    %v2724 = vunpack.c.h.b16 %v2513
    %v2725 = vunpack.c.l.b16 %v2514
    %v2726 = vunpack.c.h.b16 %v2514
    %v2727 = vunpack.c.l.b16 %v2515
    %v2728 = vunpack.c.h.b16 %v2515
    %v2729 = vunpack.c.l.b16 %v2516
    %v2730 = vunpack.c.h.b16 %v2516
    %v2731 = vunpack.c.l.b16 %v2517
    %v2732 = vunpack.c.h.b16 %v2517
    %v2733 = vunpack.c.l.b16 %v2518
    %v2734 = vunpack.c.h.b16 %v2518
    %v2735 = vunpack.c.l.b16 %v2519
    %v2736 = vunpack.c.h.b16 %v2519
    %v2737 = vunpack.c.l.b16 %v2520
    %v2738 = vunpack.c.h.b16 %v2520
    %v2739 = vunpack.c.l.b16 %v2521
    %v2740 = vunpack.c.h.b16 %v2521
    %v2741 = vunpack.c.l.b16 %v2522
    %v2742 = vunpack.c.h.b16 %v2522
    %v2743 = vunpack.c.l.b16 %v2523
    %v2744 = vunpack.c.h.b16 %v2523
    %v2745 = vunpack.c.l.b16 %v2524
    %v2746 = vunpack.c.h.b16 %v2524
    %v2747 = vunpack.c.l.b16 %v2525
    %v2748 = vunpack.c.h.b16 %v2525
    %v2749 = vunpack.c.l.b16 %v2526
    %v2750 = vunpack.c.h.b16 %v2526
    %v2751 = vunpack.c.l.b16 %v2527
    %v2752 = vunpack.c.h.b16 %v2527
    %v2753 = vunpack.c.l.b16 %v2528
    %v2754 = vunpack.c.h.b16 %v2528
    %v2755 = vunpack.c.l.b16 %v2529
    %v2756 = vunpack.c.h.b16 %v2529
    %v2757 = vunpack.c.l.b16 %v2530
    %v2758 = vunpack.c.h.b16 %v2530
    %v2759 = vunpack.c.l.b16 %v2531
    %v2760 = vunpack.c.h.b16 %v2531
    %v2761 = vunpack.c.l.b16 %v2532
    %v2762 = vunpack.c.h.b16 %v2532
    %v2763 = vunpack.c.l.b16 %v2533
    %v2764 = vunpack.c.h.b16 %v2533
    %v2765 = vunpack.c.l.b16 %v2534
    %v2766 = vunpack.c.h.b16 %v2534
    %v2767 = vunpack.c.l.b16 %v2535
    %v2768 = vunpack.c.h.b16 %v2535
    %v2769 = vunpack.c.l.b16 %v2536
    %v2770 = vunpack.c.h.b16 %v2536
    %v2771 = vunpack.c.l.b16 %v2537
    %v2772 = vunpack.c.h.b16 %v2537
    %v2773 = vunpack.c.l.b16 %v2538
    %v2774 = vunpack.c.h.b16 %v2538
    %v2775 = vunpack.c.l.b16 %v2539
    %v2776 = vunpack.c.h.b16 %v2539
    %v2777 = vunpack.c.l.b16 %v2540
    %v2778 = vunpack.c.h.b16 %v2540
    %v2779 = vunpack.c.l.b16 %v2541
    %v2780 = vunpack.c.h.b16 %v2541
    %v2781 = vunpack.c.l.b16 %v2542
    %v2782 = vunpack.c.h.b16 %v2542
    %v2783 = vpack.c.b16 %v2721, %v2719
    %v2784 = vpack.c.b16 %v2722, %v2720
    %v2785 = vpack.c.b16 %v2725, %v2723
    %v2786 = vpack.c.b16 %v2726, %v2724
    %v2787 = vpack.c.b16 %v2729, %v2727
    %v2788 = vpack.c.b16 %v2730, %v2728
    %v2789 = vpack.c.b16 %v2733, %v2731
    %v2790 = vpack.c.b16 %v2734, %v2732
    %v2791 = vpack.c.b16 %v2737, %v2735
    %v2792 = vpack.c.b16 %v2738, %v2736
    %v2793 = vpack.c.b16 %v2741, %v2739
    %v2794 = vpack.c.b16 %v2742, %v2740
    %v2795 = vpack.c.b16 %v2745, %v2743
    %v2796 = vpack.c.b16 %v2746, %v2744
    %v2797 = vpack.c.b16 %v2749, %v2747
    %v2798 = vpack.c.b16 %v2750, %v2748
    %v2799 = vpack.c.b16 %v2753, %v2751
    %v2800 = vpack.c.b16 %v2754, %v2752
    %v2801 = vpack.c.b16 %v2757, %v2755
    %v2802 = vpack.c.b16 %v2758, %v2756
    %v2803 = vpack.c.b16 %v2761, %v2759
    %v2804 = vpack.c.b16 %v2762, %v2760
    %v2805 = vpack.c.b16 %v2765, %v2763
    %v2806 = vpack.c.b16 %v2766, %v2764
    %v2807 = vpack.c.b16 %v2769, %v2767
    %v2808 = vpack.c.b16 %v2770, %v2768
    %v2809 = vpack.c.b16 %v2773, %v2771
    %v2810 = vpack.c.b16 %v2774, %v2772
    %v2811 = vpack.c.b16 %v2777, %v2775
    %v2812 = vpack.c.b16 %v2778, %v2776
    %v2813 = vpack.c.b16 %v2781, %v2779
    %v2814 = vpack.c.b16 %v2782, %v2780
    %2847 = vmatpush.bf16.msra.mxu0 %v2550
    %2848 = vmatpush.bf16.msra.mxu0 %v2549
    %2849 = vmatpush.bf16.msra.mxu0 %v2548
    %2850 = vmatpush.bf16.msra.mxu0 %v2547
    %2851 = vmatpush.bf16.msra.mxu0 %v2546
    %2852 = vmatpush.bf16.msra.mxu0 %v2545
    %2853 = vmatpush.bf16.msra.mxu0 %v2544
    %2854 = vmatpush.bf16.msra.mxu0 %v2543
    %2855 = vmatmul.bf16.gmra.mxu0 %v2783
    %v2856 = vpop.f32.mrf.mxu0
    %v2857 = vadd.f32 %v2561, %v2856
    %v2858 = vpop.f32.mrf.mxu0
    %v2859 = vadd.f32 %v2565, %v2858
    %2860 = vmatmul.bf16.gmra.mxu0 %v2785
    %v2861 = vpop.f32.mrf.mxu0
    %v2862 = vadd.f32 %v2569, %v2861
    %v2863 = vpop.f32.mrf.mxu0
    %v2864 = vadd.f32 %v2573, %v2863
    %2865 = vmatmul.bf16.gmra.mxu0 %v2787
    %v2866 = vpop.f32.mrf.mxu0
    %v2867 = vadd.f32 %v2577, %v2866
    %v2868 = vpop.f32.mrf.mxu0
    %v2869 = vadd.f32 %v2581, %v2868
    %2870 = vmatmul.bf16.gmra.mxu0 %v2789
    %v2871 = vpop.f32.mrf.mxu0
    %v2872 = vadd.f32 %v2585, %v2871
    %v2873 = vpop.f32.mrf.mxu0
    %v2874 = vadd.f32 %v2589, %v2873
    %2875 = vmatmul.bf16.gmra.mxu0 %v2791
    %v2876 = vpop.f32.mrf.mxu0
    %v2877 = vadd.f32 %v2593, %v2876
    %v2878 = vpop.f32.mrf.mxu0
    %v2879 = vadd.f32 %v2597, %v2878
    %2880 = vmatmul.bf16.gmra.mxu0 %v2793
    %v2881 = vpop.f32.mrf.mxu0
    %v2882 = vadd.f32 %v2601, %v2881
    %v2883 = vpop.f32.mrf.mxu0
    %v2884 = vadd.f32 %v2605, %v2883
    %2885 = vmatmul.bf16.gmra.mxu0 %v2795
    %v2886 = vpop.f32.mrf.mxu0
    %v2887 = vadd.f32 %v2609, %v2886
    %v2888 = vpop.f32.mrf.mxu0
    %v2889 = vadd.f32 %v2613, %v2888
    %2890 = vmatmul.bf16.gmra.mxu0 %v2797
    %v2891 = vpop.f32.mrf.mxu0
    %v2892 = vadd.f32 %v2617, %v2891
    %v2893 = vpop.f32.mrf.mxu0
    %v2894 = vadd.f32 %v2621, %v2893
    %2895 = vmatmul.bf16.gmra.mxu0 %v2799
    %v2896 = vpop.f32.mrf.mxu0
    %v2897 = vadd.f32 %v2625, %v2896
    %v2898 = vpop.f32.mrf.mxu0
    %v2899 = vadd.f32 %v2629, %v2898
    %2900 = vmatmul.bf16.gmra.mxu0 %v2801
    %v2901 = vpop.f32.mrf.mxu0
    %v2902 = vadd.f32 %v2633, %v2901
    %v2903 = vpop.f32.mrf.mxu0
    %v2904 = vadd.f32 %v2637, %v2903
    %2905 = vmatmul.bf16.gmra.mxu0 %v2803
    %v2906 = vpop.f32.mrf.mxu0
    %v2907 = vadd.f32 %v2641, %v2906
    %v2908 = vpop.f32.mrf.mxu0
    %v2909 = vadd.f32 %v2645, %v2908
    %2910 = vmatmul.bf16.gmra.mxu0 %v2805
    %v2911 = vpop.f32.mrf.mxu0
    %v2912 = vadd.f32 %v2649, %v2911
    %v2913 = vpop.f32.mrf.mxu0
    %v2914 = vadd.f32 %v2653, %v2913
    %2915 = vmatmul.bf16.gmra.mxu0 %v2807
    %v2916 = vpop.f32.mrf.mxu0
    %v2917 = vadd.f32 %v2657, %v2916
    %v2918 = vpop.f32.mrf.mxu0
    %v2919 = vadd.f32 %v2661, %v2918
    %2920 = vmatmul.bf16.gmra.mxu0 %v2809
    %v2921 = vpop.f32.mrf.mxu0
    %v2922 = vadd.f32 %v2665, %v2921
    %v2923 = vpop.f32.mrf.mxu0
    %v2924 = vadd.f32 %v2669, %v2923
    %2925 = vmatmul.bf16.gmra.mxu0 %v2811
    %v2926 = vpop.f32.mrf.mxu0
    %v2927 = vadd.f32 %v2673, %v2926
    %v2928 = vpop.f32.mrf.mxu0
    %v2929 = vadd.f32 %v2677, %v2928
    %2930 = vmatmul.bf16.gmra.mxu0 %v2813
    %v2931 = vpop.f32.mrf.mxu0
    %v2932 = vadd.f32 %v2681, %v2931
    %v2933 = vpop.f32.mrf.mxu0
    %v2934 = vadd.f32 %v2685, %v2933
    %2935 = vdwg.mxu0
    %2936 = vmatpush.bf16.msra.mxu0 %v2558
    %2937 = vmatpush.bf16.msra.mxu0 %v2557
    %2938 = vmatpush.bf16.msra.mxu0 %v2556
    %2939 = vmatpush.bf16.msra.mxu0 %v2555
    %2940 = vmatpush.bf16.msra.mxu0 %v2554
    %2941 = vmatpush.bf16.msra.mxu0 %v2553
    %2942 = vmatpush.bf16.msra.mxu0 %v2552
    %2943 = vmatpush.bf16.msra.mxu0 %v2551
    %2944 = vmatmul.bf16.gmra.mxu0 %v2784
    %v2945 = vpop.f32.mrf.mxu0
    %v2946 = vadd.f32 %v2857, %v2945
    %v2947 = vpop.f32.mrf.mxu0
    %v2948 = vadd.f32 %v2859, %v2947
    %2949 = vmatmul.bf16.gmra.mxu0 %v2786
    %v2950 = vpop.f32.mrf.mxu0
    %v2951 = vadd.f32 %v2862, %v2950
    %v2952 = vpop.f32.mrf.mxu0
    %v2953 = vadd.f32 %v2864, %v2952
    %2954 = vmatmul.bf16.gmra.mxu0 %v2788
    %v2955 = vpop.f32.mrf.mxu0
    %v2956 = vadd.f32 %v2867, %v2955
    %v2957 = vpop.f32.mrf.mxu0
    %v2958 = vadd.f32 %v2869, %v2957
    %2959 = vmatmul.bf16.gmra.mxu0 %v2790
    %v2960 = vpop.f32.mrf.mxu0
    %v2961 = vadd.f32 %v2872, %v2960
    %v2962 = vpop.f32.mrf.mxu0
    %v2963 = vadd.f32 %v2874, %v2962
    %2964 = vmatmul.bf16.gmra.mxu0 %v2792
    %v2965 = vpop.f32.mrf.mxu0
    %v2966 = vadd.f32 %v2877, %v2965
    %v2967 = vpop.f32.mrf.mxu0
    %v2968 = vadd.f32 %v2879, %v2967
    %2969 = vmatmul.bf16.gmra.mxu0 %v2794
    %v2970 = vpop.f32.mrf.mxu0
    %v2971 = vadd.f32 %v2882, %v2970
    %v2972 = vpop.f32.mrf.mxu0
    %v2973 = vadd.f32 %v2884, %v2972
    %2974 = vmatmul.bf16.gmra.mxu0 %v2796
    %v2975 = vpop.f32.mrf.mxu0
    %v2976 = vadd.f32 %v2887, %v2975
    %v2977 = vpop.f32.mrf.mxu0
    %v2978 = vadd.f32 %v2889, %v2977
    %2979 = vmatmul.bf16.gmra.mxu0 %v2798
    %v2980 = vpop.f32.mrf.mxu0
    %v2981 = vadd.f32 %v2892, %v2980
    %v2982 = vpop.f32.mrf.mxu0
    %v2983 = vadd.f32 %v2894, %v2982
    %2984 = vmatmul.bf16.gmra.mxu0 %v2800
    %v2985 = vpop.f32.mrf.mxu0
    %v2986 = vadd.f32 %v2897, %v2985
    %v2987 = vpop.f32.mrf.mxu0
    %v2988 = vadd.f32 %v2899, %v2987
    %2989 = vmatmul.bf16.gmra.mxu0 %v2802
    %v2990 = vpop.f32.mrf.mxu0
    %v2991 = vadd.f32 %v2902, %v2990
    %v2992 = vpop.f32.mrf.mxu0
    %v2993 = vadd.f32 %v2904, %v2992
    %2994 = vmatmul.bf16.gmra.mxu0 %v2804
    %v2995 = vpop.f32.mrf.mxu0
    %v2996 = vadd.f32 %v2907, %v2995
    %v2997 = vpop.f32.mrf.mxu0
    %v2998 = vadd.f32 %v2909, %v2997
    %2999 = vmatmul.bf16.gmra.mxu0 %v2806
    %v3000 = vpop.f32.mrf.mxu0
    %v3001 = vadd.f32 %v2912, %v3000
    %v3002 = vpop.f32.mrf.mxu0
    %v3003 = vadd.f32 %v2914, %v3002
    %3004 = vmatmul.bf16.gmra.mxu0 %v2808
    %v3005 = vpop.f32.mrf.mxu0
    %v3006 = vadd.f32 %v2917, %v3005
    %v3007 = vpop.f32.mrf.mxu0
    %v3008 = vadd.f32 %v2919, %v3007
    %3009 = vmatmul.bf16.gmra.mxu0 %v2810
    %v3010 = vpop.f32.mrf.mxu0
    %v3011 = vadd.f32 %v2922, %v3010
    %v3012 = vpop.f32.mrf.mxu0
    %v3013 = vadd.f32 %v2924, %v3012
    %3014 = vmatmul.bf16.gmra.mxu0 %v2812
    %v3015 = vpop.f32.mrf.mxu0
    %v3016 = vadd.f32 %v2927, %v3015
    %v3017 = vpop.f32.mrf.mxu0
    %v3018 = vadd.f32 %v2929, %v3017
    %3019 = vmatmul.bf16.gmra.mxu0 %v2814
    %v3020 = vpop.f32.mrf.mxu0
    %v3021 = vadd.f32 %v2932, %v3020
    %v3022 = vpop.f32.mrf.mxu0
    %v3023 = vadd.f32 %v2934, %v3022
    %3024 = vdwg.mxu0
    %v3025 = vmax.f32 %v2946, 0.0
    %v3026 = vmax.f32 %v2948, 0.0
    %v3027 = vmax.f32 %v2951, 0.0
    %v3028 = vmax.f32 %v2953, 0.0
    %v3029 = vmax.f32 %v2956, 0.0
    %v3030 = vmax.f32 %v2958, 0.0
    %v3031 = vmax.f32 %v2961, 0.0
    %v3032 = vmax.f32 %v2963, 0.0
    %v3033 = vmax.f32 %v2966, 0.0
    %v3034 = vmax.f32 %v2968, 0.0
    %v3035 = vmax.f32 %v2971, 0.0
    %v3036 = vmax.f32 %v2973, 0.0
    %v3037 = vmax.f32 %v2976, 0.0
    %v3038 = vmax.f32 %v2978, 0.0
    %v3039 = vmax.f32 %v2981, 0.0
    %v3040 = vmax.f32 %v2983, 0.0
    %v3041 = vmax.f32 %v2986, 0.0
    %v3042 = vmax.f32 %v2988, 0.0
    %v3043 = vmax.f32 %v2991, 0.0
    %v3044 = vmax.f32 %v2993, 0.0
    %v3045 = vmax.f32 %v2996, 0.0
    %v3046 = vmax.f32 %v2998, 0.0
    %v3047 = vmax.f32 %v3001, 0.0
    %v3048 = vmax.f32 %v3003, 0.0
    %v3049 = vmax.f32 %v3006, 0.0
    %v3050 = vmax.f32 %v3008, 0.0
    %v3051 = vmax.f32 %v3011, 0.0
    %v3052 = vmax.f32 %v3013, 0.0
    %v3053 = vmax.f32 %v3016, 0.0
    %v3054 = vmax.f32 %v3018, 0.0
    %v3055 = vmax.f32 %v3021, 0.0
    %v3056 = vmax.f32 %v3023, 0.0
    %v3057 = vadd.f32 %v2478, %v3025
    %v3058 = vadd.f32 %v2479, %v3026
    %v3059 = vadd.f32 %v2480, %v3027
    %v3060 = vadd.f32 %v2481, %v3028
    %v3061 = vadd.f32 %v2482, %v3029
    %v3062 = vadd.f32 %v2483, %v3030
    %v3063 = vadd.f32 %v2484, %v3031
    %v3064 = vadd.f32 %v2485, %v3032
    %v3065 = vadd.f32 %v2486, %v3033
    %v3066 = vadd.f32 %v2487, %v3034
    %v3067 = vadd.f32 %v2488, %v3035
    %v3068 = vadd.f32 %v2489, %v3036
    %v3069 = vadd.f32 %v2490, %v3037
    %v3070 = vadd.f32 %v2491, %v3038
    %v3071 = vadd.f32 %v2492, %v3039
    %v3072 = vadd.f32 %v2493, %v3040
    %v3073 = vadd.f32 %v2494, %v3041
    %v3074 = vadd.f32 %v2495, %v3042
    %v3075 = vadd.f32 %v2496, %v3043
    %v3076 = vadd.f32 %v2497, %v3044
    %v3077 = vadd.f32 %v2498, %v3045
    %v3078 = vadd.f32 %v2499, %v3046
    %v3079 = vadd.f32 %v2500, %v3047
    %v3080 = vadd.f32 %v2501, %v3048
    %v3081 = vadd.f32 %v2502, %v3049
    %v3082 = vadd.f32 %v2503, %v3050
    %v3083 = vadd.f32 %v2504, %v3051
    %v3084 = vadd.f32 %v2505, %v3052
    %v3085 = vadd.f32 %v2506, %v3053
    %v3086 = vadd.f32 %v2507, %v3054
    %v3087 = vadd.f32 %v2508, %v3055
    %v3088 = vadd.f32 %v2509, %v3056
    %s3089 = scalar_lea.vmem [#allocation2], 1024
    %v3090 = vld [vmem:[%s3089] sm:$0xff]
    %v3091 = vld [vmem:[%s3089 + $0x8] sm:$0xff]
    %v3092 = vld [vmem:[%s3089 + $0x10] sm:$0xff]
    %v3093 = vld [vmem:[%s3089 + $0x18] sm:$0xff]
    %v3094 = vld [vmem:[%s3089 + $0x20] sm:$0xff]
    %v3095 = vld [vmem:[%s3089 + $0x28] sm:$0xff]
    %v3096 = vld [vmem:[%s3089 + $0x30] sm:$0xff]
    %v3097 = vld [vmem:[%s3089 + $0x38] sm:$0xff]
    %v3098 = vld [vmem:[%s3089 + $0x40] sm:$0xff]
    %v3099 = vld [vmem:[%s3089 + $0x48] sm:$0xff]
    %v3100 = vld [vmem:[%s3089 + $0x50] sm:$0xff]
    %v3101 = vld [vmem:[%s3089 + $0x58] sm:$0xff]
    %v3102 = vld [vmem:[%s3089 + $0x60] sm:$0xff]
    %v3103 = vld [vmem:[%s3089 + $0x68] sm:$0xff]
    %v3104 = vld [vmem:[%s3089 + $0x70] sm:$0xff]
    %v3105 = vld [vmem:[%s3089 + $0x78] sm:$0xff]
    %v3106 = vld [vmem:[%s3089 + $0x80] sm:$0xff]
    %v3107 = vld [vmem:[%s3089 + $0x88] sm:$0xff]
    %v3108 = vld [vmem:[%s3089 + $0x90] sm:$0xff]
    %v3109 = vld [vmem:[%s3089 + $0x98] sm:$0xff]
    %v3110 = vld [vmem:[%s3089 + $0xa0] sm:$0xff]
    %v3111 = vld [vmem:[%s3089 + $0xa8] sm:$0xff]
    %v3112 = vld [vmem:[%s3089 + $0xb0] sm:$0xff]
    %v3113 = vld [vmem:[%s3089 + $0xb8] sm:$0xff]
    %v3114 = vld [vmem:[%s3089 + $0xc0] sm:$0xff]
    %v3115 = vld [vmem:[%s3089 + $0xc8] sm:$0xff]
    %v3116 = vld [vmem:[%s3089 + $0xd0] sm:$0xff]
    %v3117 = vld [vmem:[%s3089 + $0xd8] sm:$0xff]
    %v3118 = vld [vmem:[%s3089 + $0xe0] sm:$0xff]
    %v3119 = vld [vmem:[%s3089 + $0xe8] sm:$0xff]
    %v3120 = vld [vmem:[%s3089 + $0xf0] sm:$0xff]
    %v3121 = vld [vmem:[%s3089 + $0xf8] sm:$0xff]
    %v3122 = vpack.c.bf16 %v3058, %v3057
    %v3123 = vpack.c.bf16 %v3060, %v3059
    %v3124 = vpack.c.bf16 %v3062, %v3061
    %v3125 = vpack.c.bf16 %v3064, %v3063
    %v3126 = vpack.c.bf16 %v3066, %v3065
    %v3127 = vpack.c.bf16 %v3068, %v3067
    %v3128 = vpack.c.bf16 %v3070, %v3069
    %v3129 = vpack.c.bf16 %v3072, %v3071
    %v3130 = vpack.c.bf16 %v3074, %v3073
    %v3131 = vpack.c.bf16 %v3076, %v3075
    %v3132 = vpack.c.bf16 %v3078, %v3077
    %v3133 = vpack.c.bf16 %v3080, %v3079
    %v3134 = vpack.c.bf16 %v3082, %v3081
    %v3135 = vpack.c.bf16 %v3084, %v3083
    %v3136 = vpack.c.bf16 %v3086, %v3085
    %v3137 = vpack.c.bf16 %v3088, %v3087
    %3138 = vset.pattern.permute.xlu0 5
    %3139 = vperm.xlu0 %3138, %v116
    %v3140 = vpop.permute.xlu0 %3139
    %3142 = vset.pattern.permute.xlu0 5
    %3143 = vperm.xlu0 %3142, %v117
    %v3144 = vpop.permute.xlu0 %3143
    %3146 = vset.pattern.permute.xlu0 5
    %3147 = vperm.xlu0 %3146, %v118
    %v3148 = vpop.permute.xlu0 %3147
    %3150 = vset.pattern.permute.xlu0 5
    %3151 = vperm.xlu0 %3150, %v119
    %v3152 = vpop.permute.xlu0 %3151
    %3154 = vset.pattern.permute.xlu0 5
    %3155 = vperm.xlu0 %3154, %v120
    %v3156 = vpop.permute.xlu0 %3155
    %3158 = vset.pattern.permute.xlu0 5
    %3159 = vperm.xlu0 %3158, %v121
    %v3160 = vpop.permute.xlu0 %3159
    %3162 = vset.pattern.permute.xlu0 5
    %3163 = vperm.xlu0 %3162, %v122
    %v3164 = vpop.permute.xlu0 %3163
    %3166 = vset.pattern.permute.xlu0 5
    %3167 = vperm.xlu0 %3166, %v123
    %v3168 = vpop.permute.xlu0 %3167
    %3170 = vset.pattern.permute.xlu0 5
    %3171 = vperm.xlu0 %3170, %v124
    %v3172 = vpop.permute.xlu0 %3171
    %3174 = vset.pattern.permute.xlu0 5
    %3175 = vperm.xlu0 %3174, %v125
    %v3176 = vpop.permute.xlu0 %3175
    %3178 = vset.pattern.permute.xlu0 5
    %3179 = vperm.xlu0 %3178, %v126
    %v3180 = vpop.permute.xlu0 %3179
    %3182 = vset.pattern.permute.xlu0 5
    %3183 = vperm.xlu0 %3182, %v127
    %v3184 = vpop.permute.xlu0 %3183
    %3186 = vset.pattern.permute.xlu0 5
    %3187 = vperm.xlu0 %3186, %v128
    %v3188 = vpop.permute.xlu0 %3187
    %3190 = vset.pattern.permute.xlu0 5
    %3191 = vperm.xlu0 %3190, %v129
    %v3192 = vpop.permute.xlu0 %3191
    %3194 = vset.pattern.permute.xlu0 5
    %3195 = vperm.xlu0 %3194, %v130
    %v3196 = vpop.permute.xlu0 %3195
    %3198 = vset.pattern.permute.xlu0 5
    %3199 = vperm.xlu0 %3198, %v131
    %v3200 = vpop.permute.xlu0 %3199
    %3202 = vset.pattern.permute.xlu0 5
    %3203 = vperm.xlu0 %3202, %v132
    %v3204 = vpop.permute.xlu0 %3203
    %3206 = vset.pattern.permute.xlu0 5
    %3207 = vperm.xlu0 %3206, %v133
    %v3208 = vpop.permute.xlu0 %3207
    %3210 = vset.pattern.permute.xlu0 5
    %3211 = vperm.xlu0 %3210, %v134
    %v3212 = vpop.permute.xlu0 %3211
    %3214 = vset.pattern.permute.xlu0 5
    %3215 = vperm.xlu0 %3214, %v135
    %v3216 = vpop.permute.xlu0 %3215
    %3218 = vset.pattern.permute.xlu0 5
    %3219 = vperm.xlu0 %3218, %v136
    %v3220 = vpop.permute.xlu0 %3219
    %3222 = vset.pattern.permute.xlu0 5
    %3223 = vperm.xlu0 %3222, %v137
    %v3224 = vpop.permute.xlu0 %3223
    %3226 = vset.pattern.permute.xlu0 5
    %3227 = vperm.xlu0 %3226, %v138
    %v3228 = vpop.permute.xlu0 %3227
    %3230 = vset.pattern.permute.xlu0 5
    %3231 = vperm.xlu0 %3230, %v139
    %v3232 = vpop.permute.xlu0 %3231
    %3234 = vset.pattern.permute.xlu0 5
    %3235 = vperm.xlu0 %3234, %v140
    %v3236 = vpop.permute.xlu0 %3235
    %3238 = vset.pattern.permute.xlu0 5
    %3239 = vperm.xlu0 %3238, %v141
    %v3240 = vpop.permute.xlu0 %3239
    %3242 = vset.pattern.permute.xlu0 5
    %3243 = vperm.xlu0 %3242, %v142
    %v3244 = vpop.permute.xlu0 %3243
    %3246 = vset.pattern.permute.xlu0 5
    %3247 = vperm.xlu0 %3246, %v143
    %v3248 = vpop.permute.xlu0 %3247
    %3250 = vset.pattern.permute.xlu0 5
    %3251 = vperm.xlu0 %3250, %v144
    %v3252 = vpop.permute.xlu0 %3251
    %3254 = vset.pattern.permute.xlu0 5
    %3255 = vperm.xlu0 %3254, %v145
    %v3256 = vpop.permute.xlu0 %3255
    %3258 = vset.pattern.permute.xlu0 5
    %3259 = vperm.xlu0 %3258, %v146
    %v3260 = vpop.permute.xlu0 %3259
    %3262 = vset.pattern.permute.xlu0 5
    %3263 = vperm.xlu0 %3262, %v147
    %v3264 = vpop.permute.xlu0 %3263
    %v3298 = vunpack.c.l.b16 %v3090
    %v3299 = vunpack.c.h.b16 %v3090
    %v3300 = vunpack.c.l.b16 %v3091
    %v3301 = vunpack.c.h.b16 %v3091
    %v3302 = vunpack.c.l.b16 %v3092
    %v3303 = vunpack.c.h.b16 %v3092
    %v3304 = vunpack.c.l.b16 %v3093
    %v3305 = vunpack.c.h.b16 %v3093
    %v3306 = vunpack.c.l.b16 %v3094
    %v3307 = vunpack.c.h.b16 %v3094
    %v3308 = vunpack.c.l.b16 %v3095
    %v3309 = vunpack.c.h.b16 %v3095
    %v3310 = vunpack.c.l.b16 %v3096
    %v3311 = vunpack.c.h.b16 %v3096
    %v3312 = vunpack.c.l.b16 %v3097
    %v3313 = vunpack.c.h.b16 %v3097
    %v3314 = vunpack.c.l.b16 %v3098
    %v3315 = vunpack.c.h.b16 %v3098
    %v3316 = vunpack.c.l.b16 %v3099
    %v3317 = vunpack.c.h.b16 %v3099
    %v3318 = vunpack.c.l.b16 %v3100
    %v3319 = vunpack.c.h.b16 %v3100
    %v3320 = vunpack.c.l.b16 %v3101
    %v3321 = vunpack.c.h.b16 %v3101
    %v3322 = vunpack.c.l.b16 %v3102
    %v3323 = vunpack.c.h.b16 %v3102
    %v3324 = vunpack.c.l.b16 %v3103
    %v3325 = vunpack.c.h.b16 %v3103
    %v3326 = vunpack.c.l.b16 %v3104
    %v3327 = vunpack.c.h.b16 %v3104
    %v3328 = vunpack.c.l.b16 %v3105
    %v3329 = vunpack.c.h.b16 %v3105
    %v3330 = vunpack.c.l.b16 %v3106
    %v3331 = vunpack.c.h.b16 %v3106
    %v3332 = vunpack.c.l.b16 %v3107
    %v3333 = vunpack.c.h.b16 %v3107
    %v3334 = vunpack.c.l.b16 %v3108
    %v3335 = vunpack.c.h.b16 %v3108
    %v3336 = vunpack.c.l.b16 %v3109
    %v3337 = vunpack.c.h.b16 %v3109
    %v3338 = vunpack.c.l.b16 %v3110
    %v3339 = vunpack.c.h.b16 %v3110
    %v3340 = vunpack.c.l.b16 %v3111
    %v3341 = vunpack.c.h.b16 %v3111
    %v3342 = vunpack.c.l.b16 %v3112
    %v3343 = vunpack.c.h.b16 %v3112
    %v3344 = vunpack.c.l.b16 %v3113
    %v3345 = vunpack.c.h.b16 %v3113
    %v3346 = vunpack.c.l.b16 %v3114
    %v3347 = vunpack.c.h.b16 %v3114
    %v3348 = vunpack.c.l.b16 %v3115
    %v3349 = vunpack.c.h.b16 %v3115
    %v3350 = vunpack.c.l.b16 %v3116
    %v3351 = vunpack.c.h.b16 %v3116
    %v3352 = vunpack.c.l.b16 %v3117
    %v3353 = vunpack.c.h.b16 %v3117
    %v3354 = vunpack.c.l.b16 %v3118
    %v3355 = vunpack.c.h.b16 %v3118
    %v3356 = vunpack.c.l.b16 %v3119
    %v3357 = vunpack.c.h.b16 %v3119
    %v3358 = vunpack.c.l.b16 %v3120
    %v3359 = vunpack.c.h.b16 %v3120
    %v3360 = vunpack.c.l.b16 %v3121
    %v3361 = vunpack.c.h.b16 %v3121
    %v3362 = vpack.c.b16 %v3300, %v3298
    %v3363 = vpack.c.b16 %v3301, %v3299
    %v3364 = vpack.c.b16 %v3304, %v3302
    %v3365 = vpack.c.b16 %v3305, %v3303
    %v3366 = vpack.c.b16 %v3308, %v3306
    %v3367 = vpack.c.b16 %v3309, %v3307
    %v3368 = vpack.c.b16 %v3312, %v3310
    %v3369 = vpack.c.b16 %v3313, %v3311
    %v3370 = vpack.c.b16 %v3316, %v3314
    %v3371 = vpack.c.b16 %v3317, %v3315
    %v3372 = vpack.c.b16 %v3320, %v3318
    %v3373 = vpack.c.b16 %v3321, %v3319
    %v3374 = vpack.c.b16 %v3324, %v3322
    %v3375 = vpack.c.b16 %v3325, %v3323
    %v3376 = vpack.c.b16 %v3328, %v3326
    %v3377 = vpack.c.b16 %v3329, %v3327
    %v3378 = vpack.c.b16 %v3332, %v3330
    %v3379 = vpack.c.b16 %v3333, %v3331
    %v3380 = vpack.c.b16 %v3336, %v3334
    %v3381 = vpack.c.b16 %v3337, %v3335
    %v3382 = vpack.c.b16 %v3340, %v3338
    %v3383 = vpack.c.b16 %v3341, %v3339
    %v3384 = vpack.c.b16 %v3344, %v3342
    %v3385 = vpack.c.b16 %v3345, %v3343
    %v3386 = vpack.c.b16 %v3348, %v3346
    %v3387 = vpack.c.b16 %v3349, %v3347
    %v3388 = vpack.c.b16 %v3352, %v3350
    %v3389 = vpack.c.b16 %v3353, %v3351
    %v3390 = vpack.c.b16 %v3356, %v3354
    %v3391 = vpack.c.b16 %v3357, %v3355
    %v3392 = vpack.c.b16 %v3360, %v3358
    %v3393 = vpack.c.b16 %v3361, %v3359
    %3426 = vmatpush.bf16.msra.mxu0 %v3129
    %3427 = vmatpush.bf16.msra.mxu0 %v3128
    %3428 = vmatpush.bf16.msra.mxu0 %v3127
    %3429 = vmatpush.bf16.msra.mxu0 %v3126
    %3430 = vmatpush.bf16.msra.mxu0 %v3125
    %3431 = vmatpush.bf16.msra.mxu0 %v3124
    %3432 = vmatpush.bf16.msra.mxu0 %v3123
    %3433 = vmatpush.bf16.msra.mxu0 %v3122
    %3434 = vmatmul.bf16.gmra.mxu0 %v3362
    %v3435 = vpop.f32.mrf.mxu0
    %v3436 = vadd.f32 %v3140, %v3435
    %v3437 = vpop.f32.mrf.mxu0
    %v3438 = vadd.f32 %v3144, %v3437
    %3439 = vmatmul.bf16.gmra.mxu0 %v3364
    %v3440 = vpop.f32.mrf.mxu0
    %v3441 = vadd.f32 %v3148, %v3440
    %v3442 = vpop.f32.mrf.mxu0
    %v3443 = vadd.f32 %v3152, %v3442
    %3444 = vmatmul.bf16.gmra.mxu0 %v3366
    %v3445 = vpop.f32.mrf.mxu0
    %v3446 = vadd.f32 %v3156, %v3445
    %v3447 = vpop.f32.mrf.mxu0
    %v3448 = vadd.f32 %v3160, %v3447
    %3449 = vmatmul.bf16.gmra.mxu0 %v3368
    %v3450 = vpop.f32.mrf.mxu0
    %v3451 = vadd.f32 %v3164, %v3450
    %v3452 = vpop.f32.mrf.mxu0
    %v3453 = vadd.f32 %v3168, %v3452
    %3454 = vmatmul.bf16.gmra.mxu0 %v3370
    %v3455 = vpop.f32.mrf.mxu0
    %v3456 = vadd.f32 %v3172, %v3455
    %v3457 = vpop.f32.mrf.mxu0
    %v3458 = vadd.f32 %v3176, %v3457
    %3459 = vmatmul.bf16.gmra.mxu0 %v3372
    %v3460 = vpop.f32.mrf.mxu0
    %v3461 = vadd.f32 %v3180, %v3460
    %v3462 = vpop.f32.mrf.mxu0
    %v3463 = vadd.f32 %v3184, %v3462
    %3464 = vmatmul.bf16.gmra.mxu0 %v3374
    %v3465 = vpop.f32.mrf.mxu0
    %v3466 = vadd.f32 %v3188, %v3465
    %v3467 = vpop.f32.mrf.mxu0
    %v3468 = vadd.f32 %v3192, %v3467
    %3469 = vmatmul.bf16.gmra.mxu0 %v3376
    %v3470 = vpop.f32.mrf.mxu0
    %v3471 = vadd.f32 %v3196, %v3470
    %v3472 = vpop.f32.mrf.mxu0
    %v3473 = vadd.f32 %v3200, %v3472
    %3474 = vmatmul.bf16.gmra.mxu0 %v3378
    %v3475 = vpop.f32.mrf.mxu0
    %v3476 = vadd.f32 %v3204, %v3475
    %v3477 = vpop.f32.mrf.mxu0
    %v3478 = vadd.f32 %v3208, %v3477
    %3479 = vmatmul.bf16.gmra.mxu0 %v3380
    %v3480 = vpop.f32.mrf.mxu0
    %v3481 = vadd.f32 %v3212, %v3480
    %v3482 = vpop.f32.mrf.mxu0
    %v3483 = vadd.f32 %v3216, %v3482
    %3484 = vmatmul.bf16.gmra.mxu0 %v3382
    %v3485 = vpop.f32.mrf.mxu0
    %v3486 = vadd.f32 %v3220, %v3485
    %v3487 = vpop.f32.mrf.mxu0
    %v3488 = vadd.f32 %v3224, %v3487
    %3489 = vmatmul.bf16.gmra.mxu0 %v3384
    %v3490 = vpop.f32.mrf.mxu0
    %v3491 = vadd.f32 %v3228, %v3490
    %v3492 = vpop.f32.mrf.mxu0
    %v3493 = vadd.f32 %v3232, %v3492
    %3494 = vmatmul.bf16.gmra.mxu0 %v3386
    %v3495 = vpop.f32.mrf.mxu0
    %v3496 = vadd.f32 %v3236, %v3495
    %v3497 = vpop.f32.mrf.mxu0
    %v3498 = vadd.f32 %v3240, %v3497
    %3499 = vmatmul.bf16.gmra.mxu0 %v3388
    %v3500 = vpop.f32.mrf.mxu0
    %v3501 = vadd.f32 %v3244, %v3500
    %v3502 = vpop.f32.mrf.mxu0
    %v3503 = vadd.f32 %v3248, %v3502
    %3504 = vmatmul.bf16.gmra.mxu0 %v3390
    %v3505 = vpop.f32.mrf.mxu0
    %v3506 = vadd.f32 %v3252, %v3505
    %v3507 = vpop.f32.mrf.mxu0
    %v3508 = vadd.f32 %v3256, %v3507
    %3509 = vmatmul.bf16.gmra.mxu0 %v3392
    %v3510 = vpop.f32.mrf.mxu0
    %v3511 = vadd.f32 %v3260, %v3510
    %v3512 = vpop.f32.mrf.mxu0
    %v3513 = vadd.f32 %v3264, %v3512
    %3514 = vdwg.mxu0
    %3515 = vmatpush.bf16.msra.mxu0 %v3137
    %3516 = vmatpush.bf16.msra.mxu0 %v3136
    %3517 = vmatpush.bf16.msra.mxu0 %v3135
    %3518 = vmatpush.bf16.msra.mxu0 %v3134
    %3519 = vmatpush.bf16.msra.mxu0 %v3133
    %3520 = vmatpush.bf16.msra.mxu0 %v3132
    %3521 = vmatpush.bf16.msra.mxu0 %v3131
    %3522 = vmatpush.bf16.msra.mxu0 %v3130
    %3523 = vmatmul.bf16.gmra.mxu0 %v3363
    %v3524 = vpop.f32.mrf.mxu0
    %v3525 = vadd.f32 %v3436, %v3524
    %v3526 = vpop.f32.mrf.mxu0
    %v3527 = vadd.f32 %v3438, %v3526
    %3528 = vmatmul.bf16.gmra.mxu0 %v3365
    %v3529 = vpop.f32.mrf.mxu0
    %v3530 = vadd.f32 %v3441, %v3529
    %v3531 = vpop.f32.mrf.mxu0
    %v3532 = vadd.f32 %v3443, %v3531
    %3533 = vmatmul.bf16.gmra.mxu0 %v3367
    %v3534 = vpop.f32.mrf.mxu0
    %v3535 = vadd.f32 %v3446, %v3534
    %v3536 = vpop.f32.mrf.mxu0
    %v3537 = vadd.f32 %v3448, %v3536
    %3538 = vmatmul.bf16.gmra.mxu0 %v3369
    %v3539 = vpop.f32.mrf.mxu0
    %v3540 = vadd.f32 %v3451, %v3539
    %v3541 = vpop.f32.mrf.mxu0
    %v3542 = vadd.f32 %v3453, %v3541
    %3543 = vmatmul.bf16.gmra.mxu0 %v3371
    %v3544 = vpop.f32.mrf.mxu0
    %v3545 = vadd.f32 %v3456, %v3544
    %v3546 = vpop.f32.mrf.mxu0
    %v3547 = vadd.f32 %v3458, %v3546
    %3548 = vmatmul.bf16.gmra.mxu0 %v3373
    %v3549 = vpop.f32.mrf.mxu0
    %v3550 = vadd.f32 %v3461, %v3549
    %v3551 = vpop.f32.mrf.mxu0
    %v3552 = vadd.f32 %v3463, %v3551
    %3553 = vmatmul.bf16.gmra.mxu0 %v3375
    %v3554 = vpop.f32.mrf.mxu0
    %v3555 = vadd.f32 %v3466, %v3554
    %v3556 = vpop.f32.mrf.mxu0
    %v3557 = vadd.f32 %v3468, %v3556
    %3558 = vmatmul.bf16.gmra.mxu0 %v3377
    %v3559 = vpop.f32.mrf.mxu0
    %v3560 = vadd.f32 %v3471, %v3559
    %v3561 = vpop.f32.mrf.mxu0
    %v3562 = vadd.f32 %v3473, %v3561
    %3563 = vmatmul.bf16.gmra.mxu0 %v3379
    %v3564 = vpop.f32.mrf.mxu0
    %v3565 = vadd.f32 %v3476, %v3564
    %v3566 = vpop.f32.mrf.mxu0
    %v3567 = vadd.f32 %v3478, %v3566
    %3568 = vmatmul.bf16.gmra.mxu0 %v3381
    %v3569 = vpop.f32.mrf.mxu0
    %v3570 = vadd.f32 %v3481, %v3569
    %v3571 = vpop.f32.mrf.mxu0
    %v3572 = vadd.f32 %v3483, %v3571
    %3573 = vmatmul.bf16.gmra.mxu0 %v3383
    %v3574 = vpop.f32.mrf.mxu0
    %v3575 = vadd.f32 %v3486, %v3574
    %v3576 = vpop.f32.mrf.mxu0
    %v3577 = vadd.f32 %v3488, %v3576
    %3578 = vmatmul.bf16.gmra.mxu0 %v3385
    %v3579 = vpop.f32.mrf.mxu0
    %v3580 = vadd.f32 %v3491, %v3579
    %v3581 = vpop.f32.mrf.mxu0
    %v3582 = vadd.f32 %v3493, %v3581
    %3583 = vmatmul.bf16.gmra.mxu0 %v3387
    %v3584 = vpop.f32.mrf.mxu0
    %v3585 = vadd.f32 %v3496, %v3584
    %v3586 = vpop.f32.mrf.mxu0
    %v3587 = vadd.f32 %v3498, %v3586
    %3588 = vmatmul.bf16.gmra.mxu0 %v3389
    %v3589 = vpop.f32.mrf.mxu0
    %v3590 = vadd.f32 %v3501, %v3589
    %v3591 = vpop.f32.mrf.mxu0
    %v3592 = vadd.f32 %v3503, %v3591
    %3593 = vmatmul.bf16.gmra.mxu0 %v3391
    %v3594 = vpop.f32.mrf.mxu0
    %v3595 = vadd.f32 %v3506, %v3594
    %v3596 = vpop.f32.mrf.mxu0
    %v3597 = vadd.f32 %v3508, %v3596
    %3598 = vmatmul.bf16.gmra.mxu0 %v3393
    %v3599 = vpop.f32.mrf.mxu0
    %v3600 = vadd.f32 %v3511, %v3599
    %v3601 = vpop.f32.mrf.mxu0
    %v3602 = vadd.f32 %v3513, %v3601
    %3603 = vdwg.mxu0
    %v3604 = vmax.f32 %v3525, 0.0
    %v3605 = vmax.f32 %v3527, 0.0
    %v3606 = vmax.f32 %v3530, 0.0
    %v3607 = vmax.f32 %v3532, 0.0
    %v3608 = vmax.f32 %v3535, 0.0
    %v3609 = vmax.f32 %v3537, 0.0
    %v3610 = vmax.f32 %v3540, 0.0
    %v3611 = vmax.f32 %v3542, 0.0
    %v3612 = vmax.f32 %v3545, 0.0
    %v3613 = vmax.f32 %v3547, 0.0
    %v3614 = vmax.f32 %v3550, 0.0
    %v3615 = vmax.f32 %v3552, 0.0
    %v3616 = vmax.f32 %v3555, 0.0
    %v3617 = vmax.f32 %v3557, 0.0
    %v3618 = vmax.f32 %v3560, 0.0
    %v3619 = vmax.f32 %v3562, 0.0
    %v3620 = vmax.f32 %v3565, 0.0
    %v3621 = vmax.f32 %v3567, 0.0
    %v3622 = vmax.f32 %v3570, 0.0
    %v3623 = vmax.f32 %v3572, 0.0
    %v3624 = vmax.f32 %v3575, 0.0
    %v3625 = vmax.f32 %v3577, 0.0
    %v3626 = vmax.f32 %v3580, 0.0
    %v3627 = vmax.f32 %v3582, 0.0
    %v3628 = vmax.f32 %v3585, 0.0
    %v3629 = vmax.f32 %v3587, 0.0
    %v3630 = vmax.f32 %v3590, 0.0
    %v3631 = vmax.f32 %v3592, 0.0
    %v3632 = vmax.f32 %v3595, 0.0
    %v3633 = vmax.f32 %v3597, 0.0
    %v3634 = vmax.f32 %v3600, 0.0
    %v3635 = vmax.f32 %v3602, 0.0
    %v3636 = vadd.f32 %v3057, %v3604
    %v3637 = vadd.f32 %v3058, %v3605
    %v3638 = vadd.f32 %v3059, %v3606
    %v3639 = vadd.f32 %v3060, %v3607
    %v3640 = vadd.f32 %v3061, %v3608
    %v3641 = vadd.f32 %v3062, %v3609
    %v3642 = vadd.f32 %v3063, %v3610
    %v3643 = vadd.f32 %v3064, %v3611
    %v3644 = vadd.f32 %v3065, %v3612
    %v3645 = vadd.f32 %v3066, %v3613
    %v3646 = vadd.f32 %v3067, %v3614
    %v3647 = vadd.f32 %v3068, %v3615
    %v3648 = vadd.f32 %v3069, %v3616
    %v3649 = vadd.f32 %v3070, %v3617
    %v3650 = vadd.f32 %v3071, %v3618
    %v3651 = vadd.f32 %v3072, %v3619
    %v3652 = vadd.f32 %v3073, %v3620
    %v3653 = vadd.f32 %v3074, %v3621
    %v3654 = vadd.f32 %v3075, %v3622
    %v3655 = vadd.f32 %v3076, %v3623
    %v3656 = vadd.f32 %v3077, %v3624
    %v3657 = vadd.f32 %v3078, %v3625
    %v3658 = vadd.f32 %v3079, %v3626
    %v3659 = vadd.f32 %v3080, %v3627
    %v3660 = vadd.f32 %v3081, %v3628
    %v3661 = vadd.f32 %v3082, %v3629
    %v3662 = vadd.f32 %v3083, %v3630
    %v3663 = vadd.f32 %v3084, %v3631
    %v3664 = vadd.f32 %v3085, %v3632
    %v3665 = vadd.f32 %v3086, %v3633
    %v3666 = vadd.f32 %v3087, %v3634
    %v3667 = vadd.f32 %v3088, %v3635
    %s3668 = scalar_lea.vmem [#allocation2], 1280
    %v3669 = vld [vmem:[%s3668] sm:$0xff]
    %v3670 = vld [vmem:[%s3668 + $0x8] sm:$0xff]
    %v3671 = vld [vmem:[%s3668 + $0x10] sm:$0xff]
    %v3672 = vld [vmem:[%s3668 + $0x18] sm:$0xff]
    %v3673 = vld [vmem:[%s3668 + $0x20] sm:$0xff]
    %v3674 = vld [vmem:[%s3668 + $0x28] sm:$0xff]
    %v3675 = vld [vmem:[%s3668 + $0x30] sm:$0xff]
    %v3676 = vld [vmem:[%s3668 + $0x38] sm:$0xff]
    %v3677 = vld [vmem:[%s3668 + $0x40] sm:$0xff]
    %v3678 = vld [vmem:[%s3668 + $0x48] sm:$0xff]
    %v3679 = vld [vmem:[%s3668 + $0x50] sm:$0xff]
    %v3680 = vld [vmem:[%s3668 + $0x58] sm:$0xff]
    %v3681 = vld [vmem:[%s3668 + $0x60] sm:$0xff]
    %v3682 = vld [vmem:[%s3668 + $0x68] sm:$0xff]
    %v3683 = vld [vmem:[%s3668 + $0x70] sm:$0xff]
    %v3684 = vld [vmem:[%s3668 + $0x78] sm:$0xff]
    %v3685 = vld [vmem:[%s3668 + $0x80] sm:$0xff]
    %v3686 = vld [vmem:[%s3668 + $0x88] sm:$0xff]
    %v3687 = vld [vmem:[%s3668 + $0x90] sm:$0xff]
    %v3688 = vld [vmem:[%s3668 + $0x98] sm:$0xff]
    %v3689 = vld [vmem:[%s3668 + $0xa0] sm:$0xff]
    %v3690 = vld [vmem:[%s3668 + $0xa8] sm:$0xff]
    %v3691 = vld [vmem:[%s3668 + $0xb0] sm:$0xff]
    %v3692 = vld [vmem:[%s3668 + $0xb8] sm:$0xff]
    %v3693 = vld [vmem:[%s3668 + $0xc0] sm:$0xff]
    %v3694 = vld [vmem:[%s3668 + $0xc8] sm:$0xff]
    %v3695 = vld [vmem:[%s3668 + $0xd0] sm:$0xff]
    %v3696 = vld [vmem:[%s3668 + $0xd8] sm:$0xff]
    %v3697 = vld [vmem:[%s3668 + $0xe0] sm:$0xff]
    %v3698 = vld [vmem:[%s3668 + $0xe8] sm:$0xff]
    %v3699 = vld [vmem:[%s3668 + $0xf0] sm:$0xff]
    %v3700 = vld [vmem:[%s3668 + $0xf8] sm:$0xff]
    %v3701 = vpack.c.bf16 %v3637, %v3636
    %v3702 = vpack.c.bf16 %v3639, %v3638
    %v3703 = vpack.c.bf16 %v3641, %v3640
    %v3704 = vpack.c.bf16 %v3643, %v3642
    %v3705 = vpack.c.bf16 %v3645, %v3644
    %v3706 = vpack.c.bf16 %v3647, %v3646
    %v3707 = vpack.c.bf16 %v3649, %v3648
    %v3708 = vpack.c.bf16 %v3651, %v3650
    %v3709 = vpack.c.bf16 %v3653, %v3652
    %v3710 = vpack.c.bf16 %v3655, %v3654
    %v3711 = vpack.c.bf16 %v3657, %v3656
    %v3712 = vpack.c.bf16 %v3659, %v3658
    %v3713 = vpack.c.bf16 %v3661, %v3660
    %v3714 = vpack.c.bf16 %v3663, %v3662
    %v3715 = vpack.c.bf16 %v3665, %v3664
    %v3716 = vpack.c.bf16 %v3667, %v3666
    %3717 = vset.pattern.permute.xlu0 6
    %3718 = vperm.xlu0 %3717, %v116
    %v3719 = vpop.permute.xlu0 %3718
    %3721 = vset.pattern.permute.xlu0 6
    %3722 = vperm.xlu0 %3721, %v117
    %v3723 = vpop.permute.xlu0 %3722
    %3725 = vset.pattern.permute.xlu0 6
    %3726 = vperm.xlu0 %3725, %v118
    %v3727 = vpop.permute.xlu0 %3726
    %3729 = vset.pattern.permute.xlu0 6
    %3730 = vperm.xlu0 %3729, %v119
    %v3731 = vpop.permute.xlu0 %3730
    %3733 = vset.pattern.permute.xlu0 6
    %3734 = vperm.xlu0 %3733, %v120
    %v3735 = vpop.permute.xlu0 %3734
    %3737 = vset.pattern.permute.xlu0 6
    %3738 = vperm.xlu0 %3737, %v121
    %v3739 = vpop.permute.xlu0 %3738
    %3741 = vset.pattern.permute.xlu0 6
    %3742 = vperm.xlu0 %3741, %v122
    %v3743 = vpop.permute.xlu0 %3742
    %3745 = vset.pattern.permute.xlu0 6
    %3746 = vperm.xlu0 %3745, %v123
    %v3747 = vpop.permute.xlu0 %3746
    %3749 = vset.pattern.permute.xlu0 6
    %3750 = vperm.xlu0 %3749, %v124
    %v3751 = vpop.permute.xlu0 %3750
    %3753 = vset.pattern.permute.xlu0 6
    %3754 = vperm.xlu0 %3753, %v125
    %v3755 = vpop.permute.xlu0 %3754
    %3757 = vset.pattern.permute.xlu0 6
    %3758 = vperm.xlu0 %3757, %v126
    %v3759 = vpop.permute.xlu0 %3758
    %3761 = vset.pattern.permute.xlu0 6
    %3762 = vperm.xlu0 %3761, %v127
    %v3763 = vpop.permute.xlu0 %3762
    %3765 = vset.pattern.permute.xlu0 6
    %3766 = vperm.xlu0 %3765, %v128
    %v3767 = vpop.permute.xlu0 %3766
    %3769 = vset.pattern.permute.xlu0 6
    %3770 = vperm.xlu0 %3769, %v129
    %v3771 = vpop.permute.xlu0 %3770
    %3773 = vset.pattern.permute.xlu0 6
    %3774 = vperm.xlu0 %3773, %v130
    %v3775 = vpop.permute.xlu0 %3774
    %3777 = vset.pattern.permute.xlu0 6
    %3778 = vperm.xlu0 %3777, %v131
    %v3779 = vpop.permute.xlu0 %3778
    %3781 = vset.pattern.permute.xlu0 6
    %3782 = vperm.xlu0 %3781, %v132
    %v3783 = vpop.permute.xlu0 %3782
    %3785 = vset.pattern.permute.xlu0 6
    %3786 = vperm.xlu0 %3785, %v133
    %v3787 = vpop.permute.xlu0 %3786
    %3789 = vset.pattern.permute.xlu0 6
    %3790 = vperm.xlu0 %3789, %v134
    %v3791 = vpop.permute.xlu0 %3790
    %3793 = vset.pattern.permute.xlu0 6
    %3794 = vperm.xlu0 %3793, %v135
    %v3795 = vpop.permute.xlu0 %3794
    %3797 = vset.pattern.permute.xlu0 6
    %3798 = vperm.xlu0 %3797, %v136
    %v3799 = vpop.permute.xlu0 %3798
    %3801 = vset.pattern.permute.xlu0 6
    %3802 = vperm.xlu0 %3801, %v137
    %v3803 = vpop.permute.xlu0 %3802
    %3805 = vset.pattern.permute.xlu0 6
    %3806 = vperm.xlu0 %3805, %v138
    %v3807 = vpop.permute.xlu0 %3806
    %3809 = vset.pattern.permute.xlu0 6
    %3810 = vperm.xlu0 %3809, %v139
    %v3811 = vpop.permute.xlu0 %3810
    %3813 = vset.pattern.permute.xlu0 6
    %3814 = vperm.xlu0 %3813, %v140
    %v3815 = vpop.permute.xlu0 %3814
    %3817 = vset.pattern.permute.xlu0 6
    %3818 = vperm.xlu0 %3817, %v141
    %v3819 = vpop.permute.xlu0 %3818
    %3821 = vset.pattern.permute.xlu0 6
    %3822 = vperm.xlu0 %3821, %v142
    %v3823 = vpop.permute.xlu0 %3822
    %3825 = vset.pattern.permute.xlu0 6
    %3826 = vperm.xlu0 %3825, %v143
    %v3827 = vpop.permute.xlu0 %3826
    %3829 = vset.pattern.permute.xlu0 6
    %3830 = vperm.xlu0 %3829, %v144
    %v3831 = vpop.permute.xlu0 %3830
    %3833 = vset.pattern.permute.xlu0 6
    %3834 = vperm.xlu0 %3833, %v145
    %v3835 = vpop.permute.xlu0 %3834
    %3837 = vset.pattern.permute.xlu0 6
    %3838 = vperm.xlu0 %3837, %v146
    %v3839 = vpop.permute.xlu0 %3838
    %3841 = vset.pattern.permute.xlu0 6
    %3842 = vperm.xlu0 %3841, %v147
    %v3843 = vpop.permute.xlu0 %3842
    %v3877 = vunpack.c.l.b16 %v3669
    %v3878 = vunpack.c.h.b16 %v3669
    %v3879 = vunpack.c.l.b16 %v3670
    %v3880 = vunpack.c.h.b16 %v3670
    %v3881 = vunpack.c.l.b16 %v3671
    %v3882 = vunpack.c.h.b16 %v3671
    %v3883 = vunpack.c.l.b16 %v3672
    %v3884 = vunpack.c.h.b16 %v3672
    %v3885 = vunpack.c.l.b16 %v3673
    %v3886 = vunpack.c.h.b16 %v3673
    %v3887 = vunpack.c.l.b16 %v3674
    %v3888 = vunpack.c.h.b16 %v3674
    %v3889 = vunpack.c.l.b16 %v3675
    %v3890 = vunpack.c.h.b16 %v3675
    %v3891 = vunpack.c.l.b16 %v3676
    %v3892 = vunpack.c.h.b16 %v3676
    %v3893 = vunpack.c.l.b16 %v3677
    %v3894 = vunpack.c.h.b16 %v3677
    %v3895 = vunpack.c.l.b16 %v3678
    %v3896 = vunpack.c.h.b16 %v3678
    %v3897 = vunpack.c.l.b16 %v3679
    %v3898 = vunpack.c.h.b16 %v3679
    %v3899 = vunpack.c.l.b16 %v3680
    %v3900 = vunpack.c.h.b16 %v3680
    %v3901 = vunpack.c.l.b16 %v3681
    %v3902 = vunpack.c.h.b16 %v3681
    %v3903 = vunpack.c.l.b16 %v3682
    %v3904 = vunpack.c.h.b16 %v3682
    %v3905 = vunpack.c.l.b16 %v3683
    %v3906 = vunpack.c.h.b16 %v3683
    %v3907 = vunpack.c.l.b16 %v3684
    %v3908 = vunpack.c.h.b16 %v3684
    %v3909 = vunpack.c.l.b16 %v3685
    %v3910 = vunpack.c.h.b16 %v3685
    %v3911 = vunpack.c.l.b16 %v3686
    %v3912 = vunpack.c.h.b16 %v3686
    %v3913 = vunpack.c.l.b16 %v3687
    %v3914 = vunpack.c.h.b16 %v3687
    %v3915 = vunpack.c.l.b16 %v3688
    %v3916 = vunpack.c.h.b16 %v3688
    %v3917 = vunpack.c.l.b16 %v3689
    %v3918 = vunpack.c.h.b16 %v3689
    %v3919 = vunpack.c.l.b16 %v3690
    %v3920 = vunpack.c.h.b16 %v3690
    %v3921 = vunpack.c.l.b16 %v3691
    %v3922 = vunpack.c.h.b16 %v3691
    %v3923 = vunpack.c.l.b16 %v3692
    %v3924 = vunpack.c.h.b16 %v3692
    %v3925 = vunpack.c.l.b16 %v3693
    %v3926 = vunpack.c.h.b16 %v3693
    %v3927 = vunpack.c.l.b16 %v3694
    %v3928 = vunpack.c.h.b16 %v3694
    %v3929 = vunpack.c.l.b16 %v3695
    %v3930 = vunpack.c.h.b16 %v3695
    %v3931 = vunpack.c.l.b16 %v3696
    %v3932 = vunpack.c.h.b16 %v3696
    %v3933 = vunpack.c.l.b16 %v3697
    %v3934 = vunpack.c.h.b16 %v3697
    %v3935 = vunpack.c.l.b16 %v3698
    %v3936 = vunpack.c.h.b16 %v3698
    %v3937 = vunpack.c.l.b16 %v3699
    %v3938 = vunpack.c.h.b16 %v3699
    %v3939 = vunpack.c.l.b16 %v3700
    %v3940 = vunpack.c.h.b16 %v3700
    %v3941 = vpack.c.b16 %v3879, %v3877
    %v3942 = vpack.c.b16 %v3880, %v3878
    %v3943 = vpack.c.b16 %v3883, %v3881
    %v3944 = vpack.c.b16 %v3884, %v3882
    %v3945 = vpack.c.b16 %v3887, %v3885
    %v3946 = vpack.c.b16 %v3888, %v3886
    %v3947 = vpack.c.b16 %v3891, %v3889
    %v3948 = vpack.c.b16 %v3892, %v3890
    %v3949 = vpack.c.b16 %v3895, %v3893
    %v3950 = vpack.c.b16 %v3896, %v3894
    %v3951 = vpack.c.b16 %v3899, %v3897
    %v3952 = vpack.c.b16 %v3900, %v3898
    %v3953 = vpack.c.b16 %v3903, %v3901
    %v3954 = vpack.c.b16 %v3904, %v3902
    %v3955 = vpack.c.b16 %v3907, %v3905
    %v3956 = vpack.c.b16 %v3908, %v3906
    %v3957 = vpack.c.b16 %v3911, %v3909
    %v3958 = vpack.c.b16 %v3912, %v3910
    %v3959 = vpack.c.b16 %v3915, %v3913
    %v3960 = vpack.c.b16 %v3916, %v3914
    %v3961 = vpack.c.b16 %v3919, %v3917
    %v3962 = vpack.c.b16 %v3920, %v3918
    %v3963 = vpack.c.b16 %v3923, %v3921
    %v3964 = vpack.c.b16 %v3924, %v3922
    %v3965 = vpack.c.b16 %v3927, %v3925
    %v3966 = vpack.c.b16 %v3928, %v3926
    %v3967 = vpack.c.b16 %v3931, %v3929
    %v3968 = vpack.c.b16 %v3932, %v3930
    %v3969 = vpack.c.b16 %v3935, %v3933
    %v3970 = vpack.c.b16 %v3936, %v3934
    %v3971 = vpack.c.b16 %v3939, %v3937
    %v3972 = vpack.c.b16 %v3940, %v3938
    %4005 = vmatpush.bf16.msra.mxu0 %v3708
    %4006 = vmatpush.bf16.msra.mxu0 %v3707
    %4007 = vmatpush.bf16.msra.mxu0 %v3706
    %4008 = vmatpush.bf16.msra.mxu0 %v3705
    %4009 = vmatpush.bf16.msra.mxu0 %v3704
    %4010 = vmatpush.bf16.msra.mxu0 %v3703
    %4011 = vmatpush.bf16.msra.mxu0 %v3702
    %4012 = vmatpush.bf16.msra.mxu0 %v3701
    %4013 = vmatmul.bf16.gmra.mxu0 %v3941
    %v4014 = vpop.f32.mrf.mxu0
    %v4015 = vadd.f32 %v3719, %v4014
    %v4016 = vpop.f32.mrf.mxu0
    %v4017 = vadd.f32 %v3723, %v4016
    %4018 = vmatmul.bf16.gmra.mxu0 %v3943
    %v4019 = vpop.f32.mrf.mxu0
    %v4020 = vadd.f32 %v3727, %v4019
    %v4021 = vpop.f32.mrf.mxu0
    %v4022 = vadd.f32 %v3731, %v4021
    %4023 = vmatmul.bf16.gmra.mxu0 %v3945
    %v4024 = vpop.f32.mrf.mxu0
    %v4025 = vadd.f32 %v3735, %v4024
    %v4026 = vpop.f32.mrf.mxu0
    %v4027 = vadd.f32 %v3739, %v4026
    %4028 = vmatmul.bf16.gmra.mxu0 %v3947
    %v4029 = vpop.f32.mrf.mxu0
    %v4030 = vadd.f32 %v3743, %v4029
    %v4031 = vpop.f32.mrf.mxu0
    %v4032 = vadd.f32 %v3747, %v4031
    %4033 = vmatmul.bf16.gmra.mxu0 %v3949
    %v4034 = vpop.f32.mrf.mxu0
    %v4035 = vadd.f32 %v3751, %v4034
    %v4036 = vpop.f32.mrf.mxu0
    %v4037 = vadd.f32 %v3755, %v4036
    %4038 = vmatmul.bf16.gmra.mxu0 %v3951
    %v4039 = vpop.f32.mrf.mxu0
    %v4040 = vadd.f32 %v3759, %v4039
    %v4041 = vpop.f32.mrf.mxu0
    %v4042 = vadd.f32 %v3763, %v4041
    %4043 = vmatmul.bf16.gmra.mxu0 %v3953
    %v4044 = vpop.f32.mrf.mxu0
    %v4045 = vadd.f32 %v3767, %v4044
    %v4046 = vpop.f32.mrf.mxu0
    %v4047 = vadd.f32 %v3771, %v4046
    %4048 = vmatmul.bf16.gmra.mxu0 %v3955
    %v4049 = vpop.f32.mrf.mxu0
    %v4050 = vadd.f32 %v3775, %v4049
    %v4051 = vpop.f32.mrf.mxu0
    %v4052 = vadd.f32 %v3779, %v4051
    %4053 = vmatmul.bf16.gmra.mxu0 %v3957
    %v4054 = vpop.f32.mrf.mxu0
    %v4055 = vadd.f32 %v3783, %v4054
    %v4056 = vpop.f32.mrf.mxu0
    %v4057 = vadd.f32 %v3787, %v4056
    %4058 = vmatmul.bf16.gmra.mxu0 %v3959
    %v4059 = vpop.f32.mrf.mxu0
    %v4060 = vadd.f32 %v3791, %v4059
    %v4061 = vpop.f32.mrf.mxu0
    %v4062 = vadd.f32 %v3795, %v4061
    %4063 = vmatmul.bf16.gmra.mxu0 %v3961
    %v4064 = vpop.f32.mrf.mxu0
    %v4065 = vadd.f32 %v3799, %v4064
    %v4066 = vpop.f32.mrf.mxu0
    %v4067 = vadd.f32 %v3803, %v4066
    %4068 = vmatmul.bf16.gmra.mxu0 %v3963
    %v4069 = vpop.f32.mrf.mxu0
    %v4070 = vadd.f32 %v3807, %v4069
    %v4071 = vpop.f32.mrf.mxu0
    %v4072 = vadd.f32 %v3811, %v4071
    %4073 = vmatmul.bf16.gmra.mxu0 %v3965
    %v4074 = vpop.f32.mrf.mxu0
    %v4075 = vadd.f32 %v3815, %v4074
    %v4076 = vpop.f32.mrf.mxu0
    %v4077 = vadd.f32 %v3819, %v4076
    %4078 = vmatmul.bf16.gmra.mxu0 %v3967
    %v4079 = vpop.f32.mrf.mxu0
    %v4080 = vadd.f32 %v3823, %v4079
    %v4081 = vpop.f32.mrf.mxu0
    %v4082 = vadd.f32 %v3827, %v4081
    %4083 = vmatmul.bf16.gmra.mxu0 %v3969
    %v4084 = vpop.f32.mrf.mxu0
    %v4085 = vadd.f32 %v3831, %v4084
    %v4086 = vpop.f32.mrf.mxu0
    %v4087 = vadd.f32 %v3835, %v4086
    %4088 = vmatmul.bf16.gmra.mxu0 %v3971
    %v4089 = vpop.f32.mrf.mxu0
    %v4090 = vadd.f32 %v3839, %v4089
    %v4091 = vpop.f32.mrf.mxu0
    %v4092 = vadd.f32 %v3843, %v4091
    %4093 = vdwg.mxu0
    %4094 = vmatpush.bf16.msra.mxu0 %v3716
    %4095 = vmatpush.bf16.msra.mxu0 %v3715
    %4096 = vmatpush.bf16.msra.mxu0 %v3714
    %4097 = vmatpush.bf16.msra.mxu0 %v3713
    %4098 = vmatpush.bf16.msra.mxu0 %v3712
    %4099 = vmatpush.bf16.msra.mxu0 %v3711
    %4100 = vmatpush.bf16.msra.mxu0 %v3710
    %4101 = vmatpush.bf16.msra.mxu0 %v3709
    %4102 = vmatmul.bf16.gmra.mxu0 %v3942
    %v4103 = vpop.f32.mrf.mxu0
    %v4104 = vadd.f32 %v4015, %v4103
    %v4105 = vpop.f32.mrf.mxu0
    %v4106 = vadd.f32 %v4017, %v4105
    %4107 = vmatmul.bf16.gmra.mxu0 %v3944
    %v4108 = vpop.f32.mrf.mxu0
    %v4109 = vadd.f32 %v4020, %v4108
    %v4110 = vpop.f32.mrf.mxu0
    %v4111 = vadd.f32 %v4022, %v4110
    %4112 = vmatmul.bf16.gmra.mxu0 %v3946
    %v4113 = vpop.f32.mrf.mxu0
    %v4114 = vadd.f32 %v4025, %v4113
    %v4115 = vpop.f32.mrf.mxu0
    %v4116 = vadd.f32 %v4027, %v4115
    %4117 = vmatmul.bf16.gmra.mxu0 %v3948
    %v4118 = vpop.f32.mrf.mxu0
    %v4119 = vadd.f32 %v4030, %v4118
    %v4120 = vpop.f32.mrf.mxu0
    %v4121 = vadd.f32 %v4032, %v4120
    %4122 = vmatmul.bf16.gmra.mxu0 %v3950
    %v4123 = vpop.f32.mrf.mxu0
    %v4124 = vadd.f32 %v4035, %v4123
    %v4125 = vpop.f32.mrf.mxu0
    %v4126 = vadd.f32 %v4037, %v4125
    %4127 = vmatmul.bf16.gmra.mxu0 %v3952
    %v4128 = vpop.f32.mrf.mxu0
    %v4129 = vadd.f32 %v4040, %v4128
    %v4130 = vpop.f32.mrf.mxu0
    %v4131 = vadd.f32 %v4042, %v4130
    %4132 = vmatmul.bf16.gmra.mxu0 %v3954
    %v4133 = vpop.f32.mrf.mxu0
    %v4134 = vadd.f32 %v4045, %v4133
    %v4135 = vpop.f32.mrf.mxu0
    %v4136 = vadd.f32 %v4047, %v4135
    %4137 = vmatmul.bf16.gmra.mxu0 %v3956
    %v4138 = vpop.f32.mrf.mxu0
    %v4139 = vadd.f32 %v4050, %v4138
    %v4140 = vpop.f32.mrf.mxu0
    %v4141 = vadd.f32 %v4052, %v4140
    %4142 = vmatmul.bf16.gmra.mxu0 %v3958
    %v4143 = vpop.f32.mrf.mxu0
    %v4144 = vadd.f32 %v4055, %v4143
    %v4145 = vpop.f32.mrf.mxu0
    %v4146 = vadd.f32 %v4057, %v4145
    %4147 = vmatmul.bf16.gmra.mxu0 %v3960
    %v4148 = vpop.f32.mrf.mxu0
    %v4149 = vadd.f32 %v4060, %v4148
    %v4150 = vpop.f32.mrf.mxu0
    %v4151 = vadd.f32 %v4062, %v4150
    %4152 = vmatmul.bf16.gmra.mxu0 %v3962
    %v4153 = vpop.f32.mrf.mxu0
    %v4154 = vadd.f32 %v4065, %v4153
    %v4155 = vpop.f32.mrf.mxu0
    %v4156 = vadd.f32 %v4067, %v4155
    %4157 = vmatmul.bf16.gmra.mxu0 %v3964
    %v4158 = vpop.f32.mrf.mxu0
    %v4159 = vadd.f32 %v4070, %v4158
    %v4160 = vpop.f32.mrf.mxu0
    %v4161 = vadd.f32 %v4072, %v4160
    %4162 = vmatmul.bf16.gmra.mxu0 %v3966
    %v4163 = vpop.f32.mrf.mxu0
    %v4164 = vadd.f32 %v4075, %v4163
    %v4165 = vpop.f32.mrf.mxu0
    %v4166 = vadd.f32 %v4077, %v4165
    %4167 = vmatmul.bf16.gmra.mxu0 %v3968
    %v4168 = vpop.f32.mrf.mxu0
    %v4169 = vadd.f32 %v4080, %v4168
    %v4170 = vpop.f32.mrf.mxu0
    %v4171 = vadd.f32 %v4082, %v4170
    %4172 = vmatmul.bf16.gmra.mxu0 %v3970
    %v4173 = vpop.f32.mrf.mxu0
    %v4174 = vadd.f32 %v4085, %v4173
    %v4175 = vpop.f32.mrf.mxu0
    %v4176 = vadd.f32 %v4087, %v4175
    %4177 = vmatmul.bf16.gmra.mxu0 %v3972
    %v4178 = vpop.f32.mrf.mxu0
    %v4179 = vadd.f32 %v4090, %v4178
    %v4180 = vpop.f32.mrf.mxu0
    %v4181 = vadd.f32 %v4092, %v4180
    %4182 = vdwg.mxu0
    %v4183 = vmax.f32 %v4104, 0.0
    %v4184 = vmax.f32 %v4106, 0.0
    %v4185 = vmax.f32 %v4109, 0.0
    %v4186 = vmax.f32 %v4111, 0.0
    %v4187 = vmax.f32 %v4114, 0.0
    %v4188 = vmax.f32 %v4116, 0.0
    %v4189 = vmax.f32 %v4119, 0.0
    %v4190 = vmax.f32 %v4121, 0.0
    %v4191 = vmax.f32 %v4124, 0.0
    %v4192 = vmax.f32 %v4126, 0.0
    %v4193 = vmax.f32 %v4129, 0.0
    %v4194 = vmax.f32 %v4131, 0.0
    %v4195 = vmax.f32 %v4134, 0.0
    %v4196 = vmax.f32 %v4136, 0.0
    %v4197 = vmax.f32 %v4139, 0.0
    %v4198 = vmax.f32 %v4141, 0.0
    %v4199 = vmax.f32 %v4144, 0.0
    %v4200 = vmax.f32 %v4146, 0.0
    %v4201 = vmax.f32 %v4149, 0.0
    %v4202 = vmax.f32 %v4151, 0.0
    %v4203 = vmax.f32 %v4154, 0.0
    %v4204 = vmax.f32 %v4156, 0.0
    %v4205 = vmax.f32 %v4159, 0.0
    %v4206 = vmax.f32 %v4161, 0.0
    %v4207 = vmax.f32 %v4164, 0.0
    %v4208 = vmax.f32 %v4166, 0.0
    %v4209 = vmax.f32 %v4169, 0.0
    %v4210 = vmax.f32 %v4171, 0.0
    %v4211 = vmax.f32 %v4174, 0.0
    %v4212 = vmax.f32 %v4176, 0.0
    %v4213 = vmax.f32 %v4179, 0.0
    %v4214 = vmax.f32 %v4181, 0.0
    %v4215 = vadd.f32 %v3636, %v4183
    %v4216 = vadd.f32 %v3637, %v4184
    %v4217 = vadd.f32 %v3638, %v4185
    %v4218 = vadd.f32 %v3639, %v4186
    %v4219 = vadd.f32 %v3640, %v4187
    %v4220 = vadd.f32 %v3641, %v4188
    %v4221 = vadd.f32 %v3642, %v4189
    %v4222 = vadd.f32 %v3643, %v4190
    %v4223 = vadd.f32 %v3644, %v4191
    %v4224 = vadd.f32 %v3645, %v4192
    %v4225 = vadd.f32 %v3646, %v4193
    %v4226 = vadd.f32 %v3647, %v4194
    %v4227 = vadd.f32 %v3648, %v4195
    %v4228 = vadd.f32 %v3649, %v4196
    %v4229 = vadd.f32 %v3650, %v4197
    %v4230 = vadd.f32 %v3651, %v4198
    %v4231 = vadd.f32 %v3652, %v4199
    %v4232 = vadd.f32 %v3653, %v4200
    %v4233 = vadd.f32 %v3654, %v4201
    %v4234 = vadd.f32 %v3655, %v4202
    %v4235 = vadd.f32 %v3656, %v4203
    %v4236 = vadd.f32 %v3657, %v4204
    %v4237 = vadd.f32 %v3658, %v4205
    %v4238 = vadd.f32 %v3659, %v4206
    %v4239 = vadd.f32 %v3660, %v4207
    %v4240 = vadd.f32 %v3661, %v4208
    %v4241 = vadd.f32 %v3662, %v4209
    %v4242 = vadd.f32 %v3663, %v4210
    %v4243 = vadd.f32 %v3664, %v4211
    %v4244 = vadd.f32 %v3665, %v4212
    %v4245 = vadd.f32 %v3666, %v4213
    %v4246 = vadd.f32 %v3667, %v4214
    %s4247 = scalar_lea.vmem [#allocation2], 1536
    %v4248 = vld [vmem:[%s4247] sm:$0xff]
    %v4249 = vld [vmem:[%s4247 + $0x8] sm:$0xff]
    %v4250 = vld [vmem:[%s4247 + $0x10] sm:$0xff]
    %v4251 = vld [vmem:[%s4247 + $0x18] sm:$0xff]
    %v4252 = vld [vmem:[%s4247 + $0x20] sm:$0xff]
    %v4253 = vld [vmem:[%s4247 + $0x28] sm:$0xff]
    %v4254 = vld [vmem:[%s4247 + $0x30] sm:$0xff]
    %v4255 = vld [vmem:[%s4247 + $0x38] sm:$0xff]
    %v4256 = vld [vmem:[%s4247 + $0x40] sm:$0xff]
    %v4257 = vld [vmem:[%s4247 + $0x48] sm:$0xff]
    %v4258 = vld [vmem:[%s4247 + $0x50] sm:$0xff]
    %v4259 = vld [vmem:[%s4247 + $0x58] sm:$0xff]
    %v4260 = vld [vmem:[%s4247 + $0x60] sm:$0xff]
    %v4261 = vld [vmem:[%s4247 + $0x68] sm:$0xff]
    %v4262 = vld [vmem:[%s4247 + $0x70] sm:$0xff]
    %v4263 = vld [vmem:[%s4247 + $0x78] sm:$0xff]
    %v4264 = vld [vmem:[%s4247 + $0x80] sm:$0xff]
    %v4265 = vld [vmem:[%s4247 + $0x88] sm:$0xff]
    %v4266 = vld [vmem:[%s4247 + $0x90] sm:$0xff]
    %v4267 = vld [vmem:[%s4247 + $0x98] sm:$0xff]
    %v4268 = vld [vmem:[%s4247 + $0xa0] sm:$0xff]
    %v4269 = vld [vmem:[%s4247 + $0xa8] sm:$0xff]
    %v4270 = vld [vmem:[%s4247 + $0xb0] sm:$0xff]
    %v4271 = vld [vmem:[%s4247 + $0xb8] sm:$0xff]
    %v4272 = vld [vmem:[%s4247 + $0xc0] sm:$0xff]
    %v4273 = vld [vmem:[%s4247 + $0xc8] sm:$0xff]
    %v4274 = vld [vmem:[%s4247 + $0xd0] sm:$0xff]
    %v4275 = vld [vmem:[%s4247 + $0xd8] sm:$0xff]
    %v4276 = vld [vmem:[%s4247 + $0xe0] sm:$0xff]
    %v4277 = vld [vmem:[%s4247 + $0xe8] sm:$0xff]
    %v4278 = vld [vmem:[%s4247 + $0xf0] sm:$0xff]
    %v4279 = vld [vmem:[%s4247 + $0xf8] sm:$0xff]
    %v4280 = vpack.c.bf16 %v4216, %v4215
    %v4281 = vpack.c.bf16 %v4218, %v4217
    %v4282 = vpack.c.bf16 %v4220, %v4219
    %v4283 = vpack.c.bf16 %v4222, %v4221
    %v4284 = vpack.c.bf16 %v4224, %v4223
    %v4285 = vpack.c.bf16 %v4226, %v4225
    %v4286 = vpack.c.bf16 %v4228, %v4227
    %v4287 = vpack.c.bf16 %v4230, %v4229
    %v4288 = vpack.c.bf16 %v4232, %v4231
    %v4289 = vpack.c.bf16 %v4234, %v4233
    %v4290 = vpack.c.bf16 %v4236, %v4235
    %v4291 = vpack.c.bf16 %v4238, %v4237
    %v4292 = vpack.c.bf16 %v4240, %v4239
    %v4293 = vpack.c.bf16 %v4242, %v4241
    %v4294 = vpack.c.bf16 %v4244, %v4243
    %v4295 = vpack.c.bf16 %v4246, %v4245
    %4296 = vset.pattern.permute.xlu0 7
    %4297 = vperm.xlu0 %4296, %v116
    %v4298 = vpop.permute.xlu0 %4297
    %4300 = vset.pattern.permute.xlu0 7
    %4301 = vperm.xlu0 %4300, %v117
    %v4302 = vpop.permute.xlu0 %4301
    %4304 = vset.pattern.permute.xlu0 7
    %4305 = vperm.xlu0 %4304, %v118
    %v4306 = vpop.permute.xlu0 %4305
    %4308 = vset.pattern.permute.xlu0 7
    %4309 = vperm.xlu0 %4308, %v119
    %v4310 = vpop.permute.xlu0 %4309
    %4312 = vset.pattern.permute.xlu0 7
    %4313 = vperm.xlu0 %4312, %v120
    %v4314 = vpop.permute.xlu0 %4313
    %4316 = vset.pattern.permute.xlu0 7
    %4317 = vperm.xlu0 %4316, %v121
    %v4318 = vpop.permute.xlu0 %4317
    %4320 = vset.pattern.permute.xlu0 7
    %4321 = vperm.xlu0 %4320, %v122
    %v4322 = vpop.permute.xlu0 %4321
    %4324 = vset.pattern.permute.xlu0 7
    %4325 = vperm.xlu0 %4324, %v123
    %v4326 = vpop.permute.xlu0 %4325
    %4328 = vset.pattern.permute.xlu0 7
    %4329 = vperm.xlu0 %4328, %v124
    %v4330 = vpop.permute.xlu0 %4329
    %4332 = vset.pattern.permute.xlu0 7
    %4333 = vperm.xlu0 %4332, %v125
    %v4334 = vpop.permute.xlu0 %4333
    %4336 = vset.pattern.permute.xlu0 7
    %4337 = vperm.xlu0 %4336, %v126
    %v4338 = vpop.permute.xlu0 %4337
    %4340 = vset.pattern.permute.xlu0 7
    %4341 = vperm.xlu0 %4340, %v127
    %v4342 = vpop.permute.xlu0 %4341
    %4344 = vset.pattern.permute.xlu0 7
    %4345 = vperm.xlu0 %4344, %v128
    %v4346 = vpop.permute.xlu0 %4345
    %4348 = vset.pattern.permute.xlu0 7
    %4349 = vperm.xlu0 %4348, %v129
    %v4350 = vpop.permute.xlu0 %4349
    %4352 = vset.pattern.permute.xlu0 7
    %4353 = vperm.xlu0 %4352, %v130
    %v4354 = vpop.permute.xlu0 %4353
    %4356 = vset.pattern.permute.xlu0 7
    %4357 = vperm.xlu0 %4356, %v131
    %v4358 = vpop.permute.xlu0 %4357
    %4360 = vset.pattern.permute.xlu0 7
    %4361 = vperm.xlu0 %4360, %v132
    %v4362 = vpop.permute.xlu0 %4361
    %4364 = vset.pattern.permute.xlu0 7
    %4365 = vperm.xlu0 %4364, %v133
    %v4366 = vpop.permute.xlu0 %4365
    %4368 = vset.pattern.permute.xlu0 7
    %4369 = vperm.xlu0 %4368, %v134
    %v4370 = vpop.permute.xlu0 %4369
    %4372 = vset.pattern.permute.xlu0 7
    %4373 = vperm.xlu0 %4372, %v135
    %v4374 = vpop.permute.xlu0 %4373
    %4376 = vset.pattern.permute.xlu0 7
    %4377 = vperm.xlu0 %4376, %v136
    %v4378 = vpop.permute.xlu0 %4377
    %4380 = vset.pattern.permute.xlu0 7
    %4381 = vperm.xlu0 %4380, %v137
    %v4382 = vpop.permute.xlu0 %4381
    %4384 = vset.pattern.permute.xlu0 7
    %4385 = vperm.xlu0 %4384, %v138
    %v4386 = vpop.permute.xlu0 %4385
    %4388 = vset.pattern.permute.xlu0 7
    %4389 = vperm.xlu0 %4388, %v139
    %v4390 = vpop.permute.xlu0 %4389
    %4392 = vset.pattern.permute.xlu0 7
    %4393 = vperm.xlu0 %4392, %v140
    %v4394 = vpop.permute.xlu0 %4393
    %4396 = vset.pattern.permute.xlu0 7
    %4397 = vperm.xlu0 %4396, %v141
    %v4398 = vpop.permute.xlu0 %4397
    %4400 = vset.pattern.permute.xlu0 7
    %4401 = vperm.xlu0 %4400, %v142
    %v4402 = vpop.permute.xlu0 %4401
    %4404 = vset.pattern.permute.xlu0 7
    %4405 = vperm.xlu0 %4404, %v143
    %v4406 = vpop.permute.xlu0 %4405
    %4408 = vset.pattern.permute.xlu0 7
    %4409 = vperm.xlu0 %4408, %v144
    %v4410 = vpop.permute.xlu0 %4409
    %4412 = vset.pattern.permute.xlu0 7
    %4413 = vperm.xlu0 %4412, %v145
    %v4414 = vpop.permute.xlu0 %4413
    %4416 = vset.pattern.permute.xlu0 7
    %4417 = vperm.xlu0 %4416, %v146
    %v4418 = vpop.permute.xlu0 %4417
    %4420 = vset.pattern.permute.xlu0 7
    %4421 = vperm.xlu0 %4420, %v147
    %v4422 = vpop.permute.xlu0 %4421
    %v4456 = vunpack.c.l.b16 %v4248
    %v4457 = vunpack.c.h.b16 %v4248
    %v4458 = vunpack.c.l.b16 %v4249
    %v4459 = vunpack.c.h.b16 %v4249
    %v4460 = vunpack.c.l.b16 %v4250
    %v4461 = vunpack.c.h.b16 %v4250
    %v4462 = vunpack.c.l.b16 %v4251
    %v4463 = vunpack.c.h.b16 %v4251
    %v4464 = vunpack.c.l.b16 %v4252
    %v4465 = vunpack.c.h.b16 %v4252
    %v4466 = vunpack.c.l.b16 %v4253
    %v4467 = vunpack.c.h.b16 %v4253
    %v4468 = vunpack.c.l.b16 %v4254
    %v4469 = vunpack.c.h.b16 %v4254
    %v4470 = vunpack.c.l.b16 %v4255
    %v4471 = vunpack.c.h.b16 %v4255
    %v4472 = vunpack.c.l.b16 %v4256
    %v4473 = vunpack.c.h.b16 %v4256
    %v4474 = vunpack.c.l.b16 %v4257
    %v4475 = vunpack.c.h.b16 %v4257
    %v4476 = vunpack.c.l.b16 %v4258
    %v4477 = vunpack.c.h.b16 %v4258
    %v4478 = vunpack.c.l.b16 %v4259
    %v4479 = vunpack.c.h.b16 %v4259
    %v4480 = vunpack.c.l.b16 %v4260
    %v4481 = vunpack.c.h.b16 %v4260
    %v4482 = vunpack.c.l.b16 %v4261
    %v4483 = vunpack.c.h.b16 %v4261
    %v4484 = vunpack.c.l.b16 %v4262
    %v4485 = vunpack.c.h.b16 %v4262
    %v4486 = vunpack.c.l.b16 %v4263
    %v4487 = vunpack.c.h.b16 %v4263
    %v4488 = vunpack.c.l.b16 %v4264
    %v4489 = vunpack.c.h.b16 %v4264
    %v4490 = vunpack.c.l.b16 %v4265
    %v4491 = vunpack.c.h.b16 %v4265
    %v4492 = vunpack.c.l.b16 %v4266
    %v4493 = vunpack.c.h.b16 %v4266
    %v4494 = vunpack.c.l.b16 %v4267
    %v4495 = vunpack.c.h.b16 %v4267
    %v4496 = vunpack.c.l.b16 %v4268
    %v4497 = vunpack.c.h.b16 %v4268
    %v4498 = vunpack.c.l.b16 %v4269
    %v4499 = vunpack.c.h.b16 %v4269
    %v4500 = vunpack.c.l.b16 %v4270
    %v4501 = vunpack.c.h.b16 %v4270
    %v4502 = vunpack.c.l.b16 %v4271
    %v4503 = vunpack.c.h.b16 %v4271
    %v4504 = vunpack.c.l.b16 %v4272
    %v4505 = vunpack.c.h.b16 %v4272
    %v4506 = vunpack.c.l.b16 %v4273
    %v4507 = vunpack.c.h.b16 %v4273
    %v4508 = vunpack.c.l.b16 %v4274
    %v4509 = vunpack.c.h.b16 %v4274
    %v4510 = vunpack.c.l.b16 %v4275
    %v4511 = vunpack.c.h.b16 %v4275
    %v4512 = vunpack.c.l.b16 %v4276
    %v4513 = vunpack.c.h.b16 %v4276
    %v4514 = vunpack.c.l.b16 %v4277
    %v4515 = vunpack.c.h.b16 %v4277
    %v4516 = vunpack.c.l.b16 %v4278
    %v4517 = vunpack.c.h.b16 %v4278
    %v4518 = vunpack.c.l.b16 %v4279
    %v4519 = vunpack.c.h.b16 %v4279
    %v4520 = vpack.c.b16 %v4458, %v4456
    %v4521 = vpack.c.b16 %v4459, %v4457
    %v4522 = vpack.c.b16 %v4462, %v4460
    %v4523 = vpack.c.b16 %v4463, %v4461
    %v4524 = vpack.c.b16 %v4466, %v4464
    %v4525 = vpack.c.b16 %v4467, %v4465
    %v4526 = vpack.c.b16 %v4470, %v4468
    %v4527 = vpack.c.b16 %v4471, %v4469
    %v4528 = vpack.c.b16 %v4474, %v4472
    %v4529 = vpack.c.b16 %v4475, %v4473
    %v4530 = vpack.c.b16 %v4478, %v4476
    %v4531 = vpack.c.b16 %v4479, %v4477
    %v4532 = vpack.c.b16 %v4482, %v4480
    %v4533 = vpack.c.b16 %v4483, %v4481
    %v4534 = vpack.c.b16 %v4486, %v4484
    %v4535 = vpack.c.b16 %v4487, %v4485
    %v4536 = vpack.c.b16 %v4490, %v4488
    %v4537 = vpack.c.b16 %v4491, %v4489
    %v4538 = vpack.c.b16 %v4494, %v4492
    %v4539 = vpack.c.b16 %v4495, %v4493
    %v4540 = vpack.c.b16 %v4498, %v4496
    %v4541 = vpack.c.b16 %v4499, %v4497
    %v4542 = vpack.c.b16 %v4502, %v4500
    %v4543 = vpack.c.b16 %v4503, %v4501
    %v4544 = vpack.c.b16 %v4506, %v4504
    %v4545 = vpack.c.b16 %v4507, %v4505
    %v4546 = vpack.c.b16 %v4510, %v4508
    %v4547 = vpack.c.b16 %v4511, %v4509
    %v4548 = vpack.c.b16 %v4514, %v4512
    %v4549 = vpack.c.b16 %v4515, %v4513
    %v4550 = vpack.c.b16 %v4518, %v4516
    %v4551 = vpack.c.b16 %v4519, %v4517
    %4584 = vmatpush.bf16.msra.mxu0 %v4287
    %4585 = vmatpush.bf16.msra.mxu0 %v4286
    %4586 = vmatpush.bf16.msra.mxu0 %v4285
    %4587 = vmatpush.bf16.msra.mxu0 %v4284
    %4588 = vmatpush.bf16.msra.mxu0 %v4283
    %4589 = vmatpush.bf16.msra.mxu0 %v4282
    %4590 = vmatpush.bf16.msra.mxu0 %v4281
    %4591 = vmatpush.bf16.msra.mxu0 %v4280
    %4592 = vmatmul.bf16.gmra.mxu0 %v4520
    %v4593 = vpop.f32.mrf.mxu0
    %v4594 = vadd.f32 %v4298, %v4593
    %v4595 = vpop.f32.mrf.mxu0
    %v4596 = vadd.f32 %v4302, %v4595
    %4597 = vmatmul.bf16.gmra.mxu0 %v4522
    %v4598 = vpop.f32.mrf.mxu0
    %v4599 = vadd.f32 %v4306, %v4598
    %v4600 = vpop.f32.mrf.mxu0
    %v4601 = vadd.f32 %v4310, %v4600
    %4602 = vmatmul.bf16.gmra.mxu0 %v4524
    %v4603 = vpop.f32.mrf.mxu0
    %v4604 = vadd.f32 %v4314, %v4603
    %v4605 = vpop.f32.mrf.mxu0
    %v4606 = vadd.f32 %v4318, %v4605
    %4607 = vmatmul.bf16.gmra.mxu0 %v4526
    %v4608 = vpop.f32.mrf.mxu0
    %v4609 = vadd.f32 %v4322, %v4608
    %v4610 = vpop.f32.mrf.mxu0
    %v4611 = vadd.f32 %v4326, %v4610
    %4612 = vmatmul.bf16.gmra.mxu0 %v4528
    %v4613 = vpop.f32.mrf.mxu0
    %v4614 = vadd.f32 %v4330, %v4613
    %v4615 = vpop.f32.mrf.mxu0
    %v4616 = vadd.f32 %v4334, %v4615
    %4617 = vmatmul.bf16.gmra.mxu0 %v4530
    %v4618 = vpop.f32.mrf.mxu0
    %v4619 = vadd.f32 %v4338, %v4618
    %v4620 = vpop.f32.mrf.mxu0
    %v4621 = vadd.f32 %v4342, %v4620
    %4622 = vmatmul.bf16.gmra.mxu0 %v4532
    %v4623 = vpop.f32.mrf.mxu0
    %v4624 = vadd.f32 %v4346, %v4623
    %v4625 = vpop.f32.mrf.mxu0
    %v4626 = vadd.f32 %v4350, %v4625
    %4627 = vmatmul.bf16.gmra.mxu0 %v4534
    %v4628 = vpop.f32.mrf.mxu0
    %v4629 = vadd.f32 %v4354, %v4628
    %v4630 = vpop.f32.mrf.mxu0
    %v4631 = vadd.f32 %v4358, %v4630
    %4632 = vmatmul.bf16.gmra.mxu0 %v4536
    %v4633 = vpop.f32.mrf.mxu0
    %v4634 = vadd.f32 %v4362, %v4633
    %v4635 = vpop.f32.mrf.mxu0
    %v4636 = vadd.f32 %v4366, %v4635
    %4637 = vmatmul.bf16.gmra.mxu0 %v4538
    %v4638 = vpop.f32.mrf.mxu0
    %v4639 = vadd.f32 %v4370, %v4638
    %v4640 = vpop.f32.mrf.mxu0
    %v4641 = vadd.f32 %v4374, %v4640
    %4642 = vmatmul.bf16.gmra.mxu0 %v4540
    %v4643 = vpop.f32.mrf.mxu0
    %v4644 = vadd.f32 %v4378, %v4643
    %v4645 = vpop.f32.mrf.mxu0
    %v4646 = vadd.f32 %v4382, %v4645
    %4647 = vmatmul.bf16.gmra.mxu0 %v4542
    %v4648 = vpop.f32.mrf.mxu0
    %v4649 = vadd.f32 %v4386, %v4648
    %v4650 = vpop.f32.mrf.mxu0
    %v4651 = vadd.f32 %v4390, %v4650
    %4652 = vmatmul.bf16.gmra.mxu0 %v4544
    %v4653 = vpop.f32.mrf.mxu0
    %v4654 = vadd.f32 %v4394, %v4653
    %v4655 = vpop.f32.mrf.mxu0
    %v4656 = vadd.f32 %v4398, %v4655
    %4657 = vmatmul.bf16.gmra.mxu0 %v4546
    %v4658 = vpop.f32.mrf.mxu0
    %v4659 = vadd.f32 %v4402, %v4658
    %v4660 = vpop.f32.mrf.mxu0
    %v4661 = vadd.f32 %v4406, %v4660
    %4662 = vmatmul.bf16.gmra.mxu0 %v4548
    %v4663 = vpop.f32.mrf.mxu0
    %v4664 = vadd.f32 %v4410, %v4663
    %v4665 = vpop.f32.mrf.mxu0
    %v4666 = vadd.f32 %v4414, %v4665
    %4667 = vmatmul.bf16.gmra.mxu0 %v4550
    %v4668 = vpop.f32.mrf.mxu0
    %v4669 = vadd.f32 %v4418, %v4668
    %v4670 = vpop.f32.mrf.mxu0
    %v4671 = vadd.f32 %v4422, %v4670
    %4672 = vdwg.mxu0
    %4673 = vmatpush.bf16.msra.mxu0 %v4295
    %4674 = vmatpush.bf16.msra.mxu0 %v4294
    %4675 = vmatpush.bf16.msra.mxu0 %v4293
    %4676 = vmatpush.bf16.msra.mxu0 %v4292
    %4677 = vmatpush.bf16.msra.mxu0 %v4291
    %4678 = vmatpush.bf16.msra.mxu0 %v4290
    %4679 = vmatpush.bf16.msra.mxu0 %v4289
    %4680 = vmatpush.bf16.msra.mxu0 %v4288
    %4681 = vmatmul.bf16.gmra.mxu0 %v4521
    %v4682 = vpop.f32.mrf.mxu0
    %v4683 = vadd.f32 %v4594, %v4682
    %v4684 = vpop.f32.mrf.mxu0
    %v4685 = vadd.f32 %v4596, %v4684
    %4686 = vmatmul.bf16.gmra.mxu0 %v4523
    %v4687 = vpop.f32.mrf.mxu0
    %v4688 = vadd.f32 %v4599, %v4687
    %v4689 = vpop.f32.mrf.mxu0
    %v4690 = vadd.f32 %v4601, %v4689
    %4691 = vmatmul.bf16.gmra.mxu0 %v4525
    %v4692 = vpop.f32.mrf.mxu0
    %v4693 = vadd.f32 %v4604, %v4692
    %v4694 = vpop.f32.mrf.mxu0
    %v4695 = vadd.f32 %v4606, %v4694
    %4696 = vmatmul.bf16.gmra.mxu0 %v4527
    %v4697 = vpop.f32.mrf.mxu0
    %v4698 = vadd.f32 %v4609, %v4697
    %v4699 = vpop.f32.mrf.mxu0
    %v4700 = vadd.f32 %v4611, %v4699
    %4701 = vmatmul.bf16.gmra.mxu0 %v4529
    %v4702 = vpop.f32.mrf.mxu0
    %v4703 = vadd.f32 %v4614, %v4702
    %v4704 = vpop.f32.mrf.mxu0
    %v4705 = vadd.f32 %v4616, %v4704
    %4706 = vmatmul.bf16.gmra.mxu0 %v4531
    %v4707 = vpop.f32.mrf.mxu0
    %v4708 = vadd.f32 %v4619, %v4707
    %v4709 = vpop.f32.mrf.mxu0
    %v4710 = vadd.f32 %v4621, %v4709
    %4711 = vmatmul.bf16.gmra.mxu0 %v4533
    %v4712 = vpop.f32.mrf.mxu0
    %v4713 = vadd.f32 %v4624, %v4712
    %v4714 = vpop.f32.mrf.mxu0
    %v4715 = vadd.f32 %v4626, %v4714
    %4716 = vmatmul.bf16.gmra.mxu0 %v4535
    %v4717 = vpop.f32.mrf.mxu0
    %v4718 = vadd.f32 %v4629, %v4717
    %v4719 = vpop.f32.mrf.mxu0
    %v4720 = vadd.f32 %v4631, %v4719
    %4721 = vmatmul.bf16.gmra.mxu0 %v4537
    %v4722 = vpop.f32.mrf.mxu0
    %v4723 = vadd.f32 %v4634, %v4722
    %v4724 = vpop.f32.mrf.mxu0
    %v4725 = vadd.f32 %v4636, %v4724
    %4726 = vmatmul.bf16.gmra.mxu0 %v4539
    %v4727 = vpop.f32.mrf.mxu0
    %v4728 = vadd.f32 %v4639, %v4727
    %v4729 = vpop.f32.mrf.mxu0
    %v4730 = vadd.f32 %v4641, %v4729
    %4731 = vmatmul.bf16.gmra.mxu0 %v4541
    %v4732 = vpop.f32.mrf.mxu0
    %v4733 = vadd.f32 %v4644, %v4732
    %v4734 = vpop.f32.mrf.mxu0
    %v4735 = vadd.f32 %v4646, %v4734
    %4736 = vmatmul.bf16.gmra.mxu0 %v4543
    %v4737 = vpop.f32.mrf.mxu0
    %v4738 = vadd.f32 %v4649, %v4737
    %v4739 = vpop.f32.mrf.mxu0
    %v4740 = vadd.f32 %v4651, %v4739
    %4741 = vmatmul.bf16.gmra.mxu0 %v4545
    %v4742 = vpop.f32.mrf.mxu0
    %v4743 = vadd.f32 %v4654, %v4742
    %v4744 = vpop.f32.mrf.mxu0
    %v4745 = vadd.f32 %v4656, %v4744
    %4746 = vmatmul.bf16.gmra.mxu0 %v4547
    %v4747 = vpop.f32.mrf.mxu0
    %v4748 = vadd.f32 %v4659, %v4747
    %v4749 = vpop.f32.mrf.mxu0
    %v4750 = vadd.f32 %v4661, %v4749
    %4751 = vmatmul.bf16.gmra.mxu0 %v4549
    %v4752 = vpop.f32.mrf.mxu0
    %v4753 = vadd.f32 %v4664, %v4752
    %v4754 = vpop.f32.mrf.mxu0
    %v4755 = vadd.f32 %v4666, %v4754
    %4756 = vmatmul.bf16.gmra.mxu0 %v4551
    %v4757 = vpop.f32.mrf.mxu0
    %v4758 = vadd.f32 %v4669, %v4757
    %v4759 = vpop.f32.mrf.mxu0
    %v4760 = vadd.f32 %v4671, %v4759
    %4761 = vdwg.mxu0
    %v4762 = vmax.f32 %v4683, 0.0
    %v4763 = vmax.f32 %v4685, 0.0
    %v4764 = vmax.f32 %v4688, 0.0
    %v4765 = vmax.f32 %v4690, 0.0
    %v4766 = vmax.f32 %v4693, 0.0
    %v4767 = vmax.f32 %v4695, 0.0
    %v4768 = vmax.f32 %v4698, 0.0
    %v4769 = vmax.f32 %v4700, 0.0
    %v4770 = vmax.f32 %v4703, 0.0
    %v4771 = vmax.f32 %v4705, 0.0
    %v4772 = vmax.f32 %v4708, 0.0
    %v4773 = vmax.f32 %v4710, 0.0
    %v4774 = vmax.f32 %v4713, 0.0
    %v4775 = vmax.f32 %v4715, 0.0
    %v4776 = vmax.f32 %v4718, 0.0
    %v4777 = vmax.f32 %v4720, 0.0
    %v4778 = vmax.f32 %v4723, 0.0
    %v4779 = vmax.f32 %v4725, 0.0
    %v4780 = vmax.f32 %v4728, 0.0
    %v4781 = vmax.f32 %v4730, 0.0
    %v4782 = vmax.f32 %v4733, 0.0
    %v4783 = vmax.f32 %v4735, 0.0
    %v4784 = vmax.f32 %v4738, 0.0
    %v4785 = vmax.f32 %v4740, 0.0
    %v4786 = vmax.f32 %v4743, 0.0
    %v4787 = vmax.f32 %v4745, 0.0
    %v4788 = vmax.f32 %v4748, 0.0
    %v4789 = vmax.f32 %v4750, 0.0
    %v4790 = vmax.f32 %v4753, 0.0
    %v4791 = vmax.f32 %v4755, 0.0
    %v4792 = vmax.f32 %v4758, 0.0
    %v4793 = vmax.f32 %v4760, 0.0
    %v4794 = vadd.f32 %v4215, %v4762
    %v4795 = vadd.f32 %v4216, %v4763
    %v4796 = vadd.f32 %v4217, %v4764
    %v4797 = vadd.f32 %v4218, %v4765
    %v4798 = vadd.f32 %v4219, %v4766
    %v4799 = vadd.f32 %v4220, %v4767
    %v4800 = vadd.f32 %v4221, %v4768
    %v4801 = vadd.f32 %v4222, %v4769
    %v4802 = vadd.f32 %v4223, %v4770
    %v4803 = vadd.f32 %v4224, %v4771
    %v4804 = vadd.f32 %v4225, %v4772
    %v4805 = vadd.f32 %v4226, %v4773
    %v4806 = vadd.f32 %v4227, %v4774
    %v4807 = vadd.f32 %v4228, %v4775
    %v4808 = vadd.f32 %v4229, %v4776
    %v4809 = vadd.f32 %v4230, %v4777
    %v4810 = vadd.f32 %v4231, %v4778
    %v4811 = vadd.f32 %v4232, %v4779
    %v4812 = vadd.f32 %v4233, %v4780
    %v4813 = vadd.f32 %v4234, %v4781
    %v4814 = vadd.f32 %v4235, %v4782
    %v4815 = vadd.f32 %v4236, %v4783
    %v4816 = vadd.f32 %v4237, %v4784
    %v4817 = vadd.f32 %v4238, %v4785
    %v4818 = vadd.f32 %v4239, %v4786
    %v4819 = vadd.f32 %v4240, %v4787
    %v4820 = vadd.f32 %v4241, %v4788
    %v4821 = vadd.f32 %v4242, %v4789
    %v4822 = vadd.f32 %v4243, %v4790
    %v4823 = vadd.f32 %v4244, %v4791
    %v4824 = vadd.f32 %v4245, %v4792
    %v4825 = vadd.f32 %v4246, %v4793
    %v4826 = vld [vmem:[%s3] sm:$0xff]
    %v4827 = vpack.c.bf16 %v4795, %v4794
    %v4828 = vpack.c.bf16 %v4797, %v4796
    %v4829 = vpack.c.bf16 %v4799, %v4798
    %v4830 = vpack.c.bf16 %v4801, %v4800
    %v4831 = vpack.c.bf16 %v4803, %v4802
    %v4832 = vpack.c.bf16 %v4805, %v4804
    %v4833 = vpack.c.bf16 %v4807, %v4806
    %v4834 = vpack.c.bf16 %v4809, %v4808
    %v4835 = vpack.c.bf16 %v4811, %v4810
    %v4836 = vpack.c.bf16 %v4813, %v4812
    %v4837 = vpack.c.bf16 %v4815, %v4814
    %v4838 = vpack.c.bf16 %v4817, %v4816
    %v4839 = vpack.c.bf16 %v4819, %v4818
    %v4840 = vpack.c.bf16 %v4821, %v4820
    %v4841 = vpack.c.bf16 %v4823, %v4822
    %v4842 = vpack.c.bf16 %v4825, %v4824
    %v4843 = vld [vmem:[#allocation4] sm:$0x1]
    %4845 = vrot.lane.b32.xlu0 %v4843, 120
    %v4846 = vpop.permute.xlu0 %4845
    %s4847 = vtos %v4846
    %v4848 = vstv %s4847
    %v4851 = vunpack.c.l.b16 %v4826
    %v4852 = vunpack.c.h.b16 %v4826
    %v4853 = vpack.c.b16 %v4851, %v4851
    %v4854 = vpack.c.b16 %v4852, %v4852
    %4857 = vmatpush.bf16.msra.mxu0 %v4834
    %4858 = vmatpush.bf16.msra.mxu0 %v4833
    %4859 = vmatpush.bf16.msra.mxu0 %v4832
    %4860 = vmatpush.bf16.msra.mxu0 %v4831
    %4861 = vmatpush.bf16.msra.mxu0 %v4830
    %4862 = vmatpush.bf16.msra.mxu0 %v4829
    %4863 = vmatpush.bf16.msra.mxu0 %v4828
    %4864 = vmatpush.bf16.msra.mxu0 %v4827
    %4865 = vmatmul.bf16.gmra.mxu0 %v4853
    %v4866 = vpop.f32.mrf.mxu0
    %v4867 = vadd.f32 %v4848, %v4866
    %v4868 = vpop.f32.mrf.mxu0
    %4869 = vdwg.mxu0
    %4870 = vmatpush.bf16.msra.mxu0 %v4842
    %4871 = vmatpush.bf16.msra.mxu0 %v4841
    %4872 = vmatpush.bf16.msra.mxu0 %v4840
    %4873 = vmatpush.bf16.msra.mxu0 %v4839
    %4874 = vmatpush.bf16.msra.mxu0 %v4838
    %4875 = vmatpush.bf16.msra.mxu0 %v4837
    %4876 = vmatpush.bf16.msra.mxu0 %v4836
    %4877 = vmatpush.bf16.msra.mxu0 %v4835
    %4878 = vmatmul.bf16.gmra.mxu0 %v4854
    %v4879 = vpop.f32.mrf.mxu0
    %v4880 = vadd.f32 %v4867, %v4879
    %v4881 = vpop.f32.mrf.mxu0
    %4882 = vdwg.mxu0
    %v4883 = vsub.f32 0.0, %v4880
    %v4884 = vmul.f32 %v4883, 1.442695
    %v4885 = vpow.pop %v4884
    %v4886 = vadd.f32 %v4885, 1.0
    %v4887 = vrcp.pop %v4886
    %4888 = vst [vmem:[%s5] sm:$0xff] %v4887
    // Predicated region
    $region30: #{mlp_bc_forward.1} parent=1 // pred_check
      _
    $region31: #{mlp_bc_forward.1} parent=1 // pred_check_branch
      %4890 = sbr.rel (0) target = $region33
    $region32: #{mlp_bc_forward.1} parent=1 // pred_region
      _
    $region33: #{mlp_bc_forward.1} parent=1 // pred_fallthru
      _
    // Predicated region
    $region34: #{mlp_bc_forward.1} parent=1 // pred_check
      _
    $region35: #{mlp_bc_forward.1} parent=1 // pred_check_branch
      %4892 = sbr.rel (0) target = $region37
    $region36: #{mlp_bc_forward.1} parent=1 // pred_region
      _
    $region37: #{mlp_bc_forward.1} parent=1 // pred_fallthru
      _
    %4893 = vsyncpa [#allocation3], 1
    %4894 = vsyncpa [#allocation5], 1

</llo_original>
